<compile_context>
chip_gen: v7x
topology: tpu7x:2x2x1
jax: 0.10.0
libtpu: 0.0.40
codegen_flags: <defaults>
</compile_context>

<pallas_src>
import functools

import jax
import jax.numpy as jnp
from jax import lax
from jax.experimental import pallas as pl
from jax.experimental.pallas import tpu as pltpu


def _decoder_kernel(x_ref, wi_ref, wh_ref, bi_ref, bh_ref, aw_ref, ab_ref,
                    o_ref, gi_scr, *, hidden, seq_len, batch_tile, fuse_gates):
    """One batch tile: full GRU recurrence + decoder attention.

    x_ref:  (Bt, T, H)          input tile (batch-first, as stored in HBM)
    wi_ref: (3, H, H) or (H, 3H) W_ih^T, gate order [r, z, n] (pre-cast dtype)
    wh_ref: (3, H, H) or (H, 3H) W_hh^T
    bi_ref: (3, 1, H) or (1, 3H) b_ih (f32)
    bh_ref: (3, 1, H) or (1, 3H) b_hh (f32)
    aw_ref: (T, T)   SMEM        attention Linear weight W_a[s, t]
    ab_ref: (T,)     SMEM        attention Linear bias
    o_ref:  (Bt, T*H)            flat lane-dense output tile
    gi_scr: (3, T, Bt, H) or (T, Bt, 3H) f32 scratch; r-slot is reused for the
            GRU outputs, z-slot for softmax logits / exponentials.
    """
    H, T, Bt = hidden, seq_len, batch_tile
    f32 = jnp.float32
    mm_dtype = wi_ref.dtype  # weights are pre-cast (bf16 / f32) in HBM

    # Single in-kernel layout change: (Bt, T, H) -> time-major (T, Bt, H) so the
    # serial loop reads contiguous [t] slices.
    x_tm = jnp.transpose(x_ref[...], (1, 0, 2)).astype(mm_dtype)

    # ---- Input projection hoisted out of the recurrence ---------------------
    if fuse_gates:
        # H % 128 == 0: one (T*Bt, H) @ (H, 3H) matmul; gate slices land on
        # 128-aligned lane boundaries.
        gi_scr[...] = (jnp.einsum('tbh,hg->tbg', x_tm, wi_ref[...],
                                  preferred_element_type=f32) + bi_ref[...])
        bh_f = bh_ref[...]                                     # (1, 3H) f32
    else:
        # H < 128: per-gate lane-aligned (., H) tiles.
        for k in range(3):
            gi_scr[k] = (jnp.einsum('tbh,hg->tbg', x_tm, wi_ref[k],
                                    preferred_element_type=f32) + bi_ref[k])
        bh_r, bh_z, bh_n = bh_ref[0], bh_ref[1], bh_ref[2]     # (1, H) f32

    # ---- GRU recurrence (PyTorch gate order / formulas) ----------------------
    def step(t, h_prev):
        h_mm = h_prev.astype(mm_dtype)
        if fuse_gates:
            gh = jnp.dot(h_mm, wh_ref[...], preferred_element_type=f32) + bh_f
            gi_t = gi_scr[t]                                   # (Bt, 3H)
            r = jax.nn.sigmoid(gi_t[:, 0:H] + gh[:, 0:H])
            z = jax.nn.sigmoid(gi_t[:, H:2 * H] + gh[:, H:2 * H])
            n = jnp.tanh(gi_t[:, 2 * H:3 * H] + r * gh[:, 2 * H:3 * H])
        else:
            gh_r = jnp.dot(h_mm, wh_ref[0], preferred_element_type=f32) + bh_r
            gh_z = jnp.dot(h_mm, wh_ref[1], preferred_element_type=f32) + bh_z
            gh_n = jnp.dot(h_mm, wh_ref[2], preferred_element_type=f32) + bh_n
            r = jax.nn.sigmoid(gi_scr[0, t] + gh_r)
            z = jax.nn.sigmoid(gi_scr[1, t] + gh_z)
            n = jnp.tanh(gi_scr[2, t] + r * gh_n)
        h_new = (1.0 - z) * n + z * h_prev                     # gate math in f32
        # The r-gate slot for step t was just consumed -> reuse it to store the
        # GRU output (saves a dedicated (T, Bt, H) scratch buffer).
        if fuse_gates:
            gi_scr[t, :, 0:H] = h_new
        else:
            gi_scr[0, t] = h_new
        return h_new

    h0 = jnp.zeros((Bt, H), f32)                    # PyTorch default h_0 = 0
    unroll = True if T <= 16 else 4                 # bound code size for long T
    lax.fori_loop(0, T, step, h0, unroll=unroll)

    # Dropout is identity at inference time.

    # ---- Decoder attention: H stays on the lane dim --------------------------
    # logits[s, b, h] = sum_t W_a[s, t] * g[t, b, h] + b_a[s]
    # softmax over s = cross-vreg VPU max/sum; no lane transposes anywhere.
    def read_g(t):
        return gi_scr[t, :, 0:H] if fuse_gates else gi_scr[0, t]

    def read_l(s):
        return gi_scr[s, :, H:2 * H] if fuse_gates else gi_scr[1, s]

    def write_l(s, v):
        if fuse_gates:
            gi_scr[s, :, H:2 * H] = v
        else:
            gi_scr[1, s] = v

    m = None
    for s in range(T):                              # W_a / b_a scalars from SMEM
        acc = read_g(0) * aw_ref[s, 0]
        for t in range(1, T):
            acc = acc + read_g(t) * aw_ref[s, t]
        acc = acc + ab_ref[s]
        write_l(s, acc)                             # z-gate slot reused for logits
        m = acc if s == 0 else jnp.maximum(m, acc)

    denom = jnp.zeros((Bt, H), f32)
    for s in range(T):
        e_s = jnp.exp(read_l(s) - m)                # EUP
        write_l(s, e_s)
        denom = denom + e_s
    # Approximate (EUP) reciprocal: softmax rows sum to 1 only to ~1e-3 relative;
    # switch to an exact divide if the consumer needs exact normalization.
    inv = pl.reciprocal(denom, approx=True)

    # out[b, t*H + h] = g[t, b, h] * attn[t, b, h]; flat output block gives
    # unmasked, lane-dense stores even when H < 128.
    if fuse_gates:
        for t in range(T):                          # 128-aligned lane slices
            o_ref[:, t * H:(t + 1) * H] = (read_g(t) * read_l(t) * inv).astype(o_ref.dtype)
    else:
        rows = [read_g(t) * read_l(t) * inv for t in range(T)]
        o_ref[...] = jnp.concatenate(rows, axis=-1).astype(o_ref.dtype)


def _vmem_capacity_bytes():
    """Per-core VMEM capacity (v5e/v6e: 128 MiB, v7x: 64 MiB); safe fallback."""
    try:
        info = pltpu.get_tpu_info()
        cap = int(getattr(info, "vmem_capacity_bytes", 0))
        if cap > 0:
            return cap
    except Exception:
        pass
    return 64 * 1024 * 1024


def _choose_batch_tile(batch, seq_len, hidden, target, vmem_budget, weight_bytes):
    """Batch tile: multiple of 8 (or the full batch when B <= 8), sized so
    2x(x) + 2x(out) + 3 projection slabs + weights fit the VMEM budget, and
    capped so there are >= 2 tiles (v7x megacore) when the batch allows it."""
    if batch <= 8:
        return batch, batch
    row_bytes = seq_len * hidden * 4

    def tile_bytes(bt):
        return 7 * bt * row_bytes + weight_bytes

    bt = max(8, (min(target, batch) // 8) * 8)
    while bt > 8 and tile_bytes(bt) > vmem_budget:
        bt -= 8
    if batch >= 16:
        bt = min(bt, max(8, ((batch // 2) // 8) * 8))
    b_pad = ((batch + bt - 1) // bt) * bt            # cdiv tiling (pad, not bt=1)
    return bt, b_pad


def decoder_forward(x, params, *, block_b=None, matmul_dtype=jnp.bfloat16):
    """x: (B, T, H) float32, batch_first like the PyTorch module.

    matmul_dtype=bfloat16 by default: full-rate MXU on v5e/v6e/v7x with f32
    accumulation; pass jnp.float32 for bit-tighter numerics.  The recurrence is
    latency/EUP-bound, so the tiling logic prefers the largest batch tile that
    fits VMEM over further MXU-shape tuning.
    """
    B, T, H = x.shape
    fuse = (H % 128 == 0)

    cap = _vmem_capacity_bytes()
    vmem_limit = int(min(cap, 100 * 1024 * 1024))    # ~100 MiB on v5e/v6e, 64 on v7x
    mm_bytes = jnp.dtype(matmul_dtype).itemsize
    weight_bytes = 2 * 3 * H * H * mm_bytes + 6 * H * 4 + T * T * 4 + T * 4
    if block_b is None:
        block_b = 256 if cap >= 96 * 1024 * 1024 else 128
    bt, b_pad = _choose_batch_tile(B, T, H, block_b, int(0.7 * cap), weight_bytes)
    grid = (b_pad // bt,)

    if b_pad != B:
        x = jnp.pad(x, ((0, b_pad - B), (0, 0), (0, 0)))

    # Weights pre-cast to the MXU operand dtype in HBM (no per-iteration casts in
    # the kernel, half the resident VMEM); biases stay f32.
    if fuse:
        wi = jnp.concatenate([params['w_ih_t'][k] for k in range(3)], axis=-1).astype(matmul_dtype)
        wh = jnp.concatenate([params['w_hh_t'][k] for k in range(3)], axis=-1).astype(matmul_dtype)
        bi = jnp.concatenate([params['b_ih'][k] for k in range(3)], axis=-1)   # (1, 3H)
        bh = jnp.concatenate([params['b_hh'][k] for k in range(3)], axis=-1)
        w_shape, b_shape = (H, 3 * H), (1, 3 * H)
        w_map = b_map = (lambda i: (0, 0))
        scratch = pltpu.VMEM((T, bt, 3 * H), jnp.float32)
    else:
        wi = params['w_ih_t'].astype(matmul_dtype)
        wh = params['w_hh_t'].astype(matmul_dtype)
        bi, bh = params['b_ih'], params['b_hh']
        w_shape, b_shape = (3, H, H), (3, 1, H)
        w_map = b_map = (lambda i: (0, 0, 0))
        scratch = pltpu.VMEM((3, T, bt, H), jnp.float32)

    kernel = functools.partial(_decoder_kernel, hidden=H, seq_len=T,
                               batch_tile=bt, fuse_gates=fuse)

    out_flat = pl.pallas_call(
        kernel,
        out_shape=jax.ShapeDtypeStruct((b_pad, T * H), jnp.float32),
        grid=grid,
        in_specs=[
            pl.BlockSpec((bt, T, H), lambda i: (i, 0, 0)),                  # x tile
            pl.BlockSpec(w_shape, w_map, pipeline_mode=pl.Buffered(1)),     # W_ih^T
            pl.BlockSpec(w_shape, w_map, pipeline_mode=pl.Buffered(1)),     # W_hh^T
            pl.BlockSpec(b_shape, b_map, pipeline_mode=pl.Buffered(1)),     # b_ih
            pl.BlockSpec(b_shape, b_map, pipeline_mode=pl.Buffered(1)),     # b_hh
            pl.BlockSpec(memory_space=pltpu.MemorySpace.SMEM),              # W_attn
            pl.BlockSpec(memory_space=pltpu.MemorySpace.SMEM),              # b_attn
        ],
        out_specs=pl.BlockSpec((bt, T * H), lambda i: (i, 0)),              # lane-dense
        scratch_shapes=[scratch],
        compiler_params=pltpu.CompilerParams(
            dimension_semantics=("parallel",),       # shard batch tiles across TCs (v7x)
            vmem_limit_bytes=vmem_limit,
        ),
    )(x, wi, wh, bi, bh, params['attn_w'], params['attn_b'])

    return out_flat[:B].reshape(B, T, H)             # free metadata reshape


def init_params(key, hidden, seq_len):
    """Deterministic params matching nn.GRU / nn.Linear shapes, repacked per gate
    (lane-aligned) and pre-transposed for `x @ W^T`."""
    ks = jax.random.split(key, 6)
    stdv_g = 1.0 / jnp.sqrt(hidden)
    stdv_a = 1.0 / jnp.sqrt(seq_len)

    w_ih = jax.random.uniform(ks[0], (3 * hidden, hidden), jnp.float32, -stdv_g, stdv_g)
    w_hh = jax.random.uniform(ks[1], (3 * hidden, hidden), jnp.float32, -stdv_g, stdv_g)
    b_ih = jax.random.uniform(ks[2], (3 * hidden,), jnp.float32, -stdv_g, stdv_g)
    b_hh = jax.random.uniform(ks[3], (3 * hidden,), jnp.float32, -stdv_g, stdv_g)
    attn_w = jax.random.uniform(ks[4], (seq_len, seq_len), jnp.float32, -stdv_a, stdv_a)
    attn_b = jax.random.uniform(ks[5], (seq_len,), jnp.float32, -stdv_a, stdv_a)

    return {
        'w_ih_t': jnp.transpose(w_ih.reshape(3, hidden, hidden), (0, 2, 1)),  # (3, Hin, Hout)
        'w_hh_t': jnp.transpose(w_hh.reshape(3, hidden, hidden), (0, 2, 1)),
        'b_ih': b_ih.reshape(3, 1, hidden),
        'b_hh': b_hh.reshape(3, 1, hidden),
        'attn_w': attn_w,                           # raw Linear weight W_a[s, t]
        'attn_b': attn_b,                           # (T,)
    }


def decoder_reference(x, params):
    """Pure-JAX reference (PyTorch semantics) for verification."""
    B, T, H = x.shape
    wi, wh = params['w_ih_t'], params['w_hh_t']
    bi, bh = params['b_ih'], params['b_hh']

    def step(h, xt):
        r = jax.nn.sigmoid(xt @ wi[0] + bi[0] + h @ wh[0] + bh[0])
        z = jax.nn.sigmoid(xt @ wi[1] + bi[1] + h @ wh[1] + bh[1])
        n = jnp.tanh(xt @ wi[2] + bi[2] + r * (h @ wh[2] + bh[2]))
        h_new = (1.0 - z) * n + z * h
        return h_new, h_new

    _, g_tm = lax.scan(step, jnp.zeros((B, H), jnp.float32), jnp.transpose(x, (1, 0, 2)))
    g = jnp.transpose(g_tm, (1, 0, 2))                                # (B, T, H)
    y = jnp.einsum('bht,st->bhs', jnp.transpose(g, (0, 2, 1)), params['attn_w']) + params['attn_b']
    attn = jax.nn.softmax(y, axis=-1)
    return g * jnp.transpose(attn, (0, 2, 1))


if __name__ == "__main__":
    key = jax.random.PRNGKey(0)
    k_x, k_p, k_x2, k_p2 = jax.random.split(key, 4)

    # --- Config 1: module's small shape (per-gate path, H < 128) -------------
    B, T, H = 2, 8, 32           # batch, seq_length, regressor_layer_size
    x = jax.random.normal(k_x, (B, T, H), jnp.float32)
    params = init_params(k_p, H, T)
    ref = decoder_reference(x, params)

    out_f32 = jax.block_until_ready(decoder_forward(x, params, matmul_dtype=jnp.float32))
    assert out_f32.shape == (B, T, H)
    assert jnp.allclose(out_f32, ref, atol=5e-3, rtol=5e-3), "f32 kernel mismatch vs reference"

    out_bf16 = jax.block_until_ready(decoder_forward(x, params))   # default bf16 MXU operands
    assert out_bf16.shape == (B, T, H)
    assert jnp.allclose(out_bf16, ref, atol=5e-2, rtol=5e-2), "bf16-matmul kernel mismatch"

    # --- Config 2: H multiple of 128 exercises the fused-gate (H, 3H) path ---
    B2, T2, H2 = 4, 8, 128
    x2 = jax.random.normal(k_x2, (B2, T2, H2), jnp.float32)
    params2 = init_params(k_p2, H2, T2)
    ref2 = decoder_reference(x2, params2)
    out2 = jax.block_until_ready(decoder_forward(x2, params2, matmul_dtype=jnp.float32))
    assert out2.shape == (B2, T2, H2)
    assert jnp.allclose(out2, ref2, atol=5e-3, rtol=5e-3), "fused-gate kernel mismatch"

    # TODO(synk): dropout is treated as inference-mode identity (no RNG masking in kernel).
    print("KERNEL_OK")
</pallas_src>

<mosaic_0001>
module attributes {stable_mosaic.version = 11 : i64} {
  func.func @_decoder_kernel(%arg0: i32, %arg1: memref<2x8x32xf32, #tpu.memory_space<vmem>>, %arg2: memref<3x32x32xf32, #tpu.memory_space<vmem>>, %arg3: memref<3x32x32xf32, #tpu.memory_space<vmem>>, %arg4: memref<3x1x32xf32, #tpu.memory_space<vmem>>, %arg5: memref<3x1x32xf32, #tpu.memory_space<vmem>>, %arg6: memref<8x8xf32, #tpu.memory_space<smem>>, %arg7: memref<8xf32, #tpu.memory_space<smem>>, %arg8: memref<2x256xf32, #tpu.memory_space<vmem>>, %arg9: memref<3x8x2x32xf32, #tpu.memory_space<vmem>>) attributes {dimension_semantics = [#tpu.dimension_semantics<parallel>], iteration_bounds = array<i64: 1>, scalar_prefetch = 0 : i64, scratch_operands = 1 : i64, tpu.core_type = #tpu.core_type<tc>, window_params = [{transform_indices = @transform_0, window_bounds = array<i64: 2, 8, 32>}, {pipeline_mode = #tpu.pipeline_mode<synchronous>, transform_indices = @transform_1, window_bounds = array<i64: 3, 32, 32>}, {pipeline_mode = #tpu.pipeline_mode<synchronous>, transform_indices = @transform_2, window_bounds = array<i64: 3, 32, 32>}, {pipeline_mode = #tpu.pipeline_mode<synchronous>, transform_indices = @transform_3, window_bounds = array<i64: 3, 1, 32>}, {pipeline_mode = #tpu.pipeline_mode<synchronous>, transform_indices = @transform_4, window_bounds = array<i64: 3, 1, 32>}, {transform_indices = @transform_5, window_bounds = array<i64: 8, 8>}, {transform_indices = @transform_6, window_bounds = array<i64: 8>}, {transform_indices = @transform_7, window_bounds = array<i64: 2, 256>}]} {
    %c0 = arith.constant 0 : index
    %c0_0 = arith.constant 0 : index
    %c0_1 = arith.constant 0 : index
    %0 = vector.load %arg1[%c0, %c0_0, %c0_1] : memref<2x8x32xf32, #tpu.memory_space<vmem>>, vector<2x8x32xf32>
    %1 = tpu.transpose %0, [1, 0, 2] : vector<2x8x32xf32> -> vector<8x2x32xf32>
    %c0_2 = arith.constant 0 : index
    %c0_3 = arith.constant 0 : index
    %c0_4 = arith.constant 0 : index
    %2 = vector.load %arg2[%c0_2, %c0_3, %c0_4] : memref<3x32x32xf32, #tpu.memory_space<vmem>>, vector<1x32x32xf32>
    %3 = vector.shape_cast %2 : vector<1x32x32xf32> to vector<32x32xf32>
    "tpu.trace_start"() <{level = 10 : i32, message = "tbh,hg->tbg"}> : () -> ()
    %cst = arith.constant dense<0.000000e+00> : vector<8x2x32xf32>
    %4 = tpu.matmul %1, %3, %cst {dimension_numbers = #tpu.dot_dimension_numbers<[2], [0], [0, 1], [1], [0, 0, 0, 1, 1, 1], [], []>} : vector<8x2x32xf32>, vector<32x32xf32>, vector<8x2x32xf32> -> vector<8x2x32xf32>
    "tpu.trace_stop"() : () -> ()
    %c0_5 = arith.constant 0 : index
    %c0_6 = arith.constant 0 : index
    %c0_7 = arith.constant 0 : index
    %5 = vector.load %arg4[%c0_5, %c0_6, %c0_7] : memref<3x1x32xf32, #tpu.memory_space<vmem>>, vector<1x1x32xf32>
    %6 = vector.shape_cast %5 : vector<1x1x32xf32> to vector<1x32xf32>
    %7 = vector.shape_cast %6 : vector<1x32xf32> to vector<1x1x32xf32>
    %8 = vector.broadcast %7 : vector<1x1x32xf32> to vector<8x2x32xf32>
    %9 = arith.addf %4, %8 : vector<8x2x32xf32>
    %c0_8 = arith.constant 0 : index
    %c0_9 = arith.constant 0 : index
    %c0_10 = arith.constant 0 : index
    %c0_11 = arith.constant 0 : index
    %10 = vector.load %arg9[%c0_8, %c0_9, %c0_10, %c0_11] : memref<3x8x2x32xf32, #tpu.memory_space<vmem>>, vector<1x8x2x32xf32>
    %11 = vector.shape_cast %10 : vector<1x8x2x32xf32> to vector<8x2x32xf32>
    %12 = vector.shape_cast %9 : vector<8x2x32xf32> to vector<1x8x2x32xf32>
    tpu.vector_store %arg9[%c0_8, %c0_9, %c0_10, %c0_11], %12 {strides = array<i32>} : memref<3x8x2x32xf32, #tpu.memory_space<vmem>>, vector<1x8x2x32xf32>,
    %c1 = arith.constant 1 : index
    %c0_12 = arith.constant 0 : index
    %c0_13 = arith.constant 0 : index
    %13 = vector.load %arg2[%c1, %c0_12, %c0_13] : memref<3x32x32xf32, #tpu.memory_space<vmem>>, vector<1x32x32xf32>
    %14 = vector.shape_cast %13 : vector<1x32x32xf32> to vector<32x32xf32>
    "tpu.trace_start"() <{level = 10 : i32, message = "tbh,hg->tbg"}> : () -> ()
    %cst_14 = arith.constant dense<0.000000e+00> : vector<8x2x32xf32>
    %15 = tpu.matmul %1, %14, %cst_14 {dimension_numbers = #tpu.dot_dimension_numbers<[2], [0], [0, 1], [1], [0, 0, 0, 1, 1, 1], [], []>} : vector<8x2x32xf32>, vector<32x32xf32>, vector<8x2x32xf32> -> vector<8x2x32xf32>
    "tpu.trace_stop"() : () -> ()
    %c1_15 = arith.constant 1 : index
    %c0_16 = arith.constant 0 : index
    %c0_17 = arith.constant 0 : index
    %16 = vector.load %arg4[%c1_15, %c0_16, %c0_17] : memref<3x1x32xf32, #tpu.memory_space<vmem>>, vector<1x1x32xf32>
    %17 = vector.shape_cast %16 : vector<1x1x32xf32> to vector<1x32xf32>
    %18 = vector.shape_cast %17 : vector<1x32xf32> to vector<1x1x32xf32>
    %19 = vector.broadcast %18 : vector<1x1x32xf32> to vector<8x2x32xf32>
    %20 = arith.addf %15, %19 : vector<8x2x32xf32>
    %c1_18 = arith.constant 1 : index
    %c0_19 = arith.constant 0 : index
    %c0_20 = arith.constant 0 : index
    %c0_21 = arith.constant 0 : index
    %21 = vector.load %arg9[%c1_18, %c0_19, %c0_20, %c0_21] : memref<3x8x2x32xf32, #tpu.memory_space<vmem>>, vector<1x8x2x32xf32>
    %22 = vector.shape_cast %21 : vector<1x8x2x32xf32> to vector<8x2x32xf32>
    %23 = vector.shape_cast %20 : vector<8x2x32xf32> to vector<1x8x2x32xf32>
    tpu.vector_store %arg9[%c1_18, %c0_19, %c0_20, %c0_21], %23 {strides = array<i32>} : memref<3x8x2x32xf32, #tpu.memory_space<vmem>>, vector<1x8x2x32xf32>,
    %c2 = arith.constant 2 : index
    %c0_22 = arith.constant 0 : index
    %c0_23 = arith.constant 0 : index
    %24 = vector.load %arg2[%c2, %c0_22, %c0_23] : memref<3x32x32xf32, #tpu.memory_space<vmem>>, vector<1x32x32xf32>
    %25 = vector.shape_cast %24 : vector<1x32x32xf32> to vector<32x32xf32>
    "tpu.trace_start"() <{level = 10 : i32, message = "tbh,hg->tbg"}> : () -> ()
    %cst_24 = arith.constant dense<0.000000e+00> : vector<8x2x32xf32>
    %26 = tpu.matmul %1, %25, %cst_24 {dimension_numbers = #tpu.dot_dimension_numbers<[2], [0], [0, 1], [1], [0, 0, 0, 1, 1, 1], [], []>} : vector<8x2x32xf32>, vector<32x32xf32>, vector<8x2x32xf32> -> vector<8x2x32xf32>
    "tpu.trace_stop"() : () -> ()
    %c2_25 = arith.constant 2 : index
    %c0_26 = arith.constant 0 : index
    %c0_27 = arith.constant 0 : index
    %27 = vector.load %arg4[%c2_25, %c0_26, %c0_27] : memref<3x1x32xf32, #tpu.memory_space<vmem>>, vector<1x1x32xf32>
    %28 = vector.shape_cast %27 : vector<1x1x32xf32> to vector<1x32xf32>
    %29 = vector.shape_cast %28 : vector<1x32xf32> to vector<1x1x32xf32>
    %30 = vector.broadcast %29 : vector<1x1x32xf32> to vector<8x2x32xf32>
    %31 = arith.addf %26, %30 : vector<8x2x32xf32>
    %c2_28 = arith.constant 2 : index
    %c0_29 = arith.constant 0 : index
    %c0_30 = arith.constant 0 : index
    %c0_31 = arith.constant 0 : index
    %32 = vector.load %arg9[%c2_28, %c0_29, %c0_30, %c0_31] : memref<3x8x2x32xf32, #tpu.memory_space<vmem>>, vector<1x8x2x32xf32>
    %33 = vector.shape_cast %32 : vector<1x8x2x32xf32> to vector<8x2x32xf32>
    %34 = vector.shape_cast %31 : vector<8x2x32xf32> to vector<1x8x2x32xf32>
    tpu.vector_store %arg9[%c2_28, %c0_29, %c0_30, %c0_31], %34 {strides = array<i32>} : memref<3x8x2x32xf32, #tpu.memory_space<vmem>>, vector<1x8x2x32xf32>,
    %c0_32 = arith.constant 0 : index
    %c0_33 = arith.constant 0 : index
    %c0_34 = arith.constant 0 : index
    %35 = vector.load %arg5[%c0_32, %c0_33, %c0_34] : memref<3x1x32xf32, #tpu.memory_space<vmem>>, vector<1x1x32xf32>
    %36 = vector.shape_cast %35 : vector<1x1x32xf32> to vector<1x32xf32>
    %c1_35 = arith.constant 1 : index
    %c0_36 = arith.constant 0 : index
    %c0_37 = arith.constant 0 : index
    %37 = vector.load %arg5[%c1_35, %c0_36, %c0_37] : memref<3x1x32xf32, #tpu.memory_space<vmem>>, vector<1x1x32xf32>
    %38 = vector.shape_cast %37 : vector<1x1x32xf32> to vector<1x32xf32>
    %c2_38 = arith.constant 2 : index
    %c0_39 = arith.constant 0 : index
    %c0_40 = arith.constant 0 : index
    %39 = vector.load %arg5[%c2_38, %c0_39, %c0_40] : memref<3x1x32xf32, #tpu.memory_space<vmem>>, vector<1x1x32xf32>
    %40 = vector.shape_cast %39 : vector<1x1x32xf32> to vector<1x32xf32>
    %cst_41 = arith.constant 0.000000e+00 : f32
    %41 = vector.broadcast %cst_41 : f32 to vector<2x32xf32>
    %c0_i32 = arith.constant 0 : i32
    %c0_42 = arith.constant 0 : index
    %c0_43 = arith.constant 0 : index
    %c0_44 = arith.constant 0 : index
    %42 = vector.load %arg3[%c0_42, %c0_43, %c0_44] : memref<3x32x32xf32, #tpu.memory_space<vmem>>, vector<1x32x32xf32>
    %43 = vector.shape_cast %42 : vector<1x32x32xf32> to vector<32x32xf32>
    %cst_45 = arith.constant dense<0.000000e+00> : vector<2x32xf32>
    %44 = tpu.matmul %41, %43, %cst_45 {dimension_numbers = #tpu.dot_dimension_numbers<[1], [0], [0], [1], [0, 0, 1, 1], [], []>} : vector<2x32xf32>, vector<32x32xf32>, vector<2x32xf32> -> vector<2x32xf32>
    %45 = vector.broadcast %36 : vector<1x32xf32> to vector<2x32xf32>
    %46 = arith.addf %44, %45 : vector<2x32xf32>
    %c1_46 = arith.constant 1 : index
    %c0_47 = arith.constant 0 : index
    %c0_48 = arith.constant 0 : index
    %47 = vector.load %arg3[%c1_46, %c0_47, %c0_48] : memref<3x32x32xf32, #tpu.memory_space<vmem>>, vector<1x32x32xf32>
    %48 = vector.shape_cast %47 : vector<1x32x32xf32> to vector<32x32xf32>
    %cst_49 = arith.constant dense<0.000000e+00> : vector<2x32xf32>
    %49 = tpu.matmul %41, %48, %cst_49 {dimension_numbers = #tpu.dot_dimension_numbers<[1], [0], [0], [1], [0, 0, 1, 1], [], []>} : vector<2x32xf32>, vector<32x32xf32>, vector<2x32xf32> -> vector<2x32xf32>
    %50 = vector.broadcast %38 : vector<1x32xf32> to vector<2x32xf32>
    %51 = arith.addf %49, %50 : vector<2x32xf32>
    %c2_50 = arith.constant 2 : index
    %c0_51 = arith.constant 0 : index
    %c0_52 = arith.constant 0 : index
    %52 = vector.load %arg3[%c2_50, %c0_51, %c0_52] : memref<3x32x32xf32, #tpu.memory_space<vmem>>, vector<1x32x32xf32>
    %53 = vector.shape_cast %52 : vector<1x32x32xf32> to vector<32x32xf32>
    %cst_53 = arith.constant dense<0.000000e+00> : vector<2x32xf32>
    %54 = tpu.matmul %41, %53, %cst_53 {dimension_numbers = #tpu.dot_dimension_numbers<[1], [0], [0], [1], [0, 0, 1, 1], [], []>} : vector<2x32xf32>, vector<32x32xf32>, vector<2x32xf32> -> vector<2x32xf32>
    %55 = vector.broadcast %40 : vector<1x32xf32> to vector<2x32xf32>
    %56 = arith.addf %54, %55 : vector<2x32xf32>
    %c0_54 = arith.constant 0 : index
    %57 = arith.index_cast %c0_i32 : i32 to index
    %c0_55 = arith.constant 0 : index
    %c0_56 = arith.constant 0 : index
    %58 = vector.load %arg9[%c0_54, %57, %c0_55, %c0_56] : memref<3x8x2x32xf32, #tpu.memory_space<vmem>>, vector<1x1x2x32xf32>
    %59 = vector.shape_cast %58 : vector<1x1x2x32xf32> to vector<2x32xf32>
    %60 = arith.addf %59, %46 : vector<2x32xf32>
    %61 = arith.negf %60 : vector<2x32xf32>
    %62 = math.exp %61 : vector<2x32xf32>
    %cst_57 = arith.constant 1.000000e+00 : f32
    %63 = vector.broadcast %cst_57 : f32 to vector<2x32xf32>
    %64 = arith.addf %63, %62 : vector<2x32xf32>
    %65 = arith.divf %63, %64 : vector<2x32xf32>
    %c1_58 = arith.constant 1 : index
    %66 = arith.index_cast %c0_i32 : i32 to index
    %c0_59 = arith.constant 0 : index
    %c0_60 = arith.constant 0 : index
    %67 = vector.load %arg9[%c1_58, %66, %c0_59, %c0_60] : memref<3x8x2x32xf32, #tpu.memory_space<vmem>>, vector<1x1x2x32xf32>
    %68 = vector.shape_cast %67 : vector<1x1x2x32xf32> to vector<2x32xf32>
    %69 = arith.addf %68, %51 : vector<2x32xf32>
    %70 = arith.negf %69 : vector<2x32xf32>
    %71 = math.exp %70 : vector<2x32xf32>
    %cst_61 = arith.constant 1.000000e+00 : f32
    %72 = vector.broadcast %cst_61 : f32 to vector<2x32xf32>
    %73 = arith.addf %72, %71 : vector<2x32xf32>
    %74 = arith.divf %72, %73 : vector<2x32xf32>
    %c2_62 = arith.constant 2 : index
    %75 = arith.index_cast %c0_i32 : i32 to index
    %c0_63 = arith.constant 0 : index
    %c0_64 = arith.constant 0 : index
    %76 = vector.load %arg9[%c2_62, %75, %c0_63, %c0_64] : memref<3x8x2x32xf32, #tpu.memory_space<vmem>>, vector<1x1x2x32xf32>
    %77 = vector.shape_cast %76 : vector<1x1x2x32xf32> to vector<2x32xf32>
    %78 = arith.mulf %65, %56 : vector<2x32xf32>
    %79 = arith.addf %77, %78 : vector<2x32xf32>
    %80 = math.tanh %79 : vector<2x32xf32>
    %cst_65 = arith.constant 1.000000e+00 : f32
    %81 = vector.broadcast %cst_65 : f32 to vector<2x32xf32>
    %82 = arith.subf %81, %74 : vector<2x32xf32>
    %83 = arith.mulf %82, %80 : vector<2x32xf32>
    %84 = arith.mulf %74, %41 : vector<2x32xf32>
    %85 = arith.addf %83, %84 : vector<2x32xf32>
    %c0_66 = arith.constant 0 : index
    %86 = arith.index_cast %c0_i32 : i32 to index
    %c0_67 = arith.constant 0 : index
    %c0_68 = arith.constant 0 : index
    %87 = vector.load %arg9[%c0_66, %86, %c0_67, %c0_68] : memref<3x8x2x32xf32, #tpu.memory_space<vmem>>, vector<1x1x2x32xf32>
    %88 = vector.shape_cast %87 : vector<1x1x2x32xf32> to vector<2x32xf32>
    %89 = vector.shape_cast %85 : vector<2x32xf32> to vector<1x1x2x32xf32>
    tpu.vector_store %arg9[%c0_66, %86, %c0_67, %c0_68], %89 {strides = array<i32>} : memref<3x8x2x32xf32, #tpu.memory_space<vmem>>, vector<1x1x2x32xf32>,
    %c1_i32 = arith.constant 1 : i32
    %c0_69 = arith.constant 0 : index
    %c0_70 = arith.constant 0 : index
    %c0_71 = arith.constant 0 : index
    %90 = vector.load %arg3[%c0_69, %c0_70, %c0_71] : memref<3x32x32xf32, #tpu.memory_space<vmem>>, vector<1x32x32xf32>
    %91 = vector.shape_cast %90 : vector<1x32x32xf32> to vector<32x32xf32>
    %cst_72 = arith.constant dense<0.000000e+00> : vector<2x32xf32>
    %92 = tpu.matmul %85, %91, %cst_72 {dimension_numbers = #tpu.dot_dimension_numbers<[1], [0], [0], [1], [0, 0, 1, 1], [], []>} : vector<2x32xf32>, vector<32x32xf32>, vector<2x32xf32> -> vector<2x32xf32>
    %93 = vector.broadcast %36 : vector<1x32xf32> to vector<2x32xf32>
    %94 = arith.addf %92, %93 : vector<2x32xf32>
    %c1_73 = arith.constant 1 : index
    %c0_74 = arith.constant 0 : index
    %c0_75 = arith.constant 0 : index
    %95 = vector.load %arg3[%c1_73, %c0_74, %c0_75] : memref<3x32x32xf32, #tpu.memory_space<vmem>>, vector<1x32x32xf32>
    %96 = vector.shape_cast %95 : vector<1x32x32xf32> to vector<32x32xf32>
    %cst_76 = arith.constant dense<0.000000e+00> : vector<2x32xf32>
    %97 = tpu.matmul %85, %96, %cst_76 {dimension_numbers = #tpu.dot_dimension_numbers<[1], [0], [0], [1], [0, 0, 1, 1], [], []>} : vector<2x32xf32>, vector<32x32xf32>, vector<2x32xf32> -> vector<2x32xf32>
    %98 = vector.broadcast %38 : vector<1x32xf32> to vector<2x32xf32>
    %99 = arith.addf %97, %98 : vector<2x32xf32>
    %c2_77 = arith.constant 2 : index
    %c0_78 = arith.constant 0 : index
    %c0_79 = arith.constant 0 : index
    %100 = vector.load %arg3[%c2_77, %c0_78, %c0_79] : memref<3x32x32xf32, #tpu.memory_space<vmem>>, vector<1x32x32xf32>
    %101 = vector.shape_cast %100 : vector<1x32x32xf32> to vector<32x32xf32>
    %cst_80 = arith.constant dense<0.000000e+00> : vector<2x32xf32>
    %102 = tpu.matmul %85, %101, %cst_80 {dimension_numbers = #tpu.dot_dimension_numbers<[1], [0], [0], [1], [0, 0, 1, 1], [], []>} : vector<2x32xf32>, vector<32x32xf32>, vector<2x32xf32> -> vector<2x32xf32>
    %103 = vector.broadcast %40 : vector<1x32xf32> to vector<2x32xf32>
    %104 = arith.addf %102, %103 : vector<2x32xf32>
    %c0_81 = arith.constant 0 : index
    %105 = arith.index_cast %c1_i32 : i32 to index
    %c0_82 = arith.constant 0 : index
    %c0_83 = arith.constant 0 : index
    %106 = vector.load %arg9[%c0_81, %105, %c0_82, %c0_83] : memref<3x8x2x32xf32, #tpu.memory_space<vmem>>, vector<1x1x2x32xf32>
    %107 = vector.shape_cast %106 : vector<1x1x2x32xf32> to vector<2x32xf32>
    %108 = arith.addf %107, %94 : vector<2x32xf32>
    %109 = arith.negf %108 : vector<2x32xf32>
    %110 = math.exp %109 : vector<2x32xf32>
    %cst_84 = arith.constant 1.000000e+00 : f32
    %111 = vector.broadcast %cst_84 : f32 to vector<2x32xf32>
    %112 = arith.addf %111, %110 : vector<2x32xf32>
    %113 = arith.divf %111, %112 : vector<2x32xf32>
    %c1_85 = arith.constant 1 : index
    %114 = arith.index_cast %c1_i32 : i32 to index
    %c0_86 = arith.constant 0 : index
    %c0_87 = arith.constant 0 : index
    %115 = vector.load %arg9[%c1_85, %114, %c0_86, %c0_87] : memref<3x8x2x32xf32, #tpu.memory_space<vmem>>, vector<1x1x2x32xf32>
    %116 = vector.shape_cast %115 : vector<1x1x2x32xf32> to vector<2x32xf32>
    %117 = arith.addf %116, %99 : vector<2x32xf32>
    %118 = arith.negf %117 : vector<2x32xf32>
    %119 = math.exp %118 : vector<2x32xf32>
    %cst_88 = arith.constant 1.000000e+00 : f32
    %120 = vector.broadcast %cst_88 : f32 to vector<2x32xf32>
    %121 = arith.addf %120, %119 : vector<2x32xf32>
    %122 = arith.divf %120, %121 : vector<2x32xf32>
    %c2_89 = arith.constant 2 : index
    %123 = arith.index_cast %c1_i32 : i32 to index
    %c0_90 = arith.constant 0 : index
    %c0_91 = arith.constant 0 : index
    %124 = vector.load %arg9[%c2_89, %123, %c0_90, %c0_91] : memref<3x8x2x32xf32, #tpu.memory_space<vmem>>, vector<1x1x2x32xf32>
    %125 = vector.shape_cast %124 : vector<1x1x2x32xf32> to vector<2x32xf32>
    %126 = arith.mulf %113, %104 : vector<2x32xf32>
    %127 = arith.addf %125, %126 : vector<2x32xf32>
    %128 = math.tanh %127 : vector<2x32xf32>
    %cst_92 = arith.constant 1.000000e+00 : f32
    %129 = vector.broadcast %cst_92 : f32 to vector<2x32xf32>
    %130 = arith.subf %129, %122 : vector<2x32xf32>
    %131 = arith.mulf %130, %128 : vector<2x32xf32>
    %132 = arith.mulf %122, %85 : vector<2x32xf32>
    %133 = arith.addf %131, %132 : vector<2x32xf32>
    %c0_93 = arith.constant 0 : index
    %134 = arith.index_cast %c1_i32 : i32 to index
    %c0_94 = arith.constant 0 : index
    %c0_95 = arith.constant 0 : index
    %135 = vector.load %arg9[%c0_93, %134, %c0_94, %c0_95] : memref<3x8x2x32xf32, #tpu.memory_space<vmem>>, vector<1x1x2x32xf32>
    %136 = vector.shape_cast %135 : vector<1x1x2x32xf32> to vector<2x32xf32>
    %137 = vector.shape_cast %133 : vector<2x32xf32> to vector<1x1x2x32xf32>
    tpu.vector_store %arg9[%c0_93, %134, %c0_94, %c0_95], %137 {strides = array<i32>} : memref<3x8x2x32xf32, #tpu.memory_space<vmem>>, vector<1x1x2x32xf32>,
    %c2_i32 = arith.constant 2 : i32
    %c0_96 = arith.constant 0 : index
    %c0_97 = arith.constant 0 : index
    %c0_98 = arith.constant 0 : index
    %138 = vector.load %arg3[%c0_96, %c0_97, %c0_98] : memref<3x32x32xf32, #tpu.memory_space<vmem>>, vector<1x32x32xf32>
    %139 = vector.shape_cast %138 : vector<1x32x32xf32> to vector<32x32xf32>
    %cst_99 = arith.constant dense<0.000000e+00> : vector<2x32xf32>
    %140 = tpu.matmul %133, %139, %cst_99 {dimension_numbers = #tpu.dot_dimension_numbers<[1], [0], [0], [1], [0, 0, 1, 1], [], []>} : vector<2x32xf32>, vector<32x32xf32>, vector<2x32xf32> -> vector<2x32xf32>
    %141 = vector.broadcast %36 : vector<1x32xf32> to vector<2x32xf32>
    %142 = arith.addf %140, %141 : vector<2x32xf32>
    %c1_100 = arith.constant 1 : index
    %c0_101 = arith.constant 0 : index
    %c0_102 = arith.constant 0 : index
    %143 = vector.load %arg3[%c1_100, %c0_101, %c0_102] : memref<3x32x32xf32, #tpu.memory_space<vmem>>, vector<1x32x32xf32>
    %144 = vector.shape_cast %143 : vector<1x32x32xf32> to vector<32x32xf32>
    %cst_103 = arith.constant dense<0.000000e+00> : vector<2x32xf32>
    %145 = tpu.matmul %133, %144, %cst_103 {dimension_numbers = #tpu.dot_dimension_numbers<[1], [0], [0], [1], [0, 0, 1, 1], [], []>} : vector<2x32xf32>, vector<32x32xf32>, vector<2x32xf32> -> vector<2x32xf32>
    %146 = vector.broadcast %38 : vector<1x32xf32> to vector<2x32xf32>
    %147 = arith.addf %145, %146 : vector<2x32xf32>
    %c2_104 = arith.constant 2 : index
    %c0_105 = arith.constant 0 : index
    %c0_106 = arith.constant 0 : index
    %148 = vector.load %arg3[%c2_104, %c0_105, %c0_106] : memref<3x32x32xf32, #tpu.memory_space<vmem>>, vector<1x32x32xf32>
    %149 = vector.shape_cast %148 : vector<1x32x32xf32> to vector<32x32xf32>
    %cst_107 = arith.constant dense<0.000000e+00> : vector<2x32xf32>
    %150 = tpu.matmul %133, %149, %cst_107 {dimension_numbers = #tpu.dot_dimension_numbers<[1], [0], [0], [1], [0, 0, 1, 1], [], []>} : vector<2x32xf32>, vector<32x32xf32>, vector<2x32xf32> -> vector<2x32xf32>
    %151 = vector.broadcast %40 : vector<1x32xf32> to vector<2x32xf32>
    %152 = arith.addf %150, %151 : vector<2x32xf32>
    %c0_108 = arith.constant 0 : index
    %153 = arith.index_cast %c2_i32 : i32 to index
    %c0_109 = arith.constant 0 : index
    %c0_110 = arith.constant 0 : index
    %154 = vector.load %arg9[%c0_108, %153, %c0_109, %c0_110] : memref<3x8x2x32xf32, #tpu.memory_space<vmem>>, vector<1x1x2x32xf32>
    %155 = vector.shape_cast %154 : vector<1x1x2x32xf32> to vector<2x32xf32>
    %156 = arith.addf %155, %142 : vector<2x32xf32>
    %157 = arith.negf %156 : vector<2x32xf32>
    %158 = math.exp %157 : vector<2x32xf32>
    %cst_111 = arith.constant 1.000000e+00 : f32
    %159 = vector.broadcast %cst_111 : f32 to vector<2x32xf32>
    %160 = arith.addf %159, %158 : vector<2x32xf32>
    %161 = arith.divf %159, %160 : vector<2x32xf32>
    %c1_112 = arith.constant 1 : index
    %162 = arith.index_cast %c2_i32 : i32 to index
    %c0_113 = arith.constant 0 : index
    %c0_114 = arith.constant 0 : index
    %163 = vector.load %arg9[%c1_112, %162, %c0_113, %c0_114] : memref<3x8x2x32xf32, #tpu.memory_space<vmem>>, vector<1x1x2x32xf32>
    %164 = vector.shape_cast %163 : vector<1x1x2x32xf32> to vector<2x32xf32>
    %165 = arith.addf %164, %147 : vector<2x32xf32>
    %166 = arith.negf %165 : vector<2x32xf32>
    %167 = math.exp %166 : vector<2x32xf32>
    %cst_115 = arith.constant 1.000000e+00 : f32
    %168 = vector.broadcast %cst_115 : f32 to vector<2x32xf32>
    %169 = arith.addf %168, %167 : vector<2x32xf32>
    %170 = arith.divf %168, %169 : vector<2x32xf32>
    %c2_116 = arith.constant 2 : index
    %171 = arith.index_cast %c2_i32 : i32 to index
    %c0_117 = arith.constant 0 : index
    %c0_118 = arith.constant 0 : index
    %172 = vector.load %arg9[%c2_116, %171, %c0_117, %c0_118] : memref<3x8x2x32xf32, #tpu.memory_space<vmem>>, vector<1x1x2x32xf32>
    %173 = vector.shape_cast %172 : vector<1x1x2x32xf32> to vector<2x32xf32>
    %174 = arith.mulf %161, %152 : vector<2x32xf32>
    %175 = arith.addf %173, %174 : vector<2x32xf32>
    %176 = math.tanh %175 : vector<2x32xf32>
    %cst_119 = arith.constant 1.000000e+00 : f32
    %177 = vector.broadcast %cst_119 : f32 to vector<2x32xf32>
    %178 = arith.subf %177, %170 : vector<2x32xf32>
    %179 = arith.mulf %178, %176 : vector<2x32xf32>
    %180 = arith.mulf %170, %133 : vector<2x32xf32>
    %181 = arith.addf %179, %180 : vector<2x32xf32>
    %c0_120 = arith.constant 0 : index
    %182 = arith.index_cast %c2_i32 : i32 to index
    %c0_121 = arith.constant 0 : index
    %c0_122 = arith.constant 0 : index
    %183 = vector.load %arg9[%c0_120, %182, %c0_121, %c0_122] : memref<3x8x2x32xf32, #tpu.memory_space<vmem>>, vector<1x1x2x32xf32>
    %184 = vector.shape_cast %183 : vector<1x1x2x32xf32> to vector<2x32xf32>
    %185 = vector.shape_cast %181 : vector<2x32xf32> to vector<1x1x2x32xf32>
    tpu.vector_store %arg9[%c0_120, %182, %c0_121, %c0_122], %185 {strides = array<i32>} : memref<3x8x2x32xf32, #tpu.memory_space<vmem>>, vector<1x1x2x32xf32>,
    %c3_i32 = arith.constant 3 : i32
    %c0_123 = arith.constant 0 : index
    %c0_124 = arith.constant 0 : index
    %c0_125 = arith.constant 0 : index
    %186 = vector.load %arg3[%c0_123, %c0_124, %c0_125] : memref<3x32x32xf32, #tpu.memory_space<vmem>>, vector<1x32x32xf32>
    %187 = vector.shape_cast %186 : vector<1x32x32xf32> to vector<32x32xf32>
    %cst_126 = arith.constant dense<0.000000e+00> : vector<2x32xf32>
    %188 = tpu.matmul %181, %187, %cst_126 {dimension_numbers = #tpu.dot_dimension_numbers<[1], [0], [0], [1], [0, 0, 1, 1], [], []>} : vector<2x32xf32>, vector<32x32xf32>, vector<2x32xf32> -> vector<2x32xf32>
    %189 = vector.broadcast %36 : vector<1x32xf32> to vector<2x32xf32>
    %190 = arith.addf %188, %189 : vector<2x32xf32>
    %c1_127 = arith.constant 1 : index
    %c0_128 = arith.constant 0 : index
    %c0_129 = arith.constant 0 : index
    %191 = vector.load %arg3[%c1_127, %c0_128, %c0_129] : memref<3x32x32xf32, #tpu.memory_space<vmem>>, vector<1x32x32xf32>
    %192 = vector.shape_cast %191 : vector<1x32x32xf32> to vector<32x32xf32>
    %cst_130 = arith.constant dense<0.000000e+00> : vector<2x32xf32>
    %193 = tpu.matmul %181, %192, %cst_130 {dimension_numbers = #tpu.dot_dimension_numbers<[1], [0], [0], [1], [0, 0, 1, 1], [], []>} : vector<2x32xf32>, vector<32x32xf32>, vector<2x32xf32> -> vector<2x32xf32>
    %194 = vector.broadcast %38 : vector<1x32xf32> to vector<2x32xf32>
    %195 = arith.addf %193, %194 : vector<2x32xf32>
    %c2_131 = arith.constant 2 : index
    %c0_132 = arith.constant 0 : index
    %c0_133 = arith.constant 0 : index
    %196 = vector.load %arg3[%c2_131, %c0_132, %c0_133] : memref<3x32x32xf32, #tpu.memory_space<vmem>>, vector<1x32x32xf32>
    %197 = vector.shape_cast %196 : vector<1x32x32xf32> to vector<32x32xf32>
    %cst_134 = arith.constant dense<0.000000e+00> : vector<2x32xf32>
    %198 = tpu.matmul %181, %197, %cst_134 {dimension_numbers = #tpu.dot_dimension_numbers<[1], [0], [0], [1], [0, 0, 1, 1], [], []>} : vector<2x32xf32>, vector<32x32xf32>, vector<2x32xf32> -> vector<2x32xf32>
    %199 = vector.broadcast %40 : vector<1x32xf32> to vector<2x32xf32>
    %200 = arith.addf %198, %199 : vector<2x32xf32>
    %c0_135 = arith.constant 0 : index
    %201 = arith.index_cast %c3_i32 : i32 to index
    %c0_136 = arith.constant 0 : index
    %c0_137 = arith.constant 0 : index
    %202 = vector.load %arg9[%c0_135, %201, %c0_136, %c0_137] : memref<3x8x2x32xf32, #tpu.memory_space<vmem>>, vector<1x1x2x32xf32>
    %203 = vector.shape_cast %202 : vector<1x1x2x32xf32> to vector<2x32xf32>
    %204 = arith.addf %203, %190 : vector<2x32xf32>
    %205 = arith.negf %204 : vector<2x32xf32>
    %206 = math.exp %205 : vector<2x32xf32>
    %cst_138 = arith.constant 1.000000e+00 : f32
    %207 = vector.broadcast %cst_138 : f32 to vector<2x32xf32>
    %208 = arith.addf %207, %206 : vector<2x32xf32>
    %209 = arith.divf %207, %208 : vector<2x32xf32>
    %c1_139 = arith.constant 1 : index
    %210 = arith.index_cast %c3_i32 : i32 to index
    %c0_140 = arith.constant 0 : index
    %c0_141 = arith.constant 0 : index
    %211 = vector.load %arg9[%c1_139, %210, %c0_140, %c0_141] : memref<3x8x2x32xf32, #tpu.memory_space<vmem>>, vector<1x1x2x32xf32>
    %212 = vector.shape_cast %211 : vector<1x1x2x32xf32> to vector<2x32xf32>
    %213 = arith.addf %212, %195 : vector<2x32xf32>
    %214 = arith.negf %213 : vector<2x32xf32>
    %215 = math.exp %214 : vector<2x32xf32>
    %cst_142 = arith.constant 1.000000e+00 : f32
    %216 = vector.broadcast %cst_142 : f32 to vector<2x32xf32>
    %217 = arith.addf %216, %215 : vector<2x32xf32>
    %218 = arith.divf %216, %217 : vector<2x32xf32>
    %c2_143 = arith.constant 2 : index
    %219 = arith.index_cast %c3_i32 : i32 to index
    %c0_144 = arith.constant 0 : index
    %c0_145 = arith.constant 0 : index
    %220 = vector.load %arg9[%c2_143, %219, %c0_144, %c0_145] : memref<3x8x2x32xf32, #tpu.memory_space<vmem>>, vector<1x1x2x32xf32>
    %221 = vector.shape_cast %220 : vector<1x1x2x32xf32> to vector<2x32xf32>
    %222 = arith.mulf %209, %200 : vector<2x32xf32>
    %223 = arith.addf %221, %222 : vector<2x32xf32>
    %224 = math.tanh %223 : vector<2x32xf32>
    %cst_146 = arith.constant 1.000000e+00 : f32
    %225 = vector.broadcast %cst_146 : f32 to vector<2x32xf32>
    %226 = arith.subf %225, %218 : vector<2x32xf32>
    %227 = arith.mulf %226, %224 : vector<2x32xf32>
    %228 = arith.mulf %218, %181 : vector<2x32xf32>
    %229 = arith.addf %227, %228 : vector<2x32xf32>
    %c0_147 = arith.constant 0 : index
    %230 = arith.index_cast %c3_i32 : i32 to index
    %c0_148 = arith.constant 0 : index
    %c0_149 = arith.constant 0 : index
    %231 = vector.load %arg9[%c0_147, %230, %c0_148, %c0_149] : memref<3x8x2x32xf32, #tpu.memory_space<vmem>>, vector<1x1x2x32xf32>
    %232 = vector.shape_cast %231 : vector<1x1x2x32xf32> to vector<2x32xf32>
    %233 = vector.shape_cast %229 : vector<2x32xf32> to vector<1x1x2x32xf32>
    tpu.vector_store %arg9[%c0_147, %230, %c0_148, %c0_149], %233 {strides = array<i32>} : memref<3x8x2x32xf32, #tpu.memory_space<vmem>>, vector<1x1x2x32xf32>,
    %c4_i32 = arith.constant 4 : i32
    %c0_150 = arith.constant 0 : index
    %c0_151 = arith.constant 0 : index
    %c0_152 = arith.constant 0 : index
    %234 = vector.load %arg3[%c0_150, %c0_151, %c0_152] : memref<3x32x32xf32, #tpu.memory_space<vmem>>, vector<1x32x32xf32>
    %235 = vector.shape_cast %234 : vector<1x32x32xf32> to vector<32x32xf32>
    %cst_153 = arith.constant dense<0.000000e+00> : vector<2x32xf32>
    %236 = tpu.matmul %229, %235, %cst_153 {dimension_numbers = #tpu.dot_dimension_numbers<[1], [0], [0], [1], [0, 0, 1, 1], [], []>} : vector<2x32xf32>, vector<32x32xf32>, vector<2x32xf32> -> vector<2x32xf32>
    %237 = vector.broadcast %36 : vector<1x32xf32> to vector<2x32xf32>
    %238 = arith.addf %236, %237 : vector<2x32xf32>
    %c1_154 = arith.constant 1 : index
    %c0_155 = arith.constant 0 : index
    %c0_156 = arith.constant 0 : index
    %239 = vector.load %arg3[%c1_154, %c0_155, %c0_156] : memref<3x32x32xf32, #tpu.memory_space<vmem>>, vector<1x32x32xf32>
    %240 = vector.shape_cast %239 : vector<1x32x32xf32> to vector<32x32xf32>
    %cst_157 = arith.constant dense<0.000000e+00> : vector<2x32xf32>
    %241 = tpu.matmul %229, %240, %cst_157 {dimension_numbers = #tpu.dot_dimension_numbers<[1], [0], [0], [1], [0, 0, 1, 1], [], []>} : vector<2x32xf32>, vector<32x32xf32>, vector<2x32xf32> -> vector<2x32xf32>
    %242 = vector.broadcast %38 : vector<1x32xf32> to vector<2x32xf32>
    %243 = arith.addf %241, %242 : vector<2x32xf32>
    %c2_158 = arith.constant 2 : index
    %c0_159 = arith.constant 0 : index
    %c0_160 = arith.constant 0 : index
    %244 = vector.load %arg3[%c2_158, %c0_159, %c0_160] : memref<3x32x32xf32, #tpu.memory_space<vmem>>, vector<1x32x32xf32>
    %245 = vector.shape_cast %244 : vector<1x32x32xf32> to vector<32x32xf32>
    %cst_161 = arith.constant dense<0.000000e+00> : vector<2x32xf32>
    %246 = tpu.matmul %229, %245, %cst_161 {dimension_numbers = #tpu.dot_dimension_numbers<[1], [0], [0], [1], [0, 0, 1, 1], [], []>} : vector<2x32xf32>, vector<32x32xf32>, vector<2x32xf32> -> vector<2x32xf32>
    %247 = vector.broadcast %40 : vector<1x32xf32> to vector<2x32xf32>
    %248 = arith.addf %246, %247 : vector<2x32xf32>
    %c0_162 = arith.constant 0 : index
    %249 = arith.index_cast %c4_i32 : i32 to index
    %c0_163 = arith.constant 0 : index
    %c0_164 = arith.constant 0 : index
    %250 = vector.load %arg9[%c0_162, %249, %c0_163, %c0_164] : memref<3x8x2x32xf32, #tpu.memory_space<vmem>>, vector<1x1x2x32xf32>
    %251 = vector.shape_cast %250 : vector<1x1x2x32xf32> to vector<2x32xf32>
    %252 = arith.addf %251, %238 : vector<2x32xf32>
    %253 = arith.negf %252 : vector<2x32xf32>
    %254 = math.exp %253 : vector<2x32xf32>
    %cst_165 = arith.constant 1.000000e+00 : f32
    %255 = vector.broadcast %cst_165 : f32 to vector<2x32xf32>
    %256 = arith.addf %255, %254 : vector<2x32xf32>
    %257 = arith.divf %255, %256 : vector<2x32xf32>
    %c1_166 = arith.constant 1 : index
    %258 = arith.index_cast %c4_i32 : i32 to index
    %c0_167 = arith.constant 0 : index
    %c0_168 = arith.constant 0 : index
    %259 = vector.load %arg9[%c1_166, %258, %c0_167, %c0_168] : memref<3x8x2x32xf32, #tpu.memory_space<vmem>>, vector<1x1x2x32xf32>
    %260 = vector.shape_cast %259 : vector<1x1x2x32xf32> to vector<2x32xf32>
    %261 = arith.addf %260, %243 : vector<2x32xf32>
    %262 = arith.negf %261 : vector<2x32xf32>
    %263 = math.exp %262 : vector<2x32xf32>
    %cst_169 = arith.constant 1.000000e+00 : f32
    %264 = vector.broadcast %cst_169 : f32 to vector<2x32xf32>
    %265 = arith.addf %264, %263 : vector<2x32xf32>
    %266 = arith.divf %264, %265 : vector<2x32xf32>
    %c2_170 = arith.constant 2 : index
    %267 = arith.index_cast %c4_i32 : i32 to index
    %c0_171 = arith.constant 0 : index
    %c0_172 = arith.constant 0 : index
    %268 = vector.load %arg9[%c2_170, %267, %c0_171, %c0_172] : memref<3x8x2x32xf32, #tpu.memory_space<vmem>>, vector<1x1x2x32xf32>
    %269 = vector.shape_cast %268 : vector<1x1x2x32xf32> to vector<2x32xf32>
    %270 = arith.mulf %257, %248 : vector<2x32xf32>
    %271 = arith.addf %269, %270 : vector<2x32xf32>
    %272 = math.tanh %271 : vector<2x32xf32>
    %cst_173 = arith.constant 1.000000e+00 : f32
    %273 = vector.broadcast %cst_173 : f32 to vector<2x32xf32>
    %274 = arith.subf %273, %266 : vector<2x32xf32>
    %275 = arith.mulf %274, %272 : vector<2x32xf32>
    %276 = arith.mulf %266, %229 : vector<2x32xf32>
    %277 = arith.addf %275, %276 : vector<2x32xf32>
    %c0_174 = arith.constant 0 : index
    %278 = arith.index_cast %c4_i32 : i32 to index
    %c0_175 = arith.constant 0 : index
    %c0_176 = arith.constant 0 : index
    %279 = vector.load %arg9[%c0_174, %278, %c0_175, %c0_176] : memref<3x8x2x32xf32, #tpu.memory_space<vmem>>, vector<1x1x2x32xf32>
    %280 = vector.shape_cast %279 : vector<1x1x2x32xf32> to vector<2x32xf32>
    %281 = vector.shape_cast %277 : vector<2x32xf32> to vector<1x1x2x32xf32>
    tpu.vector_store %arg9[%c0_174, %278, %c0_175, %c0_176], %281 {strides = array<i32>} : memref<3x8x2x32xf32, #tpu.memory_space<vmem>>, vector<1x1x2x32xf32>,
    %c5_i32 = arith.constant 5 : i32
    %c0_177 = arith.constant 0 : index
    %c0_178 = arith.constant 0 : index
    %c0_179 = arith.constant 0 : index
    %282 = vector.load %arg3[%c0_177, %c0_178, %c0_179] : memref<3x32x32xf32, #tpu.memory_space<vmem>>, vector<1x32x32xf32>
    %283 = vector.shape_cast %282 : vector<1x32x32xf32> to vector<32x32xf32>
    %cst_180 = arith.constant dense<0.000000e+00> : vector<2x32xf32>
    %284 = tpu.matmul %277, %283, %cst_180 {dimension_numbers = #tpu.dot_dimension_numbers<[1], [0], [0], [1], [0, 0, 1, 1], [], []>} : vector<2x32xf32>, vector<32x32xf32>, vector<2x32xf32> -> vector<2x32xf32>
    %285 = vector.broadcast %36 : vector<1x32xf32> to vector<2x32xf32>
    %286 = arith.addf %284, %285 : vector<2x32xf32>
    %c1_181 = arith.constant 1 : index
    %c0_182 = arith.constant 0 : index
    %c0_183 = arith.constant 0 : index
    %287 = vector.load %arg3[%c1_181, %c0_182, %c0_183] : memref<3x32x32xf32, #tpu.memory_space<vmem>>, vector<1x32x32xf32>
    %288 = vector.shape_cast %287 : vector<1x32x32xf32> to vector<32x32xf32>
    %cst_184 = arith.constant dense<0.000000e+00> : vector<2x32xf32>
    %289 = tpu.matmul %277, %288, %cst_184 {dimension_numbers = #tpu.dot_dimension_numbers<[1], [0], [0], [1], [0, 0, 1, 1], [], []>} : vector<2x32xf32>, vector<32x32xf32>, vector<2x32xf32> -> vector<2x32xf32>
    %290 = vector.broadcast %38 : vector<1x32xf32> to vector<2x32xf32>
    %291 = arith.addf %289, %290 : vector<2x32xf32>
    %c2_185 = arith.constant 2 : index
    %c0_186 = arith.constant 0 : index
    %c0_187 = arith.constant 0 : index
    %292 = vector.load %arg3[%c2_185, %c0_186, %c0_187] : memref<3x32x32xf32, #tpu.memory_space<vmem>>, vector<1x32x32xf32>
    %293 = vector.shape_cast %292 : vector<1x32x32xf32> to vector<32x32xf32>
    %cst_188 = arith.constant dense<0.000000e+00> : vector<2x32xf32>
    %294 = tpu.matmul %277, %293, %cst_188 {dimension_numbers = #tpu.dot_dimension_numbers<[1], [0], [0], [1], [0, 0, 1, 1], [], []>} : vector<2x32xf32>, vector<32x32xf32>, vector<2x32xf32> -> vector<2x32xf32>
    %295 = vector.broadcast %40 : vector<1x32xf32> to vector<2x32xf32>
    %296 = arith.addf %294, %295 : vector<2x32xf32>
    %c0_189 = arith.constant 0 : index
    %297 = arith.index_cast %c5_i32 : i32 to index
    %c0_190 = arith.constant 0 : index
    %c0_191 = arith.constant 0 : index
    %298 = vector.load %arg9[%c0_189, %297, %c0_190, %c0_191] : memref<3x8x2x32xf32, #tpu.memory_space<vmem>>, vector<1x1x2x32xf32>
    %299 = vector.shape_cast %298 : vector<1x1x2x32xf32> to vector<2x32xf32>
    %300 = arith.addf %299, %286 : vector<2x32xf32>
    %301 = arith.negf %300 : vector<2x32xf32>
    %302 = math.exp %301 : vector<2x32xf32>
    %cst_192 = arith.constant 1.000000e+00 : f32
    %303 = vector.broadcast %cst_192 : f32 to vector<2x32xf32>
    %304 = arith.addf %303, %302 : vector<2x32xf32>
    %305 = arith.divf %303, %304 : vector<2x32xf32>
    %c1_193 = arith.constant 1 : index
    %306 = arith.index_cast %c5_i32 : i32 to index
    %c0_194 = arith.constant 0 : index
    %c0_195 = arith.constant 0 : index
    %307 = vector.load %arg9[%c1_193, %306, %c0_194, %c0_195] : memref<3x8x2x32xf32, #tpu.memory_space<vmem>>, vector<1x1x2x32xf32>
    %308 = vector.shape_cast %307 : vector<1x1x2x32xf32> to vector<2x32xf32>
    %309 = arith.addf %308, %291 : vector<2x32xf32>
    %310 = arith.negf %309 : vector<2x32xf32>
    %311 = math.exp %310 : vector<2x32xf32>
    %cst_196 = arith.constant 1.000000e+00 : f32
    %312 = vector.broadcast %cst_196 : f32 to vector<2x32xf32>
    %313 = arith.addf %312, %311 : vector<2x32xf32>
    %314 = arith.divf %312, %313 : vector<2x32xf32>
    %c2_197 = arith.constant 2 : index
    %315 = arith.index_cast %c5_i32 : i32 to index
    %c0_198 = arith.constant 0 : index
    %c0_199 = arith.constant 0 : index
    %316 = vector.load %arg9[%c2_197, %315, %c0_198, %c0_199] : memref<3x8x2x32xf32, #tpu.memory_space<vmem>>, vector<1x1x2x32xf32>
    %317 = vector.shape_cast %316 : vector<1x1x2x32xf32> to vector<2x32xf32>
    %318 = arith.mulf %305, %296 : vector<2x32xf32>
    %319 = arith.addf %317, %318 : vector<2x32xf32>
    %320 = math.tanh %319 : vector<2x32xf32>
    %cst_200 = arith.constant 1.000000e+00 : f32
    %321 = vector.broadcast %cst_200 : f32 to vector<2x32xf32>
    %322 = arith.subf %321, %314 : vector<2x32xf32>
    %323 = arith.mulf %322, %320 : vector<2x32xf32>
    %324 = arith.mulf %314, %277 : vector<2x32xf32>
    %325 = arith.addf %323, %324 : vector<2x32xf32>
    %c0_201 = arith.constant 0 : index
    %326 = arith.index_cast %c5_i32 : i32 to index
    %c0_202 = arith.constant 0 : index
    %c0_203 = arith.constant 0 : index
    %327 = vector.load %arg9[%c0_201, %326, %c0_202, %c0_203] : memref<3x8x2x32xf32, #tpu.memory_space<vmem>>, vector<1x1x2x32xf32>
    %328 = vector.shape_cast %327 : vector<1x1x2x32xf32> to vector<2x32xf32>
    %329 = vector.shape_cast %325 : vector<2x32xf32> to vector<1x1x2x32xf32>
    tpu.vector_store %arg9[%c0_201, %326, %c0_202, %c0_203], %329 {strides = array<i32>} : memref<3x8x2x32xf32, #tpu.memory_space<vmem>>, vector<1x1x2x32xf32>,
    %c6_i32 = arith.constant 6 : i32
    %c0_204 = arith.constant 0 : index
    %c0_205 = arith.constant 0 : index
    %c0_206 = arith.constant 0 : index
    %330 = vector.load %arg3[%c0_204, %c0_205, %c0_206] : memref<3x32x32xf32, #tpu.memory_space<vmem>>, vector<1x32x32xf32>
    %331 = vector.shape_cast %330 : vector<1x32x32xf32> to vector<32x32xf32>
    %cst_207 = arith.constant dense<0.000000e+00> : vector<2x32xf32>
    %332 = tpu.matmul %325, %331, %cst_207 {dimension_numbers = #tpu.dot_dimension_numbers<[1], [0], [0], [1], [0, 0, 1, 1], [], []>} : vector<2x32xf32>, vector<32x32xf32>, vector<2x32xf32> -> vector<2x32xf32>
    %333 = vector.broadcast %36 : vector<1x32xf32> to vector<2x32xf32>
    %334 = arith.addf %332, %333 : vector<2x32xf32>
    %c1_208 = arith.constant 1 : index
    %c0_209 = arith.constant 0 : index
    %c0_210 = arith.constant 0 : index
    %335 = vector.load %arg3[%c1_208, %c0_209, %c0_210] : memref<3x32x32xf32, #tpu.memory_space<vmem>>, vector<1x32x32xf32>
    %336 = vector.shape_cast %335 : vector<1x32x32xf32> to vector<32x32xf32>
    %cst_211 = arith.constant dense<0.000000e+00> : vector<2x32xf32>
    %337 = tpu.matmul %325, %336, %cst_211 {dimension_numbers = #tpu.dot_dimension_numbers<[1], [0], [0], [1], [0, 0, 1, 1], [], []>} : vector<2x32xf32>, vector<32x32xf32>, vector<2x32xf32> -> vector<2x32xf32>
    %338 = vector.broadcast %38 : vector<1x32xf32> to vector<2x32xf32>
    %339 = arith.addf %337, %338 : vector<2x32xf32>
    %c2_212 = arith.constant 2 : index
    %c0_213 = arith.constant 0 : index
    %c0_214 = arith.constant 0 : index
    %340 = vector.load %arg3[%c2_212, %c0_213, %c0_214] : memref<3x32x32xf32, #tpu.memory_space<vmem>>, vector<1x32x32xf32>
    %341 = vector.shape_cast %340 : vector<1x32x32xf32> to vector<32x32xf32>
    %cst_215 = arith.constant dense<0.000000e+00> : vector<2x32xf32>
    %342 = tpu.matmul %325, %341, %cst_215 {dimension_numbers = #tpu.dot_dimension_numbers<[1], [0], [0], [1], [0, 0, 1, 1], [], []>} : vector<2x32xf32>, vector<32x32xf32>, vector<2x32xf32> -> vector<2x32xf32>
    %343 = vector.broadcast %40 : vector<1x32xf32> to vector<2x32xf32>
    %344 = arith.addf %342, %343 : vector<2x32xf32>
    %c0_216 = arith.constant 0 : index
    %345 = arith.index_cast %c6_i32 : i32 to index
    %c0_217 = arith.constant 0 : index
    %c0_218 = arith.constant 0 : index
    %346 = vector.load %arg9[%c0_216, %345, %c0_217, %c0_218] : memref<3x8x2x32xf32, #tpu.memory_space<vmem>>, vector<1x1x2x32xf32>
    %347 = vector.shape_cast %346 : vector<1x1x2x32xf32> to vector<2x32xf32>
    %348 = arith.addf %347, %334 : vector<2x32xf32>
    %349 = arith.negf %348 : vector<2x32xf32>
    %350 = math.exp %349 : vector<2x32xf32>
    %cst_219 = arith.constant 1.000000e+00 : f32
    %351 = vector.broadcast %cst_219 : f32 to vector<2x32xf32>
    %352 = arith.addf %351, %350 : vector<2x32xf32>
    %353 = arith.divf %351, %352 : vector<2x32xf32>
    %c1_220 = arith.constant 1 : index
    %354 = arith.index_cast %c6_i32 : i32 to index
    %c0_221 = arith.constant 0 : index
    %c0_222 = arith.constant 0 : index
    %355 = vector.load %arg9[%c1_220, %354, %c0_221, %c0_222] : memref<3x8x2x32xf32, #tpu.memory_space<vmem>>, vector<1x1x2x32xf32>
    %356 = vector.shape_cast %355 : vector<1x1x2x32xf32> to vector<2x32xf32>
    %357 = arith.addf %356, %339 : vector<2x32xf32>
    %358 = arith.negf %357 : vector<2x32xf32>
    %359 = math.exp %358 : vector<2x32xf32>
    %cst_223 = arith.constant 1.000000e+00 : f32
    %360 = vector.broadcast %cst_223 : f32 to vector<2x32xf32>
    %361 = arith.addf %360, %359 : vector<2x32xf32>
    %362 = arith.divf %360, %361 : vector<2x32xf32>
    %c2_224 = arith.constant 2 : index
    %363 = arith.index_cast %c6_i32 : i32 to index
    %c0_225 = arith.constant 0 : index
    %c0_226 = arith.constant 0 : index
    %364 = vector.load %arg9[%c2_224, %363, %c0_225, %c0_226] : memref<3x8x2x32xf32, #tpu.memory_space<vmem>>, vector<1x1x2x32xf32>
    %365 = vector.shape_cast %364 : vector<1x1x2x32xf32> to vector<2x32xf32>
    %366 = arith.mulf %353, %344 : vector<2x32xf32>
    %367 = arith.addf %365, %366 : vector<2x32xf32>
    %368 = math.tanh %367 : vector<2x32xf32>
    %cst_227 = arith.constant 1.000000e+00 : f32
    %369 = vector.broadcast %cst_227 : f32 to vector<2x32xf32>
    %370 = arith.subf %369, %362 : vector<2x32xf32>
    %371 = arith.mulf %370, %368 : vector<2x32xf32>
    %372 = arith.mulf %362, %325 : vector<2x32xf32>
    %373 = arith.addf %371, %372 : vector<2x32xf32>
    %c0_228 = arith.constant 0 : index
    %374 = arith.index_cast %c6_i32 : i32 to index
    %c0_229 = arith.constant 0 : index
    %c0_230 = arith.constant 0 : index
    %375 = vector.load %arg9[%c0_228, %374, %c0_229, %c0_230] : memref<3x8x2x32xf32, #tpu.memory_space<vmem>>, vector<1x1x2x32xf32>
    %376 = vector.shape_cast %375 : vector<1x1x2x32xf32> to vector<2x32xf32>
    %377 = vector.shape_cast %373 : vector<2x32xf32> to vector<1x1x2x32xf32>
    tpu.vector_store %arg9[%c0_228, %374, %c0_229, %c0_230], %377 {strides = array<i32>} : memref<3x8x2x32xf32, #tpu.memory_space<vmem>>, vector<1x1x2x32xf32>,
    %c7_i32 = arith.constant 7 : i32
    %c0_231 = arith.constant 0 : index
    %c0_232 = arith.constant 0 : index
    %c0_233 = arith.constant 0 : index
    %378 = vector.load %arg3[%c0_231, %c0_232, %c0_233] : memref<3x32x32xf32, #tpu.memory_space<vmem>>, vector<1x32x32xf32>
    %379 = vector.shape_cast %378 : vector<1x32x32xf32> to vector<32x32xf32>
    %cst_234 = arith.constant dense<0.000000e+00> : vector<2x32xf32>
    %380 = tpu.matmul %373, %379, %cst_234 {dimension_numbers = #tpu.dot_dimension_numbers<[1], [0], [0], [1], [0, 0, 1, 1], [], []>} : vector<2x32xf32>, vector<32x32xf32>, vector<2x32xf32> -> vector<2x32xf32>
    %381 = vector.broadcast %36 : vector<1x32xf32> to vector<2x32xf32>
    %382 = arith.addf %380, %381 : vector<2x32xf32>
    %c1_235 = arith.constant 1 : index
    %c0_236 = arith.constant 0 : index
    %c0_237 = arith.constant 0 : index
    %383 = vector.load %arg3[%c1_235, %c0_236, %c0_237] : memref<3x32x32xf32, #tpu.memory_space<vmem>>, vector<1x32x32xf32>
    %384 = vector.shape_cast %383 : vector<1x32x32xf32> to vector<32x32xf32>
    %cst_238 = arith.constant dense<0.000000e+00> : vector<2x32xf32>
    %385 = tpu.matmul %373, %384, %cst_238 {dimension_numbers = #tpu.dot_dimension_numbers<[1], [0], [0], [1], [0, 0, 1, 1], [], []>} : vector<2x32xf32>, vector<32x32xf32>, vector<2x32xf32> -> vector<2x32xf32>
    %386 = vector.broadcast %38 : vector<1x32xf32> to vector<2x32xf32>
    %387 = arith.addf %385, %386 : vector<2x32xf32>
    %c2_239 = arith.constant 2 : index
    %c0_240 = arith.constant 0 : index
    %c0_241 = arith.constant 0 : index
    %388 = vector.load %arg3[%c2_239, %c0_240, %c0_241] : memref<3x32x32xf32, #tpu.memory_space<vmem>>, vector<1x32x32xf32>
    %389 = vector.shape_cast %388 : vector<1x32x32xf32> to vector<32x32xf32>
    %cst_242 = arith.constant dense<0.000000e+00> : vector<2x32xf32>
    %390 = tpu.matmul %373, %389, %cst_242 {dimension_numbers = #tpu.dot_dimension_numbers<[1], [0], [0], [1], [0, 0, 1, 1], [], []>} : vector<2x32xf32>, vector<32x32xf32>, vector<2x32xf32> -> vector<2x32xf32>
    %391 = vector.broadcast %40 : vector<1x32xf32> to vector<2x32xf32>
    %392 = arith.addf %390, %391 : vector<2x32xf32>
    %c0_243 = arith.constant 0 : index
    %393 = arith.index_cast %c7_i32 : i32 to index
    %c0_244 = arith.constant 0 : index
    %c0_245 = arith.constant 0 : index
    %394 = vector.load %arg9[%c0_243, %393, %c0_244, %c0_245] : memref<3x8x2x32xf32, #tpu.memory_space<vmem>>, vector<1x1x2x32xf32>
    %395 = vector.shape_cast %394 : vector<1x1x2x32xf32> to vector<2x32xf32>
    %396 = arith.addf %395, %382 : vector<2x32xf32>
    %397 = arith.negf %396 : vector<2x32xf32>
    %398 = math.exp %397 : vector<2x32xf32>
    %cst_246 = arith.constant 1.000000e+00 : f32
    %399 = vector.broadcast %cst_246 : f32 to vector<2x32xf32>
    %400 = arith.addf %399, %398 : vector<2x32xf32>
    %401 = arith.divf %399, %400 : vector<2x32xf32>
    %c1_247 = arith.constant 1 : index
    %402 = arith.index_cast %c7_i32 : i32 to index
    %c0_248 = arith.constant 0 : index
    %c0_249 = arith.constant 0 : index
    %403 = vector.load %arg9[%c1_247, %402, %c0_248, %c0_249] : memref<3x8x2x32xf32, #tpu.memory_space<vmem>>, vector<1x1x2x32xf32>
    %404 = vector.shape_cast %403 : vector<1x1x2x32xf32> to vector<2x32xf32>
    %405 = arith.addf %404, %387 : vector<2x32xf32>
    %406 = arith.negf %405 : vector<2x32xf32>
    %407 = math.exp %406 : vector<2x32xf32>
    %cst_250 = arith.constant 1.000000e+00 : f32
    %408 = vector.broadcast %cst_250 : f32 to vector<2x32xf32>
    %409 = arith.addf %408, %407 : vector<2x32xf32>
    %410 = arith.divf %408, %409 : vector<2x32xf32>
    %c2_251 = arith.constant 2 : index
    %411 = arith.index_cast %c7_i32 : i32 to index
    %c0_252 = arith.constant 0 : index
    %c0_253 = arith.constant 0 : index
    %412 = vector.load %arg9[%c2_251, %411, %c0_252, %c0_253] : memref<3x8x2x32xf32, #tpu.memory_space<vmem>>, vector<1x1x2x32xf32>
    %413 = vector.shape_cast %412 : vector<1x1x2x32xf32> to vector<2x32xf32>
    %414 = arith.mulf %401, %392 : vector<2x32xf32>
    %415 = arith.addf %413, %414 : vector<2x32xf32>
    %416 = math.tanh %415 : vector<2x32xf32>
    %cst_254 = arith.constant 1.000000e+00 : f32
    %417 = vector.broadcast %cst_254 : f32 to vector<2x32xf32>
    %418 = arith.subf %417, %410 : vector<2x32xf32>
    %419 = arith.mulf %418, %416 : vector<2x32xf32>
    %420 = arith.mulf %410, %373 : vector<2x32xf32>
    %421 = arith.addf %419, %420 : vector<2x32xf32>
    %c0_255 = arith.constant 0 : index
    %422 = arith.index_cast %c7_i32 : i32 to index
    %c0_256 = arith.constant 0 : index
    %c0_257 = arith.constant 0 : index
    %423 = vector.load %arg9[%c0_255, %422, %c0_256, %c0_257] : memref<3x8x2x32xf32, #tpu.memory_space<vmem>>, vector<1x1x2x32xf32>
    %424 = vector.shape_cast %423 : vector<1x1x2x32xf32> to vector<2x32xf32>
    %425 = vector.shape_cast %421 : vector<2x32xf32> to vector<1x1x2x32xf32>
    tpu.vector_store %arg9[%c0_255, %422, %c0_256, %c0_257], %425 {strides = array<i32>} : memref<3x8x2x32xf32, #tpu.memory_space<vmem>>, vector<1x1x2x32xf32>,
    %c8_i32 = arith.constant 8 : i32
    %c0_258 = arith.constant 0 : index
    %c0_259 = arith.constant 0 : index
    %c0_260 = arith.constant 0 : index
    %c0_261 = arith.constant 0 : index
    %426 = vector.load %arg9[%c0_258, %c0_259, %c0_260, %c0_261] : memref<3x8x2x32xf32, #tpu.memory_space<vmem>>, vector<1x1x2x32xf32>
    %427 = vector.shape_cast %426 : vector<1x1x2x32xf32> to vector<2x32xf32>
    %c0_262 = arith.constant 0 : index
    %c0_263 = arith.constant 0 : index
    %428 = memref.load %arg6[%c0_262, %c0_263] : memref<8x8xf32, #tpu.memory_space<smem>>
    %429 = vector.broadcast %428 : f32 to vector<2x32xf32>
    %430 = arith.mulf %427, %429 : vector<2x32xf32>
    %c0_264 = arith.constant 0 : index
    %c1_265 = arith.constant 1 : index
    %c0_266 = arith.constant 0 : index
    %c0_267 = arith.constant 0 : index
    %431 = vector.load %arg9[%c0_264, %c1_265, %c0_266, %c0_267] : memref<3x8x2x32xf32, #tpu.memory_space<vmem>>, vector<1x1x2x32xf32>
    %432 = vector.shape_cast %431 : vector<1x1x2x32xf32> to vector<2x32xf32>
    %c0_268 = arith.constant 0 : index
    %c1_269 = arith.constant 1 : index
    %433 = memref.load %arg6[%c0_268, %c1_269] : memref<8x8xf32, #tpu.memory_space<smem>>
    %434 = vector.broadcast %433 : f32 to vector<2x32xf32>
    %435 = arith.mulf %432, %434 : vector<2x32xf32>
    %436 = arith.addf %430, %435 : vector<2x32xf32>
    %c0_270 = arith.constant 0 : index
    %c2_271 = arith.constant 2 : index
    %c0_272 = arith.constant 0 : index
    %c0_273 = arith.constant 0 : index
    %437 = vector.load %arg9[%c0_270, %c2_271, %c0_272, %c0_273] : memref<3x8x2x32xf32, #tpu.memory_space<vmem>>, vector<1x1x2x32xf32>
    %438 = vector.shape_cast %437 : vector<1x1x2x32xf32> to vector<2x32xf32>
    %c0_274 = arith.constant 0 : index
    %c2_275 = arith.constant 2 : index
    %439 = memref.load %arg6[%c0_274, %c2_275] : memref<8x8xf32, #tpu.memory_space<smem>>
    %440 = vector.broadcast %439 : f32 to vector<2x32xf32>
    %441 = arith.mulf %438, %440 : vector<2x32xf32>
    %442 = arith.addf %436, %441 : vector<2x32xf32>
    %c0_276 = arith.constant 0 : index
    %c3 = arith.constant 3 : index
    %c0_277 = arith.constant 0 : index
    %c0_278 = arith.constant 0 : index
    %443 = vector.load %arg9[%c0_276, %c3, %c0_277, %c0_278] : memref<3x8x2x32xf32, #tpu.memory_space<vmem>>, vector<1x1x2x32xf32>
    %444 = vector.shape_cast %443 : vector<1x1x2x32xf32> to vector<2x32xf32>
    %c0_279 = arith.constant 0 : index
    %c3_280 = arith.constant 3 : index
    %445 = memref.load %arg6[%c0_279, %c3_280] : memref<8x8xf32, #tpu.memory_space<smem>>
    %446 = vector.broadcast %445 : f32 to vector<2x32xf32>
    %447 = arith.mulf %444, %446 : vector<2x32xf32>
    %448 = arith.addf %442, %447 : vector<2x32xf32>
    %c0_281 = arith.constant 0 : index
    %c4 = arith.constant 4 : index
    %c0_282 = arith.constant 0 : index
    %c0_283 = arith.constant 0 : index
    %449 = vector.load %arg9[%c0_281, %c4, %c0_282, %c0_283] : memref<3x8x2x32xf32, #tpu.memory_space<vmem>>, vector<1x1x2x32xf32>
    %450 = vector.shape_cast %449 : vector<1x1x2x32xf32> to vector<2x32xf32>
    %c0_284 = arith.constant 0 : index
    %c4_285 = arith.constant 4 : index
    %451 = memref.load %arg6[%c0_284, %c4_285] : memref<8x8xf32, #tpu.memory_space<smem>>
    %452 = vector.broadcast %451 : f32 to vector<2x32xf32>
    %453 = arith.mulf %450, %452 : vector<2x32xf32>
    %454 = arith.addf %448, %453 : vector<2x32xf32>
    %c0_286 = arith.constant 0 : index
    %c5 = arith.constant 5 : index
    %c0_287 = arith.constant 0 : index
    %c0_288 = arith.constant 0 : index
    %455 = vector.load %arg9[%c0_286, %c5, %c0_287, %c0_288] : memref<3x8x2x32xf32, #tpu.memory_space<vmem>>, vector<1x1x2x32xf32>
    %456 = vector.shape_cast %455 : vector<1x1x2x32xf32> to vector<2x32xf32>
    %c0_289 = arith.constant 0 : index
    %c5_290 = arith.constant 5 : index
    %457 = memref.load %arg6[%c0_289, %c5_290] : memref<8x8xf32, #tpu.memory_space<smem>>
    %458 = vector.broadcast %457 : f32 to vector<2x32xf32>
    %459 = arith.mulf %456, %458 : vector<2x32xf32>
    %460 = arith.addf %454, %459 : vector<2x32xf32>
    %c0_291 = arith.constant 0 : index
    %c6 = arith.constant 6 : index
    %c0_292 = arith.constant 0 : index
    %c0_293 = arith.constant 0 : index
    %461 = vector.load %arg9[%c0_291, %c6, %c0_292, %c0_293] : memref<3x8x2x32xf32, #tpu.memory_space<vmem>>, vector<1x1x2x32xf32>
    %462 = vector.shape_cast %461 : vector<1x1x2x32xf32> to vector<2x32xf32>
    %c0_294 = arith.constant 0 : index
    %c6_295 = arith.constant 6 : index
    %463 = memref.load %arg6[%c0_294, %c6_295] : memref<8x8xf32, #tpu.memory_space<smem>>
    %464 = vector.broadcast %463 : f32 to vector<2x32xf32>
    %465 = arith.mulf %462, %464 : vector<2x32xf32>
    %466 = arith.addf %460, %465 : vector<2x32xf32>
    %c0_296 = arith.constant 0 : index
    %c7 = arith.constant 7 : index
    %c0_297 = arith.constant 0 : index
    %c0_298 = arith.constant 0 : index
    %467 = vector.load %arg9[%c0_296, %c7, %c0_297, %c0_298] : memref<3x8x2x32xf32, #tpu.memory_space<vmem>>, vector<1x1x2x32xf32>
    %468 = vector.shape_cast %467 : vector<1x1x2x32xf32> to vector<2x32xf32>
    %c0_299 = arith.constant 0 : index
    %c7_300 = arith.constant 7 : index
    %469 = memref.load %arg6[%c0_299, %c7_300] : memref<8x8xf32, #tpu.memory_space<smem>>
    %470 = vector.broadcast %469 : f32 to vector<2x32xf32>
    %471 = arith.mulf %468, %470 : vector<2x32xf32>
    %472 = arith.addf %466, %471 : vector<2x32xf32>
    %c0_301 = arith.constant 0 : index
    %473 = memref.load %arg7[%c0_301] : memref<8xf32, #tpu.memory_space<smem>>
    %474 = vector.broadcast %473 : f32 to vector<2x32xf32>
    %475 = arith.addf %472, %474 : vector<2x32xf32>
    %c1_302 = arith.constant 1 : index
    %c0_303 = arith.constant 0 : index
    %c0_304 = arith.constant 0 : index
    %c0_305 = arith.constant 0 : index
    %476 = vector.load %arg9[%c1_302, %c0_303, %c0_304, %c0_305] : memref<3x8x2x32xf32, #tpu.memory_space<vmem>>, vector<1x1x2x32xf32>
    %477 = vector.shape_cast %476 : vector<1x1x2x32xf32> to vector<2x32xf32>
    %478 = vector.shape_cast %475 : vector<2x32xf32> to vector<1x1x2x32xf32>
    tpu.vector_store %arg9[%c1_302, %c0_303, %c0_304, %c0_305], %478 {strides = array<i32>} : memref<3x8x2x32xf32, #tpu.memory_space<vmem>>, vector<1x1x2x32xf32>,
    %c0_306 = arith.constant 0 : index
    %c0_307 = arith.constant 0 : index
    %c0_308 = arith.constant 0 : index
    %c0_309 = arith.constant 0 : index
    %479 = vector.load %arg9[%c0_306, %c0_307, %c0_308, %c0_309] : memref<3x8x2x32xf32, #tpu.memory_space<vmem>>, vector<1x1x2x32xf32>
    %480 = vector.shape_cast %479 : vector<1x1x2x32xf32> to vector<2x32xf32>
    %c1_310 = arith.constant 1 : index
    %c0_311 = arith.constant 0 : index
    %481 = memref.load %arg6[%c1_310, %c0_311] : memref<8x8xf32, #tpu.memory_space<smem>>
    %482 = vector.broadcast %481 : f32 to vector<2x32xf32>
    %483 = arith.mulf %480, %482 : vector<2x32xf32>
    %c0_312 = arith.constant 0 : index
    %c1_313 = arith.constant 1 : index
    %c0_314 = arith.constant 0 : index
    %c0_315 = arith.constant 0 : index
    %484 = vector.load %arg9[%c0_312, %c1_313, %c0_314, %c0_315] : memref<3x8x2x32xf32, #tpu.memory_space<vmem>>, vector<1x1x2x32xf32>
    %485 = vector.shape_cast %484 : vector<1x1x2x32xf32> to vector<2x32xf32>
    %c1_316 = arith.constant 1 : index
    %c1_317 = arith.constant 1 : index
    %486 = memref.load %arg6[%c1_316, %c1_317] : memref<8x8xf32, #tpu.memory_space<smem>>
    %487 = vector.broadcast %486 : f32 to vector<2x32xf32>
    %488 = arith.mulf %485, %487 : vector<2x32xf32>
    %489 = arith.addf %483, %488 : vector<2x32xf32>
    %c0_318 = arith.constant 0 : index
    %c2_319 = arith.constant 2 : index
    %c0_320 = arith.constant 0 : index
    %c0_321 = arith.constant 0 : index
    %490 = vector.load %arg9[%c0_318, %c2_319, %c0_320, %c0_321] : memref<3x8x2x32xf32, #tpu.memory_space<vmem>>, vector<1x1x2x32xf32>
    %491 = vector.shape_cast %490 : vector<1x1x2x32xf32> to vector<2x32xf32>
    %c1_322 = arith.constant 1 : index
    %c2_323 = arith.constant 2 : index
    %492 = memref.load %arg6[%c1_322, %c2_323] : memref<8x8xf32, #tpu.memory_space<smem>>
    %493 = vector.broadcast %492 : f32 to vector<2x32xf32>
    %494 = arith.mulf %491, %493 : vector<2x32xf32>
    %495 = arith.addf %489, %494 : vector<2x32xf32>
    %c0_324 = arith.constant 0 : index
    %c3_325 = arith.constant 3 : index
    %c0_326 = arith.constant 0 : index
    %c0_327 = arith.constant 0 : index
    %496 = vector.load %arg9[%c0_324, %c3_325, %c0_326, %c0_327] : memref<3x8x2x32xf32, #tpu.memory_space<vmem>>, vector<1x1x2x32xf32>
    %497 = vector.shape_cast %496 : vector<1x1x2x32xf32> to vector<2x32xf32>
    %c1_328 = arith.constant 1 : index
    %c3_329 = arith.constant 3 : index
    %498 = memref.load %arg6[%c1_328, %c3_329] : memref<8x8xf32, #tpu.memory_space<smem>>
    %499 = vector.broadcast %498 : f32 to vector<2x32xf32>
    %500 = arith.mulf %497, %499 : vector<2x32xf32>
    %501 = arith.addf %495, %500 : vector<2x32xf32>
    %c0_330 = arith.constant 0 : index
    %c4_331 = arith.constant 4 : index
    %c0_332 = arith.constant 0 : index
    %c0_333 = arith.constant 0 : index
    %502 = vector.load %arg9[%c0_330, %c4_331, %c0_332, %c0_333] : memref<3x8x2x32xf32, #tpu.memory_space<vmem>>, vector<1x1x2x32xf32>
    %503 = vector.shape_cast %502 : vector<1x1x2x32xf32> to vector<2x32xf32>
    %c1_334 = arith.constant 1 : index
    %c4_335 = arith.constant 4 : index
    %504 = memref.load %arg6[%c1_334, %c4_335] : memref<8x8xf32, #tpu.memory_space<smem>>
    %505 = vector.broadcast %504 : f32 to vector<2x32xf32>
    %506 = arith.mulf %503, %505 : vector<2x32xf32>
    %507 = arith.addf %501, %506 : vector<2x32xf32>
    %c0_336 = arith.constant 0 : index
    %c5_337 = arith.constant 5 : index
    %c0_338 = arith.constant 0 : index
    %c0_339 = arith.constant 0 : index
    %508 = vector.load %arg9[%c0_336, %c5_337, %c0_338, %c0_339] : memref<3x8x2x32xf32, #tpu.memory_space<vmem>>, vector<1x1x2x32xf32>
    %509 = vector.shape_cast %508 : vector<1x1x2x32xf32> to vector<2x32xf32>
    %c1_340 = arith.constant 1 : index
    %c5_341 = arith.constant 5 : index
    %510 = memref.load %arg6[%c1_340, %c5_341] : memref<8x8xf32, #tpu.memory_space<smem>>
    %511 = vector.broadcast %510 : f32 to vector<2x32xf32>
    %512 = arith.mulf %509, %511 : vector<2x32xf32>
    %513 = arith.addf %507, %512 : vector<2x32xf32>
    %c0_342 = arith.constant 0 : index
    %c6_343 = arith.constant 6 : index
    %c0_344 = arith.constant 0 : index
    %c0_345 = arith.constant 0 : index
    %514 = vector.load %arg9[%c0_342, %c6_343, %c0_344, %c0_345] : memref<3x8x2x32xf32, #tpu.memory_space<vmem>>, vector<1x1x2x32xf32>
    %515 = vector.shape_cast %514 : vector<1x1x2x32xf32> to vector<2x32xf32>
    %c1_346 = arith.constant 1 : index
    %c6_347 = arith.constant 6 : index
    %516 = memref.load %arg6[%c1_346, %c6_347] : memref<8x8xf32, #tpu.memory_space<smem>>
    %517 = vector.broadcast %516 : f32 to vector<2x32xf32>
    %518 = arith.mulf %515, %517 : vector<2x32xf32>
    %519 = arith.addf %513, %518 : vector<2x32xf32>
    %c0_348 = arith.constant 0 : index
    %c7_349 = arith.constant 7 : index
    %c0_350 = arith.constant 0 : index
    %c0_351 = arith.constant 0 : index
    %520 = vector.load %arg9[%c0_348, %c7_349, %c0_350, %c0_351] : memref<3x8x2x32xf32, #tpu.memory_space<vmem>>, vector<1x1x2x32xf32>
    %521 = vector.shape_cast %520 : vector<1x1x2x32xf32> to vector<2x32xf32>
    %c1_352 = arith.constant 1 : index
    %c7_353 = arith.constant 7 : index
    %522 = memref.load %arg6[%c1_352, %c7_353] : memref<8x8xf32, #tpu.memory_space<smem>>
    %523 = vector.broadcast %522 : f32 to vector<2x32xf32>
    %524 = arith.mulf %521, %523 : vector<2x32xf32>
    %525 = arith.addf %519, %524 : vector<2x32xf32>
    %c1_354 = arith.constant 1 : index
    %526 = memref.load %arg7[%c1_354] : memref<8xf32, #tpu.memory_space<smem>>
    %527 = vector.broadcast %526 : f32 to vector<2x32xf32>
    %528 = arith.addf %525, %527 : vector<2x32xf32>
    %c1_355 = arith.constant 1 : index
    %c1_356 = arith.constant 1 : index
    %c0_357 = arith.constant 0 : index
    %c0_358 = arith.constant 0 : index
    %529 = vector.load %arg9[%c1_355, %c1_356, %c0_357, %c0_358] : memref<3x8x2x32xf32, #tpu.memory_space<vmem>>, vector<1x1x2x32xf32>
    %530 = vector.shape_cast %529 : vector<1x1x2x32xf32> to vector<2x32xf32>
    %531 = vector.shape_cast %528 : vector<2x32xf32> to vector<1x1x2x32xf32>
    tpu.vector_store %arg9[%c1_355, %c1_356, %c0_357, %c0_358], %531 {strides = array<i32>} : memref<3x8x2x32xf32, #tpu.memory_space<vmem>>, vector<1x1x2x32xf32>,
    %532 = arith.maximumf %475, %528 : vector<2x32xf32>
    %c0_359 = arith.constant 0 : index
    %c0_360 = arith.constant 0 : index
    %c0_361 = arith.constant 0 : index
    %c0_362 = arith.constant 0 : index
    %533 = vector.load %arg9[%c0_359, %c0_360, %c0_361, %c0_362] : memref<3x8x2x32xf32, #tpu.memory_space<vmem>>, vector<1x1x2x32xf32>
    %534 = vector.shape_cast %533 : vector<1x1x2x32xf32> to vector<2x32xf32>
    %c2_363 = arith.constant 2 : index
    %c0_364 = arith.constant 0 : index
    %535 = memref.load %arg6[%c2_363, %c0_364] : memref<8x8xf32, #tpu.memory_space<smem>>
    %536 = vector.broadcast %535 : f32 to vector<2x32xf32>
    %537 = arith.mulf %534, %536 : vector<2x32xf32>
    %c0_365 = arith.constant 0 : index
    %c1_366 = arith.constant 1 : index
    %c0_367 = arith.constant 0 : index
    %c0_368 = arith.constant 0 : index
    %538 = vector.load %arg9[%c0_365, %c1_366, %c0_367, %c0_368] : memref<3x8x2x32xf32, #tpu.memory_space<vmem>>, vector<1x1x2x32xf32>
    %539 = vector.shape_cast %538 : vector<1x1x2x32xf32> to vector<2x32xf32>
    %c2_369 = arith.constant 2 : index
    %c1_370 = arith.constant 1 : index
    %540 = memref.load %arg6[%c2_369, %c1_370] : memref<8x8xf32, #tpu.memory_space<smem>>
    %541 = vector.broadcast %540 : f32 to vector<2x32xf32>
    %542 = arith.mulf %539, %541 : vector<2x32xf32>
    %543 = arith.addf %537, %542 : vector<2x32xf32>
    %c0_371 = arith.constant 0 : index
    %c2_372 = arith.constant 2 : index
    %c0_373 = arith.constant 0 : index
    %c0_374 = arith.constant 0 : index
    %544 = vector.load %arg9[%c0_371, %c2_372, %c0_373, %c0_374] : memref<3x8x2x32xf32, #tpu.memory_space<vmem>>, vector<1x1x2x32xf32>
    %545 = vector.shape_cast %544 : vector<1x1x2x32xf32> to vector<2x32xf32>
    %c2_375 = arith.constant 2 : index
    %c2_376 = arith.constant 2 : index
    %546 = memref.load %arg6[%c2_375, %c2_376] : memref<8x8xf32, #tpu.memory_space<smem>>
    %547 = vector.broadcast %546 : f32 to vector<2x32xf32>
    %548 = arith.mulf %545, %547 : vector<2x32xf32>
    %549 = arith.addf %543, %548 : vector<2x32xf32>
    %c0_377 = arith.constant 0 : index
    %c3_378 = arith.constant 3 : index
    %c0_379 = arith.constant 0 : index
    %c0_380 = arith.constant 0 : index
    %550 = vector.load %arg9[%c0_377, %c3_378, %c0_379, %c0_380] : memref<3x8x2x32xf32, #tpu.memory_space<vmem>>, vector<1x1x2x32xf32>
    %551 = vector.shape_cast %550 : vector<1x1x2x32xf32> to vector<2x32xf32>
    %c2_381 = arith.constant 2 : index
    %c3_382 = arith.constant 3 : index
    %552 = memref.load %arg6[%c2_381, %c3_382] : memref<8x8xf32, #tpu.memory_space<smem>>
    %553 = vector.broadcast %552 : f32 to vector<2x32xf32>
    %554 = arith.mulf %551, %553 : vector<2x32xf32>
    %555 = arith.addf %549, %554 : vector<2x32xf32>
    %c0_383 = arith.constant 0 : index
    %c4_384 = arith.constant 4 : index
    %c0_385 = arith.constant 0 : index
    %c0_386 = arith.constant 0 : index
    %556 = vector.load %arg9[%c0_383, %c4_384, %c0_385, %c0_386] : memref<3x8x2x32xf32, #tpu.memory_space<vmem>>, vector<1x1x2x32xf32>
    %557 = vector.shape_cast %556 : vector<1x1x2x32xf32> to vector<2x32xf32>
    %c2_387 = arith.constant 2 : index
    %c4_388 = arith.constant 4 : index
    %558 = memref.load %arg6[%c2_387, %c4_388] : memref<8x8xf32, #tpu.memory_space<smem>>
    %559 = vector.broadcast %558 : f32 to vector<2x32xf32>
    %560 = arith.mulf %557, %559 : vector<2x32xf32>
    %561 = arith.addf %555, %560 : vector<2x32xf32>
    %c0_389 = arith.constant 0 : index
    %c5_390 = arith.constant 5 : index
    %c0_391 = arith.constant 0 : index
    %c0_392 = arith.constant 0 : index
    %562 = vector.load %arg9[%c0_389, %c5_390, %c0_391, %c0_392] : memref<3x8x2x32xf32, #tpu.memory_space<vmem>>, vector<1x1x2x32xf32>
    %563 = vector.shape_cast %562 : vector<1x1x2x32xf32> to vector<2x32xf32>
    %c2_393 = arith.constant 2 : index
    %c5_394 = arith.constant 5 : index
    %564 = memref.load %arg6[%c2_393, %c5_394] : memref<8x8xf32, #tpu.memory_space<smem>>
    %565 = vector.broadcast %564 : f32 to vector<2x32xf32>
    %566 = arith.mulf %563, %565 : vector<2x32xf32>
    %567 = arith.addf %561, %566 : vector<2x32xf32>
    %c0_395 = arith.constant 0 : index
    %c6_396 = arith.constant 6 : index
    %c0_397 = arith.constant 0 : index
    %c0_398 = arith.constant 0 : index
    %568 = vector.load %arg9[%c0_395, %c6_396, %c0_397, %c0_398] : memref<3x8x2x32xf32, #tpu.memory_space<vmem>>, vector<1x1x2x32xf32>
    %569 = vector.shape_cast %568 : vector<1x1x2x32xf32> to vector<2x32xf32>
    %c2_399 = arith.constant 2 : index
    %c6_400 = arith.constant 6 : index
    %570 = memref.load %arg6[%c2_399, %c6_400] : memref<8x8xf32, #tpu.memory_space<smem>>
    %571 = vector.broadcast %570 : f32 to vector<2x32xf32>
    %572 = arith.mulf %569, %571 : vector<2x32xf32>
    %573 = arith.addf %567, %572 : vector<2x32xf32>
    %c0_401 = arith.constant 0 : index
    %c7_402 = arith.constant 7 : index
    %c0_403 = arith.constant 0 : index
    %c0_404 = arith.constant 0 : index
    %574 = vector.load %arg9[%c0_401, %c7_402, %c0_403, %c0_404] : memref<3x8x2x32xf32, #tpu.memory_space<vmem>>, vector<1x1x2x32xf32>
    %575 = vector.shape_cast %574 : vector<1x1x2x32xf32> to vector<2x32xf32>
    %c2_405 = arith.constant 2 : index
    %c7_406 = arith.constant 7 : index
    %576 = memref.load %arg6[%c2_405, %c7_406] : memref<8x8xf32, #tpu.memory_space<smem>>
    %577 = vector.broadcast %576 : f32 to vector<2x32xf32>
    %578 = arith.mulf %575, %577 : vector<2x32xf32>
    %579 = arith.addf %573, %578 : vector<2x32xf32>
    %c2_407 = arith.constant 2 : index
    %580 = memref.load %arg7[%c2_407] : memref<8xf32, #tpu.memory_space<smem>>
    %581 = vector.broadcast %580 : f32 to vector<2x32xf32>
    %582 = arith.addf %579, %581 : vector<2x32xf32>
    %c1_408 = arith.constant 1 : index
    %c2_409 = arith.constant 2 : index
    %c0_410 = arith.constant 0 : index
    %c0_411 = arith.constant 0 : index
    %583 = vector.load %arg9[%c1_408, %c2_409, %c0_410, %c0_411] : memref<3x8x2x32xf32, #tpu.memory_space<vmem>>, vector<1x1x2x32xf32>
    %584 = vector.shape_cast %583 : vector<1x1x2x32xf32> to vector<2x32xf32>
    %585 = vector.shape_cast %582 : vector<2x32xf32> to vector<1x1x2x32xf32>
    tpu.vector_store %arg9[%c1_408, %c2_409, %c0_410, %c0_411], %585 {strides = array<i32>} : memref<3x8x2x32xf32, #tpu.memory_space<vmem>>, vector<1x1x2x32xf32>,
    %586 = arith.maximumf %532, %582 : vector<2x32xf32>
    %c0_412 = arith.constant 0 : index
    %c0_413 = arith.constant 0 : index
    %c0_414 = arith.constant 0 : index
    %c0_415 = arith.constant 0 : index
    %587 = vector.load %arg9[%c0_412, %c0_413, %c0_414, %c0_415] : memref<3x8x2x32xf32, #tpu.memory_space<vmem>>, vector<1x1x2x32xf32>
    %588 = vector.shape_cast %587 : vector<1x1x2x32xf32> to vector<2x32xf32>
    %c3_416 = arith.constant 3 : index
    %c0_417 = arith.constant 0 : index
    %589 = memref.load %arg6[%c3_416, %c0_417] : memref<8x8xf32, #tpu.memory_space<smem>>
    %590 = vector.broadcast %589 : f32 to vector<2x32xf32>
    %591 = arith.mulf %588, %590 : vector<2x32xf32>
    %c0_418 = arith.constant 0 : index
    %c1_419 = arith.constant 1 : index
    %c0_420 = arith.constant 0 : index
    %c0_421 = arith.constant 0 : index
    %592 = vector.load %arg9[%c0_418, %c1_419, %c0_420, %c0_421] : memref<3x8x2x32xf32, #tpu.memory_space<vmem>>, vector<1x1x2x32xf32>
    %593 = vector.shape_cast %592 : vector<1x1x2x32xf32> to vector<2x32xf32>
    %c3_422 = arith.constant 3 : index
    %c1_423 = arith.constant 1 : index
    %594 = memref.load %arg6[%c3_422, %c1_423] : memref<8x8xf32, #tpu.memory_space<smem>>
    %595 = vector.broadcast %594 : f32 to vector<2x32xf32>
    %596 = arith.mulf %593, %595 : vector<2x32xf32>
    %597 = arith.addf %591, %596 : vector<2x32xf32>
    %c0_424 = arith.constant 0 : index
    %c2_425 = arith.constant 2 : index
    %c0_426 = arith.constant 0 : index
    %c0_427 = arith.constant 0 : index
    %598 = vector.load %arg9[%c0_424, %c2_425, %c0_426, %c0_427] : memref<3x8x2x32xf32, #tpu.memory_space<vmem>>, vector<1x1x2x32xf32>
    %599 = vector.shape_cast %598 : vector<1x1x2x32xf32> to vector<2x32xf32>
    %c3_428 = arith.constant 3 : index
    %c2_429 = arith.constant 2 : index
    %600 = memref.load %arg6[%c3_428, %c2_429] : memref<8x8xf32, #tpu.memory_space<smem>>
    %601 = vector.broadcast %600 : f32 to vector<2x32xf32>
    %602 = arith.mulf %599, %601 : vector<2x32xf32>
    %603 = arith.addf %597, %602 : vector<2x32xf32>
    %c0_430 = arith.constant 0 : index
    %c3_431 = arith.constant 3 : index
    %c0_432 = arith.constant 0 : index
    %c0_433 = arith.constant 0 : index
    %604 = vector.load %arg9[%c0_430, %c3_431, %c0_432, %c0_433] : memref<3x8x2x32xf32, #tpu.memory_space<vmem>>, vector<1x1x2x32xf32>
    %605 = vector.shape_cast %604 : vector<1x1x2x32xf32> to vector<2x32xf32>
    %c3_434 = arith.constant 3 : index
    %c3_435 = arith.constant 3 : index
    %606 = memref.load %arg6[%c3_434, %c3_435] : memref<8x8xf32, #tpu.memory_space<smem>>
    %607 = vector.broadcast %606 : f32 to vector<2x32xf32>
    %608 = arith.mulf %605, %607 : vector<2x32xf32>
    %609 = arith.addf %603, %608 : vector<2x32xf32>
    %c0_436 = arith.constant 0 : index
    %c4_437 = arith.constant 4 : index
    %c0_438 = arith.constant 0 : index
    %c0_439 = arith.constant 0 : index
    %610 = vector.load %arg9[%c0_436, %c4_437, %c0_438, %c0_439] : memref<3x8x2x32xf32, #tpu.memory_space<vmem>>, vector<1x1x2x32xf32>
    %611 = vector.shape_cast %610 : vector<1x1x2x32xf32> to vector<2x32xf32>
    %c3_440 = arith.constant 3 : index
    %c4_441 = arith.constant 4 : index
    %612 = memref.load %arg6[%c3_440, %c4_441] : memref<8x8xf32, #tpu.memory_space<smem>>
    %613 = vector.broadcast %612 : f32 to vector<2x32xf32>
    %614 = arith.mulf %611, %613 : vector<2x32xf32>
    %615 = arith.addf %609, %614 : vector<2x32xf32>
    %c0_442 = arith.constant 0 : index
    %c5_443 = arith.constant 5 : index
    %c0_444 = arith.constant 0 : index
    %c0_445 = arith.constant 0 : index
    %616 = vector.load %arg9[%c0_442, %c5_443, %c0_444, %c0_445] : memref<3x8x2x32xf32, #tpu.memory_space<vmem>>, vector<1x1x2x32xf32>
    %617 = vector.shape_cast %616 : vector<1x1x2x32xf32> to vector<2x32xf32>
    %c3_446 = arith.constant 3 : index
    %c5_447 = arith.constant 5 : index
    %618 = memref.load %arg6[%c3_446, %c5_447] : memref<8x8xf32, #tpu.memory_space<smem>>
    %619 = vector.broadcast %618 : f32 to vector<2x32xf32>
    %620 = arith.mulf %617, %619 : vector<2x32xf32>
    %621 = arith.addf %615, %620 : vector<2x32xf32>
    %c0_448 = arith.constant 0 : index
    %c6_449 = arith.constant 6 : index
    %c0_450 = arith.constant 0 : index
    %c0_451 = arith.constant 0 : index
    %622 = vector.load %arg9[%c0_448, %c6_449, %c0_450, %c0_451] : memref<3x8x2x32xf32, #tpu.memory_space<vmem>>, vector<1x1x2x32xf32>
    %623 = vector.shape_cast %622 : vector<1x1x2x32xf32> to vector<2x32xf32>
    %c3_452 = arith.constant 3 : index
    %c6_453 = arith.constant 6 : index
    %624 = memref.load %arg6[%c3_452, %c6_453] : memref<8x8xf32, #tpu.memory_space<smem>>
    %625 = vector.broadcast %624 : f32 to vector<2x32xf32>
    %626 = arith.mulf %623, %625 : vector<2x32xf32>
    %627 = arith.addf %621, %626 : vector<2x32xf32>
    %c0_454 = arith.constant 0 : index
    %c7_455 = arith.constant 7 : index
    %c0_456 = arith.constant 0 : index
    %c0_457 = arith.constant 0 : index
    %628 = vector.load %arg9[%c0_454, %c7_455, %c0_456, %c0_457] : memref<3x8x2x32xf32, #tpu.memory_space<vmem>>, vector<1x1x2x32xf32>
    %629 = vector.shape_cast %628 : vector<1x1x2x32xf32> to vector<2x32xf32>
    %c3_458 = arith.constant 3 : index
    %c7_459 = arith.constant 7 : index
    %630 = memref.load %arg6[%c3_458, %c7_459] : memref<8x8xf32, #tpu.memory_space<smem>>
    %631 = vector.broadcast %630 : f32 to vector<2x32xf32>
    %632 = arith.mulf %629, %631 : vector<2x32xf32>
    %633 = arith.addf %627, %632 : vector<2x32xf32>
    %c3_460 = arith.constant 3 : index
    %634 = memref.load %arg7[%c3_460] : memref<8xf32, #tpu.memory_space<smem>>
    %635 = vector.broadcast %634 : f32 to vector<2x32xf32>
    %636 = arith.addf %633, %635 : vector<2x32xf32>
    %c1_461 = arith.constant 1 : index
    %c3_462 = arith.constant 3 : index
    %c0_463 = arith.constant 0 : index
    %c0_464 = arith.constant 0 : index
    %637 = vector.load %arg9[%c1_461, %c3_462, %c0_463, %c0_464] : memref<3x8x2x32xf32, #tpu.memory_space<vmem>>, vector<1x1x2x32xf32>
    %638 = vector.shape_cast %637 : vector<1x1x2x32xf32> to vector<2x32xf32>
    %639 = vector.shape_cast %636 : vector<2x32xf32> to vector<1x1x2x32xf32>
    tpu.vector_store %arg9[%c1_461, %c3_462, %c0_463, %c0_464], %639 {strides = array<i32>} : memref<3x8x2x32xf32, #tpu.memory_space<vmem>>, vector<1x1x2x32xf32>,
    %640 = arith.maximumf %586, %636 : vector<2x32xf32>
    %c0_465 = arith.constant 0 : index
    %c0_466 = arith.constant 0 : index
    %c0_467 = arith.constant 0 : index
    %c0_468 = arith.constant 0 : index
    %641 = vector.load %arg9[%c0_465, %c0_466, %c0_467, %c0_468] : memref<3x8x2x32xf32, #tpu.memory_space<vmem>>, vector<1x1x2x32xf32>
    %642 = vector.shape_cast %641 : vector<1x1x2x32xf32> to vector<2x32xf32>
    %c4_469 = arith.constant 4 : index
    %c0_470 = arith.constant 0 : index
    %643 = memref.load %arg6[%c4_469, %c0_470] : memref<8x8xf32, #tpu.memory_space<smem>>
    %644 = vector.broadcast %643 : f32 to vector<2x32xf32>
    %645 = arith.mulf %642, %644 : vector<2x32xf32>
    %c0_471 = arith.constant 0 : index
    %c1_472 = arith.constant 1 : index
    %c0_473 = arith.constant 0 : index
    %c0_474 = arith.constant 0 : index
    %646 = vector.load %arg9[%c0_471, %c1_472, %c0_473, %c0_474] : memref<3x8x2x32xf32, #tpu.memory_space<vmem>>, vector<1x1x2x32xf32>
    %647 = vector.shape_cast %646 : vector<1x1x2x32xf32> to vector<2x32xf32>
    %c4_475 = arith.constant 4 : index
    %c1_476 = arith.constant 1 : index
    %648 = memref.load %arg6[%c4_475, %c1_476] : memref<8x8xf32, #tpu.memory_space<smem>>
    %649 = vector.broadcast %648 : f32 to vector<2x32xf32>
    %650 = arith.mulf %647, %649 : vector<2x32xf32>
    %651 = arith.addf %645, %650 : vector<2x32xf32>
    %c0_477 = arith.constant 0 : index
    %c2_478 = arith.constant 2 : index
    %c0_479 = arith.constant 0 : index
    %c0_480 = arith.constant 0 : index
    %652 = vector.load %arg9[%c0_477, %c2_478, %c0_479, %c0_480] : memref<3x8x2x32xf32, #tpu.memory_space<vmem>>, vector<1x1x2x32xf32>
    %653 = vector.shape_cast %652 : vector<1x1x2x32xf32> to vector<2x32xf32>
    %c4_481 = arith.constant 4 : index
    %c2_482 = arith.constant 2 : index
    %654 = memref.load %arg6[%c4_481, %c2_482] : memref<8x8xf32, #tpu.memory_space<smem>>
    %655 = vector.broadcast %654 : f32 to vector<2x32xf32>
    %656 = arith.mulf %653, %655 : vector<2x32xf32>
    %657 = arith.addf %651, %656 : vector<2x32xf32>
    %c0_483 = arith.constant 0 : index
    %c3_484 = arith.constant 3 : index
    %c0_485 = arith.constant 0 : index
    %c0_486 = arith.constant 0 : index
    %658 = vector.load %arg9[%c0_483, %c3_484, %c0_485, %c0_486] : memref<3x8x2x32xf32, #tpu.memory_space<vmem>>, vector<1x1x2x32xf32>
    %659 = vector.shape_cast %658 : vector<1x1x2x32xf32> to vector<2x32xf32>
    %c4_487 = arith.constant 4 : index
    %c3_488 = arith.constant 3 : index
    %660 = memref.load %arg6[%c4_487, %c3_488] : memref<8x8xf32, #tpu.memory_space<smem>>
    %661 = vector.broadcast %660 : f32 to vector<2x32xf32>
    %662 = arith.mulf %659, %661 : vector<2x32xf32>
    %663 = arith.addf %657, %662 : vector<2x32xf32>
    %c0_489 = arith.constant 0 : index
    %c4_490 = arith.constant 4 : index
    %c0_491 = arith.constant 0 : index
    %c0_492 = arith.constant 0 : index
    %664 = vector.load %arg9[%c0_489, %c4_490, %c0_491, %c0_492] : memref<3x8x2x32xf32, #tpu.memory_space<vmem>>, vector<1x1x2x32xf32>
    %665 = vector.shape_cast %664 : vector<1x1x2x32xf32> to vector<2x32xf32>
    %c4_493 = arith.constant 4 : index
    %c4_494 = arith.constant 4 : index
    %666 = memref.load %arg6[%c4_493, %c4_494] : memref<8x8xf32, #tpu.memory_space<smem>>
    %667 = vector.broadcast %666 : f32 to vector<2x32xf32>
    %668 = arith.mulf %665, %667 : vector<2x32xf32>
    %669 = arith.addf %663, %668 : vector<2x32xf32>
    %c0_495 = arith.constant 0 : index
    %c5_496 = arith.constant 5 : index
    %c0_497 = arith.constant 0 : index
    %c0_498 = arith.constant 0 : index
    %670 = vector.load %arg9[%c0_495, %c5_496, %c0_497, %c0_498] : memref<3x8x2x32xf32, #tpu.memory_space<vmem>>, vector<1x1x2x32xf32>
    %671 = vector.shape_cast %670 : vector<1x1x2x32xf32> to vector<2x32xf32>
    %c4_499 = arith.constant 4 : index
    %c5_500 = arith.constant 5 : index
    %672 = memref.load %arg6[%c4_499, %c5_500] : memref<8x8xf32, #tpu.memory_space<smem>>
    %673 = vector.broadcast %672 : f32 to vector<2x32xf32>
    %674 = arith.mulf %671, %673 : vector<2x32xf32>
    %675 = arith.addf %669, %674 : vector<2x32xf32>
    %c0_501 = arith.constant 0 : index
    %c6_502 = arith.constant 6 : index
    %c0_503 = arith.constant 0 : index
    %c0_504 = arith.constant 0 : index
    %676 = vector.load %arg9[%c0_501, %c6_502, %c0_503, %c0_504] : memref<3x8x2x32xf32, #tpu.memory_space<vmem>>, vector<1x1x2x32xf32>
    %677 = vector.shape_cast %676 : vector<1x1x2x32xf32> to vector<2x32xf32>
    %c4_505 = arith.constant 4 : index
    %c6_506 = arith.constant 6 : index
    %678 = memref.load %arg6[%c4_505, %c6_506] : memref<8x8xf32, #tpu.memory_space<smem>>
    %679 = vector.broadcast %678 : f32 to vector<2x32xf32>
    %680 = arith.mulf %677, %679 : vector<2x32xf32>
    %681 = arith.addf %675, %680 : vector<2x32xf32>
    %c0_507 = arith.constant 0 : index
    %c7_508 = arith.constant 7 : index
    %c0_509 = arith.constant 0 : index
    %c0_510 = arith.constant 0 : index
    %682 = vector.load %arg9[%c0_507, %c7_508, %c0_509, %c0_510] : memref<3x8x2x32xf32, #tpu.memory_space<vmem>>, vector<1x1x2x32xf32>
    %683 = vector.shape_cast %682 : vector<1x1x2x32xf32> to vector<2x32xf32>
    %c4_511 = arith.constant 4 : index
    %c7_512 = arith.constant 7 : index
    %684 = memref.load %arg6[%c4_511, %c7_512] : memref<8x8xf32, #tpu.memory_space<smem>>
    %685 = vector.broadcast %684 : f32 to vector<2x32xf32>
    %686 = arith.mulf %683, %685 : vector<2x32xf32>
    %687 = arith.addf %681, %686 : vector<2x32xf32>
    %c4_513 = arith.constant 4 : index
    %688 = memref.load %arg7[%c4_513] : memref<8xf32, #tpu.memory_space<smem>>
    %689 = vector.broadcast %688 : f32 to vector<2x32xf32>
    %690 = arith.addf %687, %689 : vector<2x32xf32>
    %c1_514 = arith.constant 1 : index
    %c4_515 = arith.constant 4 : index
    %c0_516 = arith.constant 0 : index
    %c0_517 = arith.constant 0 : index
    %691 = vector.load %arg9[%c1_514, %c4_515, %c0_516, %c0_517] : memref<3x8x2x32xf32, #tpu.memory_space<vmem>>, vector<1x1x2x32xf32>
    %692 = vector.shape_cast %691 : vector<1x1x2x32xf32> to vector<2x32xf32>
    %693 = vector.shape_cast %690 : vector<2x32xf32> to vector<1x1x2x32xf32>
    tpu.vector_store %arg9[%c1_514, %c4_515, %c0_516, %c0_517], %693 {strides = array<i32>} : memref<3x8x2x32xf32, #tpu.memory_space<vmem>>, vector<1x1x2x32xf32>,
    %694 = arith.maximumf %640, %690 : vector<2x32xf32>
    %c0_518 = arith.constant 0 : index
    %c0_519 = arith.constant 0 : index
    %c0_520 = arith.constant 0 : index
    %c0_521 = arith.constant 0 : index
    %695 = vector.load %arg9[%c0_518, %c0_519, %c0_520, %c0_521] : memref<3x8x2x32xf32, #tpu.memory_space<vmem>>, vector<1x1x2x32xf32>
    %696 = vector.shape_cast %695 : vector<1x1x2x32xf32> to vector<2x32xf32>
    %c5_522 = arith.constant 5 : index
    %c0_523 = arith.constant 0 : index
    %697 = memref.load %arg6[%c5_522, %c0_523] : memref<8x8xf32, #tpu.memory_space<smem>>
    %698 = vector.broadcast %697 : f32 to vector<2x32xf32>
    %699 = arith.mulf %696, %698 : vector<2x32xf32>
    %c0_524 = arith.constant 0 : index
    %c1_525 = arith.constant 1 : index
    %c0_526 = arith.constant 0 : index
    %c0_527 = arith.constant 0 : index
    %700 = vector.load %arg9[%c0_524, %c1_525, %c0_526, %c0_527] : memref<3x8x2x32xf32, #tpu.memory_space<vmem>>, vector<1x1x2x32xf32>
    %701 = vector.shape_cast %700 : vector<1x1x2x32xf32> to vector<2x32xf32>
    %c5_528 = arith.constant 5 : index
    %c1_529 = arith.constant 1 : index
    %702 = memref.load %arg6[%c5_528, %c1_529] : memref<8x8xf32, #tpu.memory_space<smem>>
    %703 = vector.broadcast %702 : f32 to vector<2x32xf32>
    %704 = arith.mulf %701, %703 : vector<2x32xf32>
    %705 = arith.addf %699, %704 : vector<2x32xf32>
    %c0_530 = arith.constant 0 : index
    %c2_531 = arith.constant 2 : index
    %c0_532 = arith.constant 0 : index
    %c0_533 = arith.constant 0 : index
    %706 = vector.load %arg9[%c0_530, %c2_531, %c0_532, %c0_533] : memref<3x8x2x32xf32, #tpu.memory_space<vmem>>, vector<1x1x2x32xf32>
    %707 = vector.shape_cast %706 : vector<1x1x2x32xf32> to vector<2x32xf32>
    %c5_534 = arith.constant 5 : index
    %c2_535 = arith.constant 2 : index
    %708 = memref.load %arg6[%c5_534, %c2_535] : memref<8x8xf32, #tpu.memory_space<smem>>
    %709 = vector.broadcast %708 : f32 to vector<2x32xf32>
    %710 = arith.mulf %707, %709 : vector<2x32xf32>
    %711 = arith.addf %705, %710 : vector<2x32xf32>
    %c0_536 = arith.constant 0 : index
    %c3_537 = arith.constant 3 : index
    %c0_538 = arith.constant 0 : index
    %c0_539 = arith.constant 0 : index
    %712 = vector.load %arg9[%c0_536, %c3_537, %c0_538, %c0_539] : memref<3x8x2x32xf32, #tpu.memory_space<vmem>>, vector<1x1x2x32xf32>
    %713 = vector.shape_cast %712 : vector<1x1x2x32xf32> to vector<2x32xf32>
    %c5_540 = arith.constant 5 : index
    %c3_541 = arith.constant 3 : index
    %714 = memref.load %arg6[%c5_540, %c3_541] : memref<8x8xf32, #tpu.memory_space<smem>>
    %715 = vector.broadcast %714 : f32 to vector<2x32xf32>
    %716 = arith.mulf %713, %715 : vector<2x32xf32>
    %717 = arith.addf %711, %716 : vector<2x32xf32>
    %c0_542 = arith.constant 0 : index
    %c4_543 = arith.constant 4 : index
    %c0_544 = arith.constant 0 : index
    %c0_545 = arith.constant 0 : index
    %718 = vector.load %arg9[%c0_542, %c4_543, %c0_544, %c0_545] : memref<3x8x2x32xf32, #tpu.memory_space<vmem>>, vector<1x1x2x32xf32>
    %719 = vector.shape_cast %718 : vector<1x1x2x32xf32> to vector<2x32xf32>
    %c5_546 = arith.constant 5 : index
    %c4_547 = arith.constant 4 : index
    %720 = memref.load %arg6[%c5_546, %c4_547] : memref<8x8xf32, #tpu.memory_space<smem>>
    %721 = vector.broadcast %720 : f32 to vector<2x32xf32>
    %722 = arith.mulf %719, %721 : vector<2x32xf32>
    %723 = arith.addf %717, %722 : vector<2x32xf32>
    %c0_548 = arith.constant 0 : index
    %c5_549 = arith.constant 5 : index
    %c0_550 = arith.constant 0 : index
    %c0_551 = arith.constant 0 : index
    %724 = vector.load %arg9[%c0_548, %c5_549, %c0_550, %c0_551] : memref<3x8x2x32xf32, #tpu.memory_space<vmem>>, vector<1x1x2x32xf32>
    %725 = vector.shape_cast %724 : vector<1x1x2x32xf32> to vector<2x32xf32>
    %c5_552 = arith.constant 5 : index
    %c5_553 = arith.constant 5 : index
    %726 = memref.load %arg6[%c5_552, %c5_553] : memref<8x8xf32, #tpu.memory_space<smem>>
    %727 = vector.broadcast %726 : f32 to vector<2x32xf32>
    %728 = arith.mulf %725, %727 : vector<2x32xf32>
    %729 = arith.addf %723, %728 : vector<2x32xf32>
    %c0_554 = arith.constant 0 : index
    %c6_555 = arith.constant 6 : index
    %c0_556 = arith.constant 0 : index
    %c0_557 = arith.constant 0 : index
    %730 = vector.load %arg9[%c0_554, %c6_555, %c0_556, %c0_557] : memref<3x8x2x32xf32, #tpu.memory_space<vmem>>, vector<1x1x2x32xf32>
    %731 = vector.shape_cast %730 : vector<1x1x2x32xf32> to vector<2x32xf32>
    %c5_558 = arith.constant 5 : index
    %c6_559 = arith.constant 6 : index
    %732 = memref.load %arg6[%c5_558, %c6_559] : memref<8x8xf32, #tpu.memory_space<smem>>
    %733 = vector.broadcast %732 : f32 to vector<2x32xf32>
    %734 = arith.mulf %731, %733 : vector<2x32xf32>
    %735 = arith.addf %729, %734 : vector<2x32xf32>
    %c0_560 = arith.constant 0 : index
    %c7_561 = arith.constant 7 : index
    %c0_562 = arith.constant 0 : index
    %c0_563 = arith.constant 0 : index
    %736 = vector.load %arg9[%c0_560, %c7_561, %c0_562, %c0_563] : memref<3x8x2x32xf32, #tpu.memory_space<vmem>>, vector<1x1x2x32xf32>
    %737 = vector.shape_cast %736 : vector<1x1x2x32xf32> to vector<2x32xf32>
    %c5_564 = arith.constant 5 : index
    %c7_565 = arith.constant 7 : index
    %738 = memref.load %arg6[%c5_564, %c7_565] : memref<8x8xf32, #tpu.memory_space<smem>>
    %739 = vector.broadcast %738 : f32 to vector<2x32xf32>
    %740 = arith.mulf %737, %739 : vector<2x32xf32>
    %741 = arith.addf %735, %740 : vector<2x32xf32>
    %c5_566 = arith.constant 5 : index
    %742 = memref.load %arg7[%c5_566] : memref<8xf32, #tpu.memory_space<smem>>
    %743 = vector.broadcast %742 : f32 to vector<2x32xf32>
    %744 = arith.addf %741, %743 : vector<2x32xf32>
    %c1_567 = arith.constant 1 : index
    %c5_568 = arith.constant 5 : index
    %c0_569 = arith.constant 0 : index
    %c0_570 = arith.constant 0 : index
    %745 = vector.load %arg9[%c1_567, %c5_568, %c0_569, %c0_570] : memref<3x8x2x32xf32, #tpu.memory_space<vmem>>, vector<1x1x2x32xf32>
    %746 = vector.shape_cast %745 : vector<1x1x2x32xf32> to vector<2x32xf32>
    %747 = vector.shape_cast %744 : vector<2x32xf32> to vector<1x1x2x32xf32>
    tpu.vector_store %arg9[%c1_567, %c5_568, %c0_569, %c0_570], %747 {strides = array<i32>} : memref<3x8x2x32xf32, #tpu.memory_space<vmem>>, vector<1x1x2x32xf32>,
    %748 = arith.maximumf %694, %744 : vector<2x32xf32>
    %c0_571 = arith.constant 0 : index
    %c0_572 = arith.constant 0 : index
    %c0_573 = arith.constant 0 : index
    %c0_574 = arith.constant 0 : index
    %749 = vector.load %arg9[%c0_571, %c0_572, %c0_573, %c0_574] : memref<3x8x2x32xf32, #tpu.memory_space<vmem>>, vector<1x1x2x32xf32>
    %750 = vector.shape_cast %749 : vector<1x1x2x32xf32> to vector<2x32xf32>
    %c6_575 = arith.constant 6 : index
    %c0_576 = arith.constant 0 : index
    %751 = memref.load %arg6[%c6_575, %c0_576] : memref<8x8xf32, #tpu.memory_space<smem>>
    %752 = vector.broadcast %751 : f32 to vector<2x32xf32>
    %753 = arith.mulf %750, %752 : vector<2x32xf32>
    %c0_577 = arith.constant 0 : index
    %c1_578 = arith.constant 1 : index
    %c0_579 = arith.constant 0 : index
    %c0_580 = arith.constant 0 : index
    %754 = vector.load %arg9[%c0_577, %c1_578, %c0_579, %c0_580] : memref<3x8x2x32xf32, #tpu.memory_space<vmem>>, vector<1x1x2x32xf32>
    %755 = vector.shape_cast %754 : vector<1x1x2x32xf32> to vector<2x32xf32>
    %c6_581 = arith.constant 6 : index
    %c1_582 = arith.constant 1 : index
    %756 = memref.load %arg6[%c6_581, %c1_582] : memref<8x8xf32, #tpu.memory_space<smem>>
    %757 = vector.broadcast %756 : f32 to vector<2x32xf32>
    %758 = arith.mulf %755, %757 : vector<2x32xf32>
    %759 = arith.addf %753, %758 : vector<2x32xf32>
    %c0_583 = arith.constant 0 : index
    %c2_584 = arith.constant 2 : index
    %c0_585 = arith.constant 0 : index
    %c0_586 = arith.constant 0 : index
    %760 = vector.load %arg9[%c0_583, %c2_584, %c0_585, %c0_586] : memref<3x8x2x32xf32, #tpu.memory_space<vmem>>, vector<1x1x2x32xf32>
    %761 = vector.shape_cast %760 : vector<1x1x2x32xf32> to vector<2x32xf32>
    %c6_587 = arith.constant 6 : index
    %c2_588 = arith.constant 2 : index
    %762 = memref.load %arg6[%c6_587, %c2_588] : memref<8x8xf32, #tpu.memory_space<smem>>
    %763 = vector.broadcast %762 : f32 to vector<2x32xf32>
    %764 = arith.mulf %761, %763 : vector<2x32xf32>
    %765 = arith.addf %759, %764 : vector<2x32xf32>
    %c0_589 = arith.constant 0 : index
    %c3_590 = arith.constant 3 : index
    %c0_591 = arith.constant 0 : index
    %c0_592 = arith.constant 0 : index
    %766 = vector.load %arg9[%c0_589, %c3_590, %c0_591, %c0_592] : memref<3x8x2x32xf32, #tpu.memory_space<vmem>>, vector<1x1x2x32xf32>
    %767 = vector.shape_cast %766 : vector<1x1x2x32xf32> to vector<2x32xf32>
    %c6_593 = arith.constant 6 : index
    %c3_594 = arith.constant 3 : index
    %768 = memref.load %arg6[%c6_593, %c3_594] : memref<8x8xf32, #tpu.memory_space<smem>>
    %769 = vector.broadcast %768 : f32 to vector<2x32xf32>
    %770 = arith.mulf %767, %769 : vector<2x32xf32>
    %771 = arith.addf %765, %770 : vector<2x32xf32>
    %c0_595 = arith.constant 0 : index
    %c4_596 = arith.constant 4 : index
    %c0_597 = arith.constant 0 : index
    %c0_598 = arith.constant 0 : index
    %772 = vector.load %arg9[%c0_595, %c4_596, %c0_597, %c0_598] : memref<3x8x2x32xf32, #tpu.memory_space<vmem>>, vector<1x1x2x32xf32>
    %773 = vector.shape_cast %772 : vector<1x1x2x32xf32> to vector<2x32xf32>
    %c6_599 = arith.constant 6 : index
    %c4_600 = arith.constant 4 : index
    %774 = memref.load %arg6[%c6_599, %c4_600] : memref<8x8xf32, #tpu.memory_space<smem>>
    %775 = vector.broadcast %774 : f32 to vector<2x32xf32>
    %776 = arith.mulf %773, %775 : vector<2x32xf32>
    %777 = arith.addf %771, %776 : vector<2x32xf32>
    %c0_601 = arith.constant 0 : index
    %c5_602 = arith.constant 5 : index
    %c0_603 = arith.constant 0 : index
    %c0_604 = arith.constant 0 : index
    %778 = vector.load %arg9[%c0_601, %c5_602, %c0_603, %c0_604] : memref<3x8x2x32xf32, #tpu.memory_space<vmem>>, vector<1x1x2x32xf32>
    %779 = vector.shape_cast %778 : vector<1x1x2x32xf32> to vector<2x32xf32>
    %c6_605 = arith.constant 6 : index
    %c5_606 = arith.constant 5 : index
    %780 = memref.load %arg6[%c6_605, %c5_606] : memref<8x8xf32, #tpu.memory_space<smem>>
    %781 = vector.broadcast %780 : f32 to vector<2x32xf32>
    %782 = arith.mulf %779, %781 : vector<2x32xf32>
    %783 = arith.addf %777, %782 : vector<2x32xf32>
    %c0_607 = arith.constant 0 : index
    %c6_608 = arith.constant 6 : index
    %c0_609 = arith.constant 0 : index
    %c0_610 = arith.constant 0 : index
    %784 = vector.load %arg9[%c0_607, %c6_608, %c0_609, %c0_610] : memref<3x8x2x32xf32, #tpu.memory_space<vmem>>, vector<1x1x2x32xf32>
    %785 = vector.shape_cast %784 : vector<1x1x2x32xf32> to vector<2x32xf32>
    %c6_611 = arith.constant 6 : index
    %c6_612 = arith.constant 6 : index
    %786 = memref.load %arg6[%c6_611, %c6_612] : memref<8x8xf32, #tpu.memory_space<smem>>
    %787 = vector.broadcast %786 : f32 to vector<2x32xf32>
    %788 = arith.mulf %785, %787 : vector<2x32xf32>
    %789 = arith.addf %783, %788 : vector<2x32xf32>
    %c0_613 = arith.constant 0 : index
    %c7_614 = arith.constant 7 : index
    %c0_615 = arith.constant 0 : index
    %c0_616 = arith.constant 0 : index
    %790 = vector.load %arg9[%c0_613, %c7_614, %c0_615, %c0_616] : memref<3x8x2x32xf32, #tpu.memory_space<vmem>>, vector<1x1x2x32xf32>
    %791 = vector.shape_cast %790 : vector<1x1x2x32xf32> to vector<2x32xf32>
    %c6_617 = arith.constant 6 : index
    %c7_618 = arith.constant 7 : index
    %792 = memref.load %arg6[%c6_617, %c7_618] : memref<8x8xf32, #tpu.memory_space<smem>>
    %793 = vector.broadcast %792 : f32 to vector<2x32xf32>
    %794 = arith.mulf %791, %793 : vector<2x32xf32>
    %795 = arith.addf %789, %794 : vector<2x32xf32>
    %c6_619 = arith.constant 6 : index
    %796 = memref.load %arg7[%c6_619] : memref<8xf32, #tpu.memory_space<smem>>
    %797 = vector.broadcast %796 : f32 to vector<2x32xf32>
    %798 = arith.addf %795, %797 : vector<2x32xf32>
    %c1_620 = arith.constant 1 : index
    %c6_621 = arith.constant 6 : index
    %c0_622 = arith.constant 0 : index
    %c0_623 = arith.constant 0 : index
    %799 = vector.load %arg9[%c1_620, %c6_621, %c0_622, %c0_623] : memref<3x8x2x32xf32, #tpu.memory_space<vmem>>, vector<1x1x2x32xf32>
    %800 = vector.shape_cast %799 : vector<1x1x2x32xf32> to vector<2x32xf32>
    %801 = vector.shape_cast %798 : vector<2x32xf32> to vector<1x1x2x32xf32>
    tpu.vector_store %arg9[%c1_620, %c6_621, %c0_622, %c0_623], %801 {strides = array<i32>} : memref<3x8x2x32xf32, #tpu.memory_space<vmem>>, vector<1x1x2x32xf32>,
    %802 = arith.maximumf %748, %798 : vector<2x32xf32>
    %c0_624 = arith.constant 0 : index
    %c0_625 = arith.constant 0 : index
    %c0_626 = arith.constant 0 : index
    %c0_627 = arith.constant 0 : index
    %803 = vector.load %arg9[%c0_624, %c0_625, %c0_626, %c0_627] : memref<3x8x2x32xf32, #tpu.memory_space<vmem>>, vector<1x1x2x32xf32>
    %804 = vector.shape_cast %803 : vector<1x1x2x32xf32> to vector<2x32xf32>
    %c7_628 = arith.constant 7 : index
    %c0_629 = arith.constant 0 : index
    %805 = memref.load %arg6[%c7_628, %c0_629] : memref<8x8xf32, #tpu.memory_space<smem>>
    %806 = vector.broadcast %805 : f32 to vector<2x32xf32>
    %807 = arith.mulf %804, %806 : vector<2x32xf32>
    %c0_630 = arith.constant 0 : index
    %c1_631 = arith.constant 1 : index
    %c0_632 = arith.constant 0 : index
    %c0_633 = arith.constant 0 : index
    %808 = vector.load %arg9[%c0_630, %c1_631, %c0_632, %c0_633] : memref<3x8x2x32xf32, #tpu.memory_space<vmem>>, vector<1x1x2x32xf32>
    %809 = vector.shape_cast %808 : vector<1x1x2x32xf32> to vector<2x32xf32>
    %c7_634 = arith.constant 7 : index
    %c1_635 = arith.constant 1 : index
    %810 = memref.load %arg6[%c7_634, %c1_635] : memref<8x8xf32, #tpu.memory_space<smem>>
    %811 = vector.broadcast %810 : f32 to vector<2x32xf32>
    %812 = arith.mulf %809, %811 : vector<2x32xf32>
    %813 = arith.addf %807, %812 : vector<2x32xf32>
    %c0_636 = arith.constant 0 : index
    %c2_637 = arith.constant 2 : index
    %c0_638 = arith.constant 0 : index
    %c0_639 = arith.constant 0 : index
    %814 = vector.load %arg9[%c0_636, %c2_637, %c0_638, %c0_639] : memref<3x8x2x32xf32, #tpu.memory_space<vmem>>, vector<1x1x2x32xf32>
    %815 = vector.shape_cast %814 : vector<1x1x2x32xf32> to vector<2x32xf32>
    %c7_640 = arith.constant 7 : index
    %c2_641 = arith.constant 2 : index
    %816 = memref.load %arg6[%c7_640, %c2_641] : memref<8x8xf32, #tpu.memory_space<smem>>
    %817 = vector.broadcast %816 : f32 to vector<2x32xf32>
    %818 = arith.mulf %815, %817 : vector<2x32xf32>
    %819 = arith.addf %813, %818 : vector<2x32xf32>
    %c0_642 = arith.constant 0 : index
    %c3_643 = arith.constant 3 : index
    %c0_644 = arith.constant 0 : index
    %c0_645 = arith.constant 0 : index
    %820 = vector.load %arg9[%c0_642, %c3_643, %c0_644, %c0_645] : memref<3x8x2x32xf32, #tpu.memory_space<vmem>>, vector<1x1x2x32xf32>
    %821 = vector.shape_cast %820 : vector<1x1x2x32xf32> to vector<2x32xf32>
    %c7_646 = arith.constant 7 : index
    %c3_647 = arith.constant 3 : index
    %822 = memref.load %arg6[%c7_646, %c3_647] : memref<8x8xf32, #tpu.memory_space<smem>>
    %823 = vector.broadcast %822 : f32 to vector<2x32xf32>
    %824 = arith.mulf %821, %823 : vector<2x32xf32>
    %825 = arith.addf %819, %824 : vector<2x32xf32>
    %c0_648 = arith.constant 0 : index
    %c4_649 = arith.constant 4 : index
    %c0_650 = arith.constant 0 : index
    %c0_651 = arith.constant 0 : index
    %826 = vector.load %arg9[%c0_648, %c4_649, %c0_650, %c0_651] : memref<3x8x2x32xf32, #tpu.memory_space<vmem>>, vector<1x1x2x32xf32>
    %827 = vector.shape_cast %826 : vector<1x1x2x32xf32> to vector<2x32xf32>
    %c7_652 = arith.constant 7 : index
    %c4_653 = arith.constant 4 : index
    %828 = memref.load %arg6[%c7_652, %c4_653] : memref<8x8xf32, #tpu.memory_space<smem>>
    %829 = vector.broadcast %828 : f32 to vector<2x32xf32>
    %830 = arith.mulf %827, %829 : vector<2x32xf32>
    %831 = arith.addf %825, %830 : vector<2x32xf32>
    %c0_654 = arith.constant 0 : index
    %c5_655 = arith.constant 5 : index
    %c0_656 = arith.constant 0 : index
    %c0_657 = arith.constant 0 : index
    %832 = vector.load %arg9[%c0_654, %c5_655, %c0_656, %c0_657] : memref<3x8x2x32xf32, #tpu.memory_space<vmem>>, vector<1x1x2x32xf32>
    %833 = vector.shape_cast %832 : vector<1x1x2x32xf32> to vector<2x32xf32>
    %c7_658 = arith.constant 7 : index
    %c5_659 = arith.constant 5 : index
    %834 = memref.load %arg6[%c7_658, %c5_659] : memref<8x8xf32, #tpu.memory_space<smem>>
    %835 = vector.broadcast %834 : f32 to vector<2x32xf32>
    %836 = arith.mulf %833, %835 : vector<2x32xf32>
    %837 = arith.addf %831, %836 : vector<2x32xf32>
    %c0_660 = arith.constant 0 : index
    %c6_661 = arith.constant 6 : index
    %c0_662 = arith.constant 0 : index
    %c0_663 = arith.constant 0 : index
    %838 = vector.load %arg9[%c0_660, %c6_661, %c0_662, %c0_663] : memref<3x8x2x32xf32, #tpu.memory_space<vmem>>, vector<1x1x2x32xf32>
    %839 = vector.shape_cast %838 : vector<1x1x2x32xf32> to vector<2x32xf32>
    %c7_664 = arith.constant 7 : index
    %c6_665 = arith.constant 6 : index
    %840 = memref.load %arg6[%c7_664, %c6_665] : memref<8x8xf32, #tpu.memory_space<smem>>
    %841 = vector.broadcast %840 : f32 to vector<2x32xf32>
    %842 = arith.mulf %839, %841 : vector<2x32xf32>
    %843 = arith.addf %837, %842 : vector<2x32xf32>
    %c0_666 = arith.constant 0 : index
    %c7_667 = arith.constant 7 : index
    %c0_668 = arith.constant 0 : index
    %c0_669 = arith.constant 0 : index
    %844 = vector.load %arg9[%c0_666, %c7_667, %c0_668, %c0_669] : memref<3x8x2x32xf32, #tpu.memory_space<vmem>>, vector<1x1x2x32xf32>
    %845 = vector.shape_cast %844 : vector<1x1x2x32xf32> to vector<2x32xf32>
    %c7_670 = arith.constant 7 : index
    %c7_671 = arith.constant 7 : index
    %846 = memref.load %arg6[%c7_670, %c7_671] : memref<8x8xf32, #tpu.memory_space<smem>>
    %847 = vector.broadcast %846 : f32 to vector<2x32xf32>
    %848 = arith.mulf %845, %847 : vector<2x32xf32>
    %849 = arith.addf %843, %848 : vector<2x32xf32>
    %c7_672 = arith.constant 7 : index
    %850 = memref.load %arg7[%c7_672] : memref<8xf32, #tpu.memory_space<smem>>
    %851 = vector.broadcast %850 : f32 to vector<2x32xf32>
    %852 = arith.addf %849, %851 : vector<2x32xf32>
    %c1_673 = arith.constant 1 : index
    %c7_674 = arith.constant 7 : index
    %c0_675 = arith.constant 0 : index
    %c0_676 = arith.constant 0 : index
    %853 = vector.load %arg9[%c1_673, %c7_674, %c0_675, %c0_676] : memref<3x8x2x32xf32, #tpu.memory_space<vmem>>, vector<1x1x2x32xf32>
    %854 = vector.shape_cast %853 : vector<1x1x2x32xf32> to vector<2x32xf32>
    %855 = vector.shape_cast %852 : vector<2x32xf32> to vector<1x1x2x32xf32>
    tpu.vector_store %arg9[%c1_673, %c7_674, %c0_675, %c0_676], %855 {strides = array<i32>} : memref<3x8x2x32xf32, #tpu.memory_space<vmem>>, vector<1x1x2x32xf32>,
    %856 = arith.maximumf %802, %852 : vector<2x32xf32>
    %cst_677 = arith.constant 0.000000e+00 : f32
    %857 = vector.broadcast %cst_677 : f32 to vector<2x32xf32>
    %c1_678 = arith.constant 1 : index
    %c0_679 = arith.constant 0 : index
    %c0_680 = arith.constant 0 : index
    %c0_681 = arith.constant 0 : index
    %858 = vector.load %arg9[%c1_678, %c0_679, %c0_680, %c0_681] : memref<3x8x2x32xf32, #tpu.memory_space<vmem>>, vector<1x1x2x32xf32>
    %859 = vector.shape_cast %858 : vector<1x1x2x32xf32> to vector<2x32xf32>
    %860 = arith.subf %859, %856 : vector<2x32xf32>
    %861 = math.exp %860 : vector<2x32xf32>
    %c1_682 = arith.constant 1 : index
    %c0_683 = arith.constant 0 : index
    %c0_684 = arith.constant 0 : index
    %c0_685 = arith.constant 0 : index
    %862 = vector.load %arg9[%c1_682, %c0_683, %c0_684, %c0_685] : memref<3x8x2x32xf32, #tpu.memory_space<vmem>>, vector<1x1x2x32xf32>
    %863 = vector.shape_cast %862 : vector<1x1x2x32xf32> to vector<2x32xf32>
    %864 = vector.shape_cast %861 : vector<2x32xf32> to vector<1x1x2x32xf32>
    tpu.vector_store %arg9[%c1_682, %c0_683, %c0_684, %c0_685], %864 {strides = array<i32>} : memref<3x8x2x32xf32, #tpu.memory_space<vmem>>, vector<1x1x2x32xf32>,
    %865 = arith.addf %857, %861 : vector<2x32xf32>
    %c1_686 = arith.constant 1 : index
    %c1_687 = arith.constant 1 : index
    %c0_688 = arith.constant 0 : index
    %c0_689 = arith.constant 0 : index
    %866 = vector.load %arg9[%c1_686, %c1_687, %c0_688, %c0_689] : memref<3x8x2x32xf32, #tpu.memory_space<vmem>>, vector<1x1x2x32xf32>
    %867 = vector.shape_cast %866 : vector<1x1x2x32xf32> to vector<2x32xf32>
    %868 = arith.subf %867, %856 : vector<2x32xf32>
    %869 = math.exp %868 : vector<2x32xf32>
    %c1_690 = arith.constant 1 : index
    %c1_691 = arith.constant 1 : index
    %c0_692 = arith.constant 0 : index
    %c0_693 = arith.constant 0 : index
    %870 = vector.load %arg9[%c1_690, %c1_691, %c0_692, %c0_693] : memref<3x8x2x32xf32, #tpu.memory_space<vmem>>, vector<1x1x2x32xf32>
    %871 = vector.shape_cast %870 : vector<1x1x2x32xf32> to vector<2x32xf32>
    %872 = vector.shape_cast %869 : vector<2x32xf32> to vector<1x1x2x32xf32>
    tpu.vector_store %arg9[%c1_690, %c1_691, %c0_692, %c0_693], %872 {strides = array<i32>} : memref<3x8x2x32xf32, #tpu.memory_space<vmem>>, vector<1x1x2x32xf32>,
    %873 = arith.addf %865, %869 : vector<2x32xf32>
    %c1_694 = arith.constant 1 : index
    %c2_695 = arith.constant 2 : index
    %c0_696 = arith.constant 0 : index
    %c0_697 = arith.constant 0 : index
    %874 = vector.load %arg9[%c1_694, %c2_695, %c0_696, %c0_697] : memref<3x8x2x32xf32, #tpu.memory_space<vmem>>, vector<1x1x2x32xf32>
    %875 = vector.shape_cast %874 : vector<1x1x2x32xf32> to vector<2x32xf32>
    %876 = arith.subf %875, %856 : vector<2x32xf32>
    %877 = math.exp %876 : vector<2x32xf32>
    %c1_698 = arith.constant 1 : index
    %c2_699 = arith.constant 2 : index
    %c0_700 = arith.constant 0 : index
    %c0_701 = arith.constant 0 : index
    %878 = vector.load %arg9[%c1_698, %c2_699, %c0_700, %c0_701] : memref<3x8x2x32xf32, #tpu.memory_space<vmem>>, vector<1x1x2x32xf32>
    %879 = vector.shape_cast %878 : vector<1x1x2x32xf32> to vector<2x32xf32>
    %880 = vector.shape_cast %877 : vector<2x32xf32> to vector<1x1x2x32xf32>
    tpu.vector_store %arg9[%c1_698, %c2_699, %c0_700, %c0_701], %880 {strides = array<i32>} : memref<3x8x2x32xf32, #tpu.memory_space<vmem>>, vector<1x1x2x32xf32>,
    %881 = arith.addf %873, %877 : vector<2x32xf32>
    %c1_702 = arith.constant 1 : index
    %c3_703 = arith.constant 3 : index
    %c0_704 = arith.constant 0 : index
    %c0_705 = arith.constant 0 : index
    %882 = vector.load %arg9[%c1_702, %c3_703, %c0_704, %c0_705] : memref<3x8x2x32xf32, #tpu.memory_space<vmem>>, vector<1x1x2x32xf32>
    %883 = vector.shape_cast %882 : vector<1x1x2x32xf32> to vector<2x32xf32>
    %884 = arith.subf %883, %856 : vector<2x32xf32>
    %885 = math.exp %884 : vector<2x32xf32>
    %c1_706 = arith.constant 1 : index
    %c3_707 = arith.constant 3 : index
    %c0_708 = arith.constant 0 : index
    %c0_709 = arith.constant 0 : index
    %886 = vector.load %arg9[%c1_706, %c3_707, %c0_708, %c0_709] : memref<3x8x2x32xf32, #tpu.memory_space<vmem>>, vector<1x1x2x32xf32>
    %887 = vector.shape_cast %886 : vector<1x1x2x32xf32> to vector<2x32xf32>
    %888 = vector.shape_cast %885 : vector<2x32xf32> to vector<1x1x2x32xf32>
    tpu.vector_store %arg9[%c1_706, %c3_707, %c0_708, %c0_709], %888 {strides = array<i32>} : memref<3x8x2x32xf32, #tpu.memory_space<vmem>>, vector<1x1x2x32xf32>,
    %889 = arith.addf %881, %885 : vector<2x32xf32>
    %c1_710 = arith.constant 1 : index
    %c4_711 = arith.constant 4 : index
    %c0_712 = arith.constant 0 : index
    %c0_713 = arith.constant 0 : index
    %890 = vector.load %arg9[%c1_710, %c4_711, %c0_712, %c0_713] : memref<3x8x2x32xf32, #tpu.memory_space<vmem>>, vector<1x1x2x32xf32>
    %891 = vector.shape_cast %890 : vector<1x1x2x32xf32> to vector<2x32xf32>
    %892 = arith.subf %891, %856 : vector<2x32xf32>
    %893 = math.exp %892 : vector<2x32xf32>
    %c1_714 = arith.constant 1 : index
    %c4_715 = arith.constant 4 : index
    %c0_716 = arith.constant 0 : index
    %c0_717 = arith.constant 0 : index
    %894 = vector.load %arg9[%c1_714, %c4_715, %c0_716, %c0_717] : memref<3x8x2x32xf32, #tpu.memory_space<vmem>>, vector<1x1x2x32xf32>
    %895 = vector.shape_cast %894 : vector<1x1x2x32xf32> to vector<2x32xf32>
    %896 = vector.shape_cast %893 : vector<2x32xf32> to vector<1x1x2x32xf32>
    tpu.vector_store %arg9[%c1_714, %c4_715, %c0_716, %c0_717], %896 {strides = array<i32>} : memref<3x8x2x32xf32, #tpu.memory_space<vmem>>, vector<1x1x2x32xf32>,
    %897 = arith.addf %889, %893 : vector<2x32xf32>
    %c1_718 = arith.constant 1 : index
    %c5_719 = arith.constant 5 : index
    %c0_720 = arith.constant 0 : index
    %c0_721 = arith.constant 0 : index
    %898 = vector.load %arg9[%c1_718, %c5_719, %c0_720, %c0_721] : memref<3x8x2x32xf32, #tpu.memory_space<vmem>>, vector<1x1x2x32xf32>
    %899 = vector.shape_cast %898 : vector<1x1x2x32xf32> to vector<2x32xf32>
    %900 = arith.subf %899, %856 : vector<2x32xf32>
    %901 = math.exp %900 : vector<2x32xf32>
    %c1_722 = arith.constant 1 : index
    %c5_723 = arith.constant 5 : index
    %c0_724 = arith.constant 0 : index
    %c0_725 = arith.constant 0 : index
    %902 = vector.load %arg9[%c1_722, %c5_723, %c0_724, %c0_725] : memref<3x8x2x32xf32, #tpu.memory_space<vmem>>, vector<1x1x2x32xf32>
    %903 = vector.shape_cast %902 : vector<1x1x2x32xf32> to vector<2x32xf32>
    %904 = vector.shape_cast %901 : vector<2x32xf32> to vector<1x1x2x32xf32>
    tpu.vector_store %arg9[%c1_722, %c5_723, %c0_724, %c0_725], %904 {strides = array<i32>} : memref<3x8x2x32xf32, #tpu.memory_space<vmem>>, vector<1x1x2x32xf32>,
    %905 = arith.addf %897, %901 : vector<2x32xf32>
    %c1_726 = arith.constant 1 : index
    %c6_727 = arith.constant 6 : index
    %c0_728 = arith.constant 0 : index
    %c0_729 = arith.constant 0 : index
    %906 = vector.load %arg9[%c1_726, %c6_727, %c0_728, %c0_729] : memref<3x8x2x32xf32, #tpu.memory_space<vmem>>, vector<1x1x2x32xf32>
    %907 = vector.shape_cast %906 : vector<1x1x2x32xf32> to vector<2x32xf32>
    %908 = arith.subf %907, %856 : vector<2x32xf32>
    %909 = math.exp %908 : vector<2x32xf32>
    %c1_730 = arith.constant 1 : index
    %c6_731 = arith.constant 6 : index
    %c0_732 = arith.constant 0 : index
    %c0_733 = arith.constant 0 : index
    %910 = vector.load %arg9[%c1_730, %c6_731, %c0_732, %c0_733] : memref<3x8x2x32xf32, #tpu.memory_space<vmem>>, vector<1x1x2x32xf32>
    %911 = vector.shape_cast %910 : vector<1x1x2x32xf32> to vector<2x32xf32>
    %912 = vector.shape_cast %909 : vector<2x32xf32> to vector<1x1x2x32xf32>
    tpu.vector_store %arg9[%c1_730, %c6_731, %c0_732, %c0_733], %912 {strides = array<i32>} : memref<3x8x2x32xf32, #tpu.memory_space<vmem>>, vector<1x1x2x32xf32>,
    %913 = arith.addf %905, %909 : vector<2x32xf32>
    %c1_734 = arith.constant 1 : index
    %c7_735 = arith.constant 7 : index
    %c0_736 = arith.constant 0 : index
    %c0_737 = arith.constant 0 : index
    %914 = vector.load %arg9[%c1_734, %c7_735, %c0_736, %c0_737] : memref<3x8x2x32xf32, #tpu.memory_space<vmem>>, vector<1x1x2x32xf32>
    %915 = vector.shape_cast %914 : vector<1x1x2x32xf32> to vector<2x32xf32>
    %916 = arith.subf %915, %856 : vector<2x32xf32>
    %917 = math.exp %916 : vector<2x32xf32>
    %c1_738 = arith.constant 1 : index
    %c7_739 = arith.constant 7 : index
    %c0_740 = arith.constant 0 : index
    %c0_741 = arith.constant 0 : index
    %918 = vector.load %arg9[%c1_738, %c7_739, %c0_740, %c0_741] : memref<3x8x2x32xf32, #tpu.memory_space<vmem>>, vector<1x1x2x32xf32>
    %919 = vector.shape_cast %918 : vector<1x1x2x32xf32> to vector<2x32xf32>
    %920 = vector.shape_cast %917 : vector<2x32xf32> to vector<1x1x2x32xf32>
    tpu.vector_store %arg9[%c1_738, %c7_739, %c0_740, %c0_741], %920 {strides = array<i32>} : memref<3x8x2x32xf32, #tpu.memory_space<vmem>>, vector<1x1x2x32xf32>,
    %921 = arith.addf %913, %917 : vector<2x32xf32>
    %922 = tpu.reciprocal %921 {approx = true} : vector<2x32xf32> -> vector<2x32xf32>
    %c0_742 = arith.constant 0 : index
    %c0_743 = arith.constant 0 : index
    %c0_744 = arith.constant 0 : index
    %c0_745 = arith.constant 0 : index
    %923 = vector.load %arg9[%c0_742, %c0_743, %c0_744, %c0_745] : memref<3x8x2x32xf32, #tpu.memory_space<vmem>>, vector<1x1x2x32xf32>
    %924 = vector.shape_cast %923 : vector<1x1x2x32xf32> to vector<2x32xf32>
    %c1_746 = arith.constant 1 : index
    %c0_747 = arith.constant 0 : index
    %c0_748 = arith.constant 0 : index
    %c0_749 = arith.constant 0 : index
    %925 = vector.load %arg9[%c1_746, %c0_747, %c0_748, %c0_749] : memref<3x8x2x32xf32, #tpu.memory_space<vmem>>, vector<1x1x2x32xf32>
    %926 = vector.shape_cast %925 : vector<1x1x2x32xf32> to vector<2x32xf32>
    %927 = arith.mulf %924, %926 : vector<2x32xf32>
    %928 = arith.mulf %927, %922 : vector<2x32xf32>
    %c0_750 = arith.constant 0 : index
    %c1_751 = arith.constant 1 : index
    %c0_752 = arith.constant 0 : index
    %c0_753 = arith.constant 0 : index
    %929 = vector.load %arg9[%c0_750, %c1_751, %c0_752, %c0_753] : memref<3x8x2x32xf32, #tpu.memory_space<vmem>>, vector<1x1x2x32xf32>
    %930 = vector.shape_cast %929 : vector<1x1x2x32xf32> to vector<2x32xf32>
    %c1_754 = arith.constant 1 : index
    %c1_755 = arith.constant 1 : index
    %c0_756 = arith.constant 0 : index
    %c0_757 = arith.constant 0 : index
    %931 = vector.load %arg9[%c1_754, %c1_755, %c0_756, %c0_757] : memref<3x8x2x32xf32, #tpu.memory_space<vmem>>, vector<1x1x2x32xf32>
    %932 = vector.shape_cast %931 : vector<1x1x2x32xf32> to vector<2x32xf32>
    %933 = arith.mulf %930, %932 : vector<2x32xf32>
    %934 = arith.mulf %933, %922 : vector<2x32xf32>
    %c0_758 = arith.constant 0 : index
    %c2_759 = arith.constant 2 : index
    %c0_760 = arith.constant 0 : index
    %c0_761 = arith.constant 0 : index
    %935 = vector.load %arg9[%c0_758, %c2_759, %c0_760, %c0_761] : memref<3x8x2x32xf32, #tpu.memory_space<vmem>>, vector<1x1x2x32xf32>
    %936 = vector.shape_cast %935 : vector<1x1x2x32xf32> to vector<2x32xf32>
    %c1_762 = arith.constant 1 : index
    %c2_763 = arith.constant 2 : index
    %c0_764 = arith.constant 0 : index
    %c0_765 = arith.constant 0 : index
    %937 = vector.load %arg9[%c1_762, %c2_763, %c0_764, %c0_765] : memref<3x8x2x32xf32, #tpu.memory_space<vmem>>, vector<1x1x2x32xf32>
    %938 = vector.shape_cast %937 : vector<1x1x2x32xf32> to vector<2x32xf32>
    %939 = arith.mulf %936, %938 : vector<2x32xf32>
    %940 = arith.mulf %939, %922 : vector<2x32xf32>
    %c0_766 = arith.constant 0 : index
    %c3_767 = arith.constant 3 : index
    %c0_768 = arith.constant 0 : index
    %c0_769 = arith.constant 0 : index
    %941 = vector.load %arg9[%c0_766, %c3_767, %c0_768, %c0_769] : memref<3x8x2x32xf32, #tpu.memory_space<vmem>>, vector<1x1x2x32xf32>
    %942 = vector.shape_cast %941 : vector<1x1x2x32xf32> to vector<2x32xf32>
    %c1_770 = arith.constant 1 : index
    %c3_771 = arith.constant 3 : index
    %c0_772 = arith.constant 0 : index
    %c0_773 = arith.constant 0 : index
    %943 = vector.load %arg9[%c1_770, %c3_771, %c0_772, %c0_773] : memref<3x8x2x32xf32, #tpu.memory_space<vmem>>, vector<1x1x2x32xf32>
    %944 = vector.shape_cast %943 : vector<1x1x2x32xf32> to vector<2x32xf32>
    %945 = arith.mulf %942, %944 : vector<2x32xf32>
    %946 = arith.mulf %945, %922 : vector<2x32xf32>
    %c0_774 = arith.constant 0 : index
    %c4_775 = arith.constant 4 : index
    %c0_776 = arith.constant 0 : index
    %c0_777 = arith.constant 0 : index
    %947 = vector.load %arg9[%c0_774, %c4_775, %c0_776, %c0_777] : memref<3x8x2x32xf32, #tpu.memory_space<vmem>>, vector<1x1x2x32xf32>
    %948 = vector.shape_cast %947 : vector<1x1x2x32xf32> to vector<2x32xf32>
    %c1_778 = arith.constant 1 : index
    %c4_779 = arith.constant 4 : index
    %c0_780 = arith.constant 0 : index
    %c0_781 = arith.constant 0 : index
    %949 = vector.load %arg9[%c1_778, %c4_779, %c0_780, %c0_781] : memref<3x8x2x32xf32, #tpu.memory_space<vmem>>, vector<1x1x2x32xf32>
    %950 = vector.shape_cast %949 : vector<1x1x2x32xf32> to vector<2x32xf32>
    %951 = arith.mulf %948, %950 : vector<2x32xf32>
    %952 = arith.mulf %951, %922 : vector<2x32xf32>
    %c0_782 = arith.constant 0 : index
    %c5_783 = arith.constant 5 : index
    %c0_784 = arith.constant 0 : index
    %c0_785 = arith.constant 0 : index
    %953 = vector.load %arg9[%c0_782, %c5_783, %c0_784, %c0_785] : memref<3x8x2x32xf32, #tpu.memory_space<vmem>>, vector<1x1x2x32xf32>
    %954 = vector.shape_cast %953 : vector<1x1x2x32xf32> to vector<2x32xf32>
    %c1_786 = arith.constant 1 : index
    %c5_787 = arith.constant 5 : index
    %c0_788 = arith.constant 0 : index
    %c0_789 = arith.constant 0 : index
    %955 = vector.load %arg9[%c1_786, %c5_787, %c0_788, %c0_789] : memref<3x8x2x32xf32, #tpu.memory_space<vmem>>, vector<1x1x2x32xf32>
    %956 = vector.shape_cast %955 : vector<1x1x2x32xf32> to vector<2x32xf32>
    %957 = arith.mulf %954, %956 : vector<2x32xf32>
    %958 = arith.mulf %957, %922 : vector<2x32xf32>
    %c0_790 = arith.constant 0 : index
    %c6_791 = arith.constant 6 : index
    %c0_792 = arith.constant 0 : index
    %c0_793 = arith.constant 0 : index
    %959 = vector.load %arg9[%c0_790, %c6_791, %c0_792, %c0_793] : memref<3x8x2x32xf32, #tpu.memory_space<vmem>>, vector<1x1x2x32xf32>
    %960 = vector.shape_cast %959 : vector<1x1x2x32xf32> to vector<2x32xf32>
    %c1_794 = arith.constant 1 : index
    %c6_795 = arith.constant 6 : index
    %c0_796 = arith.constant 0 : index
    %c0_797 = arith.constant 0 : index
    %961 = vector.load %arg9[%c1_794, %c6_795, %c0_796, %c0_797] : memref<3x8x2x32xf32, #tpu.memory_space<vmem>>, vector<1x1x2x32xf32>
    %962 = vector.shape_cast %961 : vector<1x1x2x32xf32> to vector<2x32xf32>
    %963 = arith.mulf %960, %962 : vector<2x32xf32>
    %964 = arith.mulf %963, %922 : vector<2x32xf32>
    %c0_798 = arith.constant 0 : index
    %c7_799 = arith.constant 7 : index
    %c0_800 = arith.constant 0 : index
    %c0_801 = arith.constant 0 : index
    %965 = vector.load %arg9[%c0_798, %c7_799, %c0_800, %c0_801] : memref<3x8x2x32xf32, #tpu.memory_space<vmem>>, vector<1x1x2x32xf32>
    %966 = vector.shape_cast %965 : vector<1x1x2x32xf32> to vector<2x32xf32>
    %c1_802 = arith.constant 1 : index
    %c7_803 = arith.constant 7 : index
    %c0_804 = arith.constant 0 : index
    %c0_805 = arith.constant 0 : index
    %967 = vector.load %arg9[%c1_802, %c7_803, %c0_804, %c0_805] : memref<3x8x2x32xf32, #tpu.memory_space<vmem>>, vector<1x1x2x32xf32>
    %968 = vector.shape_cast %967 : vector<1x1x2x32xf32> to vector<2x32xf32>
    %969 = arith.mulf %966, %968 : vector<2x32xf32>
    %970 = arith.mulf %969, %922 : vector<2x32xf32>
    %971 = tpu.concatenate %928, %934, %940, %946, %952, %958, %964, %970 in 1 : vector<2x32xf32>, vector<2x32xf32>, vector<2x32xf32>, vector<2x32xf32>, vector<2x32xf32>, vector<2x32xf32>, vector<2x32xf32>, vector<2x32xf32> -> vector<2x256xf32>
    %c0_806 = arith.constant 0 : index
    %c0_807 = arith.constant 0 : index
    %972 = vector.load %arg8[%c0_806, %c0_807] : memref<2x256xf32, #tpu.memory_space<vmem>>, vector<2x256xf32>
    tpu.vector_store %arg8[%c0_806, %c0_807], %971 {strides = array<i32>} : memref<2x256xf32, #tpu.memory_space<vmem>>, vector<2x256xf32>,
    return
  }
  func.func @transform_0(%arg0: i32) -> (i32, i32, i32) {
    %c0_i32 = arith.constant 0 : i32
    %c0_i32_0 = arith.constant 0 : i32
    %c0_i32_1 = arith.constant 0 : i32
    return %arg0, %c0_i32, %c0_i32_0 : i32, i32, i32
  }
  func.func @transform_1(%arg0: i32) -> (i32, i32, i32) {
    %c0_i32 = arith.constant 0 : i32
    %c0_i32_0 = arith.constant 0 : i32
    %c0_i32_1 = arith.constant 0 : i32
    %c0_i32_2 = arith.constant 0 : i32
    return %c0_i32, %c0_i32_0, %c0_i32_1 : i32, i32, i32
  }
  func.func @transform_2(%arg0: i32) -> (i32, i32, i32) {
    %c0_i32 = arith.constant 0 : i32
    %c0_i32_0 = arith.constant 0 : i32
    %c0_i32_1 = arith.constant 0 : i32
    %c0_i32_2 = arith.constant 0 : i32
    return %c0_i32, %c0_i32_0, %c0_i32_1 : i32, i32, i32
  }
  func.func @transform_3(%arg0: i32) -> (i32, i32, i32) {
    %c0_i32 = arith.constant 0 : i32
    %c0_i32_0 = arith.constant 0 : i32
    %c0_i32_1 = arith.constant 0 : i32
    %c0_i32_2 = arith.constant 0 : i32
    return %c0_i32, %c0_i32_0, %c0_i32_1 : i32, i32, i32
  }
  func.func @transform_4(%arg0: i32) -> (i32, i32, i32) {
    %c0_i32 = arith.constant 0 : i32
    %c0_i32_0 = arith.constant 0 : i32
    %c0_i32_1 = arith.constant 0 : i32
    %c0_i32_2 = arith.constant 0 : i32
    return %c0_i32, %c0_i32_0, %c0_i32_1 : i32, i32, i32
  }
  func.func @transform_5(%arg0: i32) -> (i32, i32) {
    %c0_i32 = arith.constant 0 : i32
    %c0_i32_0 = arith.constant 0 : i32
    %c0_i32_1 = arith.constant 0 : i32
    return %c0_i32, %c0_i32_0 : i32, i32
  }
  func.func @transform_6(%arg0: i32) -> i32 {
    %c0_i32 = arith.constant 0 : i32
    %c0_i32_0 = arith.constant 0 : i32
    return %c0_i32 : i32
  }
  func.func @transform_7(%arg0: i32) -> (i32, i32) {
    %c0_i32 = arith.constant 0 : i32
    %c0_i32_0 = arith.constant 0 : i32
    return %arg0, %c0_i32 : i32, i32
  }
}

</mosaic_0001>

<llo_original>
// kernel: tpu_custom_call.1
$region0: #{tpu_custom_call.1}
  #allocation0 [shape = 'u32[]', space=smem, size = 0x4, offset = 0x4, fixed_abs, tag = 'smem constant byte address 0x4 - core index']
  #allocation1 [shape = 'u32[144,128]{1,0:T(1,128)}', space=vmem, size = 0x12000, scoped, tag = 'internal scratch']
  #allocation2 [shape = 'f32[3,8,2,32]{3,2,1,0:T(2,128)}', space=vmem, size = 0x6000, scoped, tag = 'scratch operand']
  %s0 = inlined_call_operand.hbm [shape: f32[2,8,32], index: 0, kind: input, shape index: {}]
  %s1 = inlined_call_operand.hbm [shape: f32[3,32,32], index: 1, kind: input, shape index: {}]
  %s2 = inlined_call_operand.hbm [shape: f32[3,32,32], index: 2, kind: input, shape index: {}]
  %s3 = inlined_call_operand.hbm [shape: f32[3,1,32], index: 3, kind: input, shape index: {}]
  %s4 = inlined_call_operand.hbm [shape: f32[3,1,32], index: 4, kind: input, shape index: {}]
  %s5 = inlined_call_operand.hbm [shape: f32[8,8], index: 5, kind: input, shape index: {}]
  %s6 = inlined_call_operand.hbm [shape: f32[8], index: 6, kind: input, shape index: {}]
  %s7 = inlined_call_operand.hbm [shape: f32[2,256], index: 7, kind: output, shape index: {}]
  %s8 = sld [smem:[#allocation0]]
  $region66: #{tpu_custom_call.1} parent=0
    _
  %s10 = ssub.s32 1, %s8
  %s11 = scalar_select 0, %s10, %s8
  $region1: #{tpu_custom_call.1} parent=0
    #allocation3 [shape = 'u8[8192]{0}', space=vmem, size = 0x2000, scoped, tag = 'input window, operand 0, single buffered']
    #allocation4 [shape = 's32[1]{0}', space=sflag, size = 0x4, scoped, tag = 'scoped memory for tpu_custom_call.1']
    #allocation5 [shape = 's32[1]{0}', space=sflag, size = 0x4, scoped, tag = 'scoped memory for tpu_custom_call.1']
    #allocation6 [shape = 's32[1]{0}', space=sflag, size = 0x4, scoped, tag = 'scoped memory for tpu_custom_call.1']
    #allocation7 [shape = 'u8[49152]{0}', space=vmem, size = 0xc000, scoped, tag = 'input window, operand 1, single buffered']
    #allocation8 [shape = 's32[1]{0}', space=sflag, size = 0x4, scoped, tag = 'scoped memory for tpu_custom_call.1']
    #allocation9 [shape = 'u8[49152]{0}', space=vmem, size = 0xc000, scoped, tag = 'input window, operand 2, single buffered']
    #allocation10 [shape = 'u8[1536]{0}', space=vmem, size = 0x800, scoped, tag = 'input window, operand 3, single buffered']
    #allocation11 [shape = 's32[1]{0}', space=sflag, size = 0x4, scoped, tag = 'scoped memory for tpu_custom_call.1']
    #allocation12 [shape = 'u8[1536]{0}', space=vmem, size = 0x800, scoped, tag = 'input window, operand 4, single buffered']
    #allocation13 [shape = 'u8[4096]{0}', space=smem, size = 0x1000, scoped, tag = 'input window, operand 5, single buffered']
    #allocation14 [shape = 'u8[512]{0}', space=smem, size = 0x200, scoped, tag = 'input window, operand 6, single buffered']
    #allocation15 [shape = 's32[1]{0}', space=sflag, size = 0x4, scoped, tag = 'scoped memory for tpu_custom_call.1']
    #allocation16 [shape = 'u8[2048]{0}', space=vmem, size = 0x800, scoped, tag = 'output window, operand 0, single buffered']
    %12 = vsyncpa [#allocation4], 0
    %13 = vsyncpa [#allocation8], 0
    %14 = vsyncpa [#allocation11], 0
    %15 = vsyncpa [#allocation6], 0
    %16 = vsyncpa [#allocation15], 0
    %17 = vsyncpa [#allocation5], 0
    // Predicated region
    $region2: #{tpu_custom_call.1} parent=1 // pred_check
      _
    $region3: #{tpu_custom_call.1} parent=1 // pred_check_branch
      %19 = sbr.rel (0) target = $region5
    $region4: #{tpu_custom_call.1} parent=1 // pred_region
      %s21 = ssub.s32 256, 256
      %22 = vsyncadd [#allocation4], %s21
      %s23 = sshll.u32 [#allocation3], 4
      %s24 = int_to_ptr.vmem [resolvable:$true] %s23
      %29 = dma.hbm_to_vmem [thread:$0]  %s0, 256, %s24, [#allocation4], 128, 128, 8
    $region5: #{tpu_custom_call.1} parent=1 // pred_fallthru
      _
    // Predicated region
    $region6: #{tpu_custom_call.1} parent=1 // pred_check
      _
    $region7: #{tpu_custom_call.1} parent=1 // pred_check_branch
      %31 = sbr.rel (0) target = $region9
    $region8: #{tpu_custom_call.1} parent=1 // pred_region
      %s33 = ssub.s32 1536, 1536
      %34 = vsyncadd [#allocation8], %s33
      %s35 = sshll.u32 [#allocation7], 4
      %s36 = int_to_ptr.vmem [resolvable:$true] %s35
      %41 = dma.hbm_to_vmem [thread:$0]  %s1, 1536, %s36, [#allocation8], 128, 128, 8
    $region9: #{tpu_custom_call.1} parent=1 // pred_fallthru
      _
    // Predicated region
    $region10: #{tpu_custom_call.1} parent=1 // pred_check
      _
    $region11: #{tpu_custom_call.1} parent=1 // pred_check_branch
      %43 = sbr.rel (0) target = $region13
    $region12: #{tpu_custom_call.1} parent=1 // pred_region
      %s45 = ssub.s32 1536, 1536
      %46 = vsyncadd [#allocation8], %s45
      %s47 = sshll.u32 [#allocation9], 4
      %s48 = int_to_ptr.vmem [resolvable:$true] %s47
      %53 = dma.hbm_to_vmem [thread:$0]  %s2, 1536, %s48, [#allocation8], 128, 128, 8
    $region13: #{tpu_custom_call.1} parent=1 // pred_fallthru
      _
    // Predicated region
    $region14: #{tpu_custom_call.1} parent=1 // pred_check
      _
    $region15: #{tpu_custom_call.1} parent=1 // pred_check_branch
      %55 = sbr.rel (0) target = $region17
    $region16: #{tpu_custom_call.1} parent=1 // pred_region
      %s57 = ssub.s32 48, 48
      %58 = vsyncadd [#allocation11], %s57
      %s59 = sshll.u32 [#allocation10], 4
      %s60 = int_to_ptr.vmem [resolvable:$true] %s59
      %65 = dma.hbm_to_vmem [thread:$0]  %s3, 48, %s60, [#allocation11], 16, 16, 1
    $region17: #{tpu_custom_call.1} parent=1 // pred_fallthru
      _
    // Predicated region
    $region18: #{tpu_custom_call.1} parent=1 // pred_check
      _
    $region19: #{tpu_custom_call.1} parent=1 // pred_check_branch
      %67 = sbr.rel (0) target = $region21
    $region20: #{tpu_custom_call.1} parent=1 // pred_region
      %s69 = ssub.s32 48, 48
      %70 = vsyncadd [#allocation11], %s69
      %s71 = sshll.u32 [#allocation12], 4
      %s72 = int_to_ptr.vmem [resolvable:$true] %s71
      %77 = dma.hbm_to_vmem [thread:$0]  %s4, 48, %s72, [#allocation11], 16, 16, 1
    $region21: #{tpu_custom_call.1} parent=1 // pred_fallthru
      _
    // Predicated region
    $region22: #{tpu_custom_call.1} parent=1 // pred_check
      _
    $region23: #{tpu_custom_call.1} parent=1 // pred_check_branch
      %79 = sbr.rel (0) target = $region25
    $region24: #{tpu_custom_call.1} parent=1 // pred_region
      %s81 = ssub.s32 128, 128
      %82 = vsyncadd [#allocation6], %s81
      %85 = dma.hbm_to_smem %s5, 128, [#allocation13], [#allocation6]
    $region25: #{tpu_custom_call.1} parent=1 // pred_fallthru
      _
    // Predicated region
    $region26: #{tpu_custom_call.1} parent=1 // pred_check
      _
    $region27: #{tpu_custom_call.1} parent=1 // pred_check_branch
      %87 = sbr.rel (0) target = $region29
    $region28: #{tpu_custom_call.1} parent=1 // pred_region
      %s89 = ssub.s32 16, 16
      %90 = vsyncadd [#allocation15], %s89
      %93 = dma.hbm_to_smem %s6, 16, [#allocation14], [#allocation15]
    $region29: #{tpu_custom_call.1} parent=1 // pred_fallthru
      _
    // Predicated region
    $region30: #{tpu_custom_call.1} parent=1 // pred_check
      _
    $region31: #{tpu_custom_call.1} parent=1 // pred_check_branch
      %95 = sbr.rel (0) target = $region33
    $region32: #{tpu_custom_call.1} parent=1 // pred_region
      %96 = dma.done [#allocation4], 256
    $region33: #{tpu_custom_call.1} parent=1 // pred_fallthru
      _
    // Predicated region
    $region34: #{tpu_custom_call.1} parent=1 // pred_check
      _
    $region35: #{tpu_custom_call.1} parent=1 // pred_check_branch
      %98 = sbr.rel (0) target = $region37
    $region36: #{tpu_custom_call.1} parent=1 // pred_region
      %99 = dma.done [#allocation8], 1536
    $region37: #{tpu_custom_call.1} parent=1 // pred_fallthru
      _
    // Predicated region
    $region38: #{tpu_custom_call.1} parent=1 // pred_check
      _
    $region39: #{tpu_custom_call.1} parent=1 // pred_check_branch
      %101 = sbr.rel (0) target = $region41
    $region40: #{tpu_custom_call.1} parent=1 // pred_region
      %102 = dma.done [#allocation8], 1536
    $region41: #{tpu_custom_call.1} parent=1 // pred_fallthru
      _
    // Predicated region
    $region42: #{tpu_custom_call.1} parent=1 // pred_check
      _
    $region43: #{tpu_custom_call.1} parent=1 // pred_check_branch
      %104 = sbr.rel (0) target = $region45
    $region44: #{tpu_custom_call.1} parent=1 // pred_region
      %105 = dma.done [#allocation11], 48
    $region45: #{tpu_custom_call.1} parent=1 // pred_fallthru
      _
    // Predicated region
    $region46: #{tpu_custom_call.1} parent=1 // pred_check
      _
    $region47: #{tpu_custom_call.1} parent=1 // pred_check_branch
      %107 = sbr.rel (0) target = $region49
    $region48: #{tpu_custom_call.1} parent=1 // pred_region
      %108 = dma.done [#allocation11], 48
    $region49: #{tpu_custom_call.1} parent=1 // pred_fallthru
      _
    // Predicated region
    $region50: #{tpu_custom_call.1} parent=1 // pred_check
      _
    $region51: #{tpu_custom_call.1} parent=1 // pred_check_branch
      %110 = sbr.rel (0) target = $region53
    $region52: #{tpu_custom_call.1} parent=1 // pred_region
      %111 = dma.done [#allocation6], 128
    $region53: #{tpu_custom_call.1} parent=1 // pred_fallthru
      _
    // Predicated region
    $region54: #{tpu_custom_call.1} parent=1 // pred_check
      _
    $region55: #{tpu_custom_call.1} parent=1 // pred_check_branch
      %113 = sbr.rel (0) target = $region57
    $region56: #{tpu_custom_call.1} parent=1 // pred_region
      %114 = dma.done [#allocation15], 16
    $region57: #{tpu_custom_call.1} parent=1 // pred_fallthru
      _
    %115 = sfence
    %v116 = vld [vmem:[#allocation3] sm:$0xff]
    %v117 = vld [vmem:[#allocation3 + $0x8] sm:$0xff]
    %v118 = vcombine.high %v116, 0.0
    %v120 = vunpack.c.l.s4 1983009808
    %v121 = vunpack.c.0.s8 %v120
    %v122 = vlaneseq
    %v123 = vshrl.u32 %v122, 7
    %v124 = vsub.s32 %v121, %v123
    %v125 = vrot.slane %v116, %v124
    %v127 = vunpack.c.l.s4 1983009808
    %v128 = vunpack.c.0.s8 %v127
    %v129 = vlaneseq
    %v130 = vshrl.u32 %v129, 7
    %v131 = vsub.s32 %v128, %v130
    %v132 = vrot.slane %v118, %v131
    %v133 = vcombine.high %v117, 0.0
    %v135 = vunpack.c.l.s4 1983009808
    %v136 = vunpack.c.0.s8 %v135
    %v137 = vlaneseq
    %v138 = vshrl.u32 %v137, 7
    %v139 = vsub.s32 %v136, %v138
    %v140 = vrot.slane %v117, %v139
    %v142 = vunpack.c.l.s4 1983009808
    %v143 = vunpack.c.0.s8 %v142
    %v144 = vlaneseq
    %v145 = vshrl.u32 %v144, 7
    %v146 = vsub.s32 %v143, %v145
    %v147 = vrot.slane %v133, %v146
    %v148 = vcombine.low %v125, %v140
    %v149 = vcombine.high %v125, %v140
    %v151 = vunpack.c.l.s4 1934713408
    %v152 = vunpack.c.0.s8 %v151
    %v153 = vlaneseq
    %v154 = vshrl.u32 %v153, 7
    %v155 = vsub.s32 %v152, %v154
    %v156 = vrot.slane %v148, %v155
    %v158 = vunpack.c.l.s4 1934713408
    %v159 = vunpack.c.0.s8 %v158
    %v160 = vlaneseq
    %v161 = vshrl.u32 %v160, 7
    %v162 = vsub.s32 %v159, %v161
    %v163 = vrot.slane %v149, %v162
    %v164 = vcombine.low %v132, %v147
    %v165 = vcombine.high %v132, %v147
    %v167 = vunpack.c.l.s4 1934713408
    %v168 = vunpack.c.0.s8 %v167
    %v169 = vlaneseq
    %v170 = vshrl.u32 %v169, 7
    %v171 = vsub.s32 %v168, %v170
    %v172 = vrot.slane %v164, %v171
    %v174 = vunpack.c.l.s4 1934713408
    %v175 = vunpack.c.0.s8 %v174
    %v176 = vlaneseq
    %v177 = vshrl.u32 %v176, 7
    %v178 = vsub.s32 %v175, %v177
    %v179 = vrot.slane %v165, %v178
    %v180 = vcombine.high %v156, 0.0
    %v181 = vcombine.high %v163, 0.0
    %v182 = vcombine.high %v172, 0.0
    %v183 = vcombine.high %v179, 0.0
    %v184 = vld [vmem:[#allocation7] sm:$0xff]
    %v185 = vld [vmem:[#allocation7 + $0x8] sm:$0xff]
    %v186 = vld [vmem:[#allocation7 + $0x10] sm:$0xff]
    %v187 = vld [vmem:[#allocation7 + $0x18] sm:$0xff]
    %v188 = vld [vmem:[#allocation10] sm:$0x1]
    %v190 = vlaneseq
    %v191 = vshrl.u32 %v190, 7
    %v192 = vsub.s32 0, %v191
    %v193 = vrot.slane %v188, %v192
    %v202 = vcombine.low %v156, %v180
    %v203 = vcombine.low %v163, %v181
    %v205 = vunpack.c.l.s4 1983009808
    %v206 = vunpack.c.0.s8 %v205
    %v207 = vlaneseq
    %v208 = vshrl.u32 %v207, 7
    %v209 = vsub.s32 %v206, %v208
    %v210 = vrot.slane %v202, %v209
    %v212 = vunpack.c.l.s4 1983009808
    %v213 = vunpack.c.0.s8 %v212
    %v214 = vlaneseq
    %v215 = vshrl.u32 %v214, 7
    %v216 = vsub.s32 %v213, %v215
    %v217 = vrot.slane %v203, %v216
    %v218 = vcombine.low %v210, %v217
    %v219 = vcombine.low %v172, %v182
    %v220 = vcombine.low %v179, %v183
    %v222 = vunpack.c.l.s4 1983009808
    %v223 = vunpack.c.0.s8 %v222
    %v224 = vlaneseq
    %v225 = vshrl.u32 %v224, 7
    %v226 = vsub.s32 %v223, %v225
    %v227 = vrot.slane %v219, %v226
    %v229 = vunpack.c.l.s4 1983009808
    %v230 = vunpack.c.0.s8 %v229
    %v231 = vlaneseq
    %v232 = vshrl.u32 %v231, 7
    %v233 = vsub.s32 %v230, %v232
    %v234 = vrot.slane %v220, %v233
    %v235 = vcombine.low %v227, %v234
    %v236 = vcombine.low %v193, %v193
    %v238 = vunpack.c.l.s4 1983009808
    %v239 = vunpack.c.0.s8 %v238
    %v240 = vlaneseq
    %v241 = vshrl.u32 %v240, 7
    %v242 = vsub.s32 %v239, %v241
    %v243 = vrot.slane %v236, %v242
    %v244 = vcombine.low %v243, %v243
    %vm246 = vcmask 261120
    %v247 = vsel %vm246, %v218, 0
    %v249 = vsel %vm246, %v235, 0
    %251 = vmatprep.subr.mxu0 0.0
    %252 = vmatpush1.msra.mxu0 %v184
    %253 = vmatprep.subr.mxu0 0.0
    %254 = vmatpush1.msra.mxu0 %v185
    %255 = vmatprep.subr.mxu0 0.0
    %256 = vmatpush1.msra.mxu0 %v186
    %257 = vmatprep.subr.mxu0 0.0
    %258 = vmatpush1.msra.mxu0 %v187
    %259 = vmatprep.subr.mxu0 0.0
    %260 = vmatpush1.msra.mxu0 0.0
    %261 = vmatprep.subr.mxu0 0.0
    %262 = vmatpush1.msra.mxu0 0.0
    %263 = vmatprep.subr.mxu0 0.0
    %264 = vmatpush1.msra.mxu0 0.0
    %265 = vmatprep.subr.mxu0 0.0
    %266 = vmatpush1.msra.mxu0 0.0
    %267 = vmatprep.subr.mxu0 0.0
    %268 = vmatpush1.msra.mxu0 0.0
    %269 = vmatprep.subr.mxu0 0.0
    %270 = vmatpush1.msra.mxu0 0.0
    %271 = vmatprep.subr.mxu0 0.0
    %272 = vmatpush1.msra.mxu0 0.0
    %273 = vmatprep.subr.mxu0 0.0
    %274 = vmatpush1.msra.mxu0 0.0
    %275 = vmatprep.subr.mxu0 0.0
    %276 = vmatpush1.msra.mxu0 0.0
    %277 = vmatprep.subr.mxu0 0.0
    %278 = vmatpush1.msra.mxu0 0.0
    %279 = vmatprep.subr.mxu0 0.0
    %280 = vmatpush1.msra.mxu0 0.0
    %281 = vmatprep.subr.mxu0 0.0
    %282 = vmatpush1.msra.mxu0 0.0
    %283 = vmatprep.subr.mxu0 0.0
    %284 = vmatpush1.msra.mxu0 0.0
    %285 = vmatprep.subr.mxu0 0.0
    %286 = vmatpush1.msra.mxu0 0.0
    %287 = vmatprep.subr.mxu0 0.0
    %288 = vmatpush1.msra.mxu0 0.0
    %289 = vmatprep.subr.mxu0 0.0
    %290 = vmatpush1.msra.mxu0 0.0
    %291 = vmatprep.subr.mxu0 0.0
    %292 = vmatpush1.msra.mxu0 0.0
    %293 = vmatprep.subr.mxu0 0.0
    %294 = vmatpush1.msra.mxu0 0.0
    %295 = vmatprep.subr.mxu0 0.0
    %296 = vmatpush1.msra.mxu0 0.0
    %297 = vmatprep.subr.mxu0 0.0
    %298 = vmatpush1.msra.mxu0 0.0
    %299 = vmatprep.subr.mxu0 0.0
    %300 = vmatpush1.msra.mxu0 0.0
    %301 = vmatprep.subr.mxu0 0.0
    %302 = vmatpush1.msra.mxu0 0.0
    %303 = vmatprep.subr.mxu0 0.0
    %304 = vmatpush1.msra.mxu0 0.0
    %305 = vmatprep.subr.mxu0 0.0
    %306 = vmatpush1.msra.mxu0 0.0
    %307 = vmatprep.subr.mxu0 0.0
    %308 = vmatpush1.msra.mxu0 0.0
    %309 = vmatprep.subr.mxu0 0.0
    %310 = vmatpush1.msra.mxu0 0.0
    %311 = vmatprep.subr.mxu0 0.0
    %312 = vmatpush1.msra.mxu0 0.0
    %313 = vmatprep.subr.mxu0 0.0
    %314 = vmatpush1.msra.mxu0 0.0
    %315 = vmatprep.mubr.f32.mxu0 0.0
    %316 = vmatmul.mubr.f32.gmra.mrb[0].mxu0 %v247
    %v317 = vpop.f32.mrb[0].mxu0
    %v318 = vadd.f32 %v244, %v317
    %v319 = vpop.f32.mrb[0].mxu0
    %320 = vmatprep.mubr.f32.mxu0 0.0
    %321 = vmatmul.mubr.f32.gmra.mrb[0].mxu0 %v249
    %v322 = vpop.f32.mrb[0].mxu0
    %v323 = vadd.f32 %v244, %v322
    %v324 = vpop.f32.mrb[0].mxu0
    %325 = vdwg.mxu0
    %v328 = vcombine.high %v318, %v318
    %v330 = vunpack.c.l.s4 1983009808
    %v331 = vunpack.c.0.s8 %v330
    %v332 = vlaneseq
    %v333 = vshrl.u32 %v332, 7
    %v334 = vsub.s32 %v331, %v333
    %v335 = vrot.slane %v318, %v334
    %v337 = vunpack.c.l.s4 1983009808
    %v338 = vunpack.c.0.s8 %v337
    %v339 = vlaneseq
    %v340 = vshrl.u32 %v339, 7
    %v341 = vsub.s32 %v338, %v340
    %v342 = vrot.slane %v328, %v341
    %v343 = vcombine.high %v335, %v335
    %v344 = vcombine.high %v342, %v342
    %v345 = vcombine.high %v323, %v323
    %v347 = vunpack.c.l.s4 1983009808
    %v348 = vunpack.c.0.s8 %v347
    %v349 = vlaneseq
    %v350 = vshrl.u32 %v349, 7
    %v351 = vsub.s32 %v348, %v350
    %v352 = vrot.slane %v323, %v351
    %v354 = vunpack.c.l.s4 1983009808
    %v355 = vunpack.c.0.s8 %v354
    %v356 = vlaneseq
    %v357 = vshrl.u32 %v356, 7
    %v358 = vsub.s32 %v355, %v357
    %v359 = vrot.slane %v345, %v358
    %v360 = vcombine.high %v352, %v352
    %v361 = vcombine.high %v359, %v359
    %vm370 = vcmask 254976
    %371 = vst.msk [vmem:[#allocation2] sm:$0x3] %vm370, %v335
    %372 = vst.msk [vmem:[#allocation2 + $0x2] sm:$0x3] %vm370, %v343
    %373 = vst.msk [vmem:[#allocation2 + $0x4] sm:$0x3] %vm370, %v342
    %374 = vst.msk [vmem:[#allocation2 + $0x6] sm:$0x3] %vm370, %v344
    %375 = vst.msk [vmem:[#allocation2 + $0x8] sm:$0x3] %vm370, %v352
    %376 = vst.msk [vmem:[#allocation2 + $0xa] sm:$0x3] %vm370, %v360
    %377 = vst.msk [vmem:[#allocation2 + $0xc] sm:$0x3] %vm370, %v359
    %378 = vst.msk [vmem:[#allocation2 + $0xe] sm:$0x3] %vm370, %v361
    %s379 = scalar_lea.vmem [#allocation7], 32
    %v380 = vld [vmem:[%s379] sm:$0xff]
    %v381 = vld [vmem:[%s379 + $0x8] sm:$0xff]
    %v382 = vld [vmem:[%s379 + $0x10] sm:$0xff]
    %v383 = vld [vmem:[%s379 + $0x18] sm:$0xff]
    %s384 = scalar_lea.vmem [#allocation10], 1
    %v385 = vld [vmem:[%s384] sm:$0x1]
    %v387 = vlaneseq
    %v388 = vshrl.u32 %v387, 7
    %v389 = vsub.s32 0, %v388
    %v390 = vrot.slane %v385, %v389
    %v391 = vcombine.low %v390, %v390
    %v393 = vunpack.c.l.s4 1983009808
    %v394 = vunpack.c.0.s8 %v393
    %v395 = vlaneseq
    %v396 = vshrl.u32 %v395, 7
    %v397 = vsub.s32 %v394, %v396
    %v398 = vrot.slane %v391, %v397
    %v399 = vcombine.low %v398, %v398
    %401 = vmatprep.subr.mxu0 0.0
    %402 = vmatpush1.msra.mxu0 %v380
    %403 = vmatprep.subr.mxu0 0.0
    %404 = vmatpush1.msra.mxu0 %v381
    %405 = vmatprep.subr.mxu0 0.0
    %406 = vmatpush1.msra.mxu0 %v382
    %407 = vmatprep.subr.mxu0 0.0
    %408 = vmatpush1.msra.mxu0 %v383
    %409 = vmatprep.subr.mxu0 0.0
    %410 = vmatpush1.msra.mxu0 0.0
    %411 = vmatprep.subr.mxu0 0.0
    %412 = vmatpush1.msra.mxu0 0.0
    %413 = vmatprep.subr.mxu0 0.0
    %414 = vmatpush1.msra.mxu0 0.0
    %415 = vmatprep.subr.mxu0 0.0
    %416 = vmatpush1.msra.mxu0 0.0
    %417 = vmatprep.subr.mxu0 0.0
    %418 = vmatpush1.msra.mxu0 0.0
    %419 = vmatprep.subr.mxu0 0.0
    %420 = vmatpush1.msra.mxu0 0.0
    %421 = vmatprep.subr.mxu0 0.0
    %422 = vmatpush1.msra.mxu0 0.0
    %423 = vmatprep.subr.mxu0 0.0
    %424 = vmatpush1.msra.mxu0 0.0
    %425 = vmatprep.subr.mxu0 0.0
    %426 = vmatpush1.msra.mxu0 0.0
    %427 = vmatprep.subr.mxu0 0.0
    %428 = vmatpush1.msra.mxu0 0.0
    %429 = vmatprep.subr.mxu0 0.0
    %430 = vmatpush1.msra.mxu0 0.0
    %431 = vmatprep.subr.mxu0 0.0
    %432 = vmatpush1.msra.mxu0 0.0
    %433 = vmatprep.subr.mxu0 0.0
    %434 = vmatpush1.msra.mxu0 0.0
    %435 = vmatprep.subr.mxu0 0.0
    %436 = vmatpush1.msra.mxu0 0.0
    %437 = vmatprep.subr.mxu0 0.0
    %438 = vmatpush1.msra.mxu0 0.0
    %439 = vmatprep.subr.mxu0 0.0
    %440 = vmatpush1.msra.mxu0 0.0
    %441 = vmatprep.subr.mxu0 0.0
    %442 = vmatpush1.msra.mxu0 0.0
    %443 = vmatprep.subr.mxu0 0.0
    %444 = vmatpush1.msra.mxu0 0.0
    %445 = vmatprep.subr.mxu0 0.0
    %446 = vmatpush1.msra.mxu0 0.0
    %447 = vmatprep.subr.mxu0 0.0
    %448 = vmatpush1.msra.mxu0 0.0
    %449 = vmatprep.subr.mxu0 0.0
    %450 = vmatpush1.msra.mxu0 0.0
    %451 = vmatprep.subr.mxu0 0.0
    %452 = vmatpush1.msra.mxu0 0.0
    %453 = vmatprep.subr.mxu0 0.0
    %454 = vmatpush1.msra.mxu0 0.0
    %455 = vmatprep.subr.mxu0 0.0
    %456 = vmatpush1.msra.mxu0 0.0
    %457 = vmatprep.subr.mxu0 0.0
    %458 = vmatpush1.msra.mxu0 0.0
    %459 = vmatprep.subr.mxu0 0.0
    %460 = vmatpush1.msra.mxu0 0.0
    %461 = vmatprep.subr.mxu0 0.0
    %462 = vmatpush1.msra.mxu0 0.0
    %463 = vmatprep.subr.mxu0 0.0
    %464 = vmatpush1.msra.mxu0 0.0
    %465 = vmatprep.mubr.f32.mxu0 0.0
    %466 = vmatmul.mubr.f32.gmra.mrb[0].mxu0 %v247
    %v467 = vpop.f32.mrb[0].mxu0
    %v468 = vadd.f32 %v399, %v467
    %v469 = vpop.f32.mrb[0].mxu0
    %470 = vmatprep.mubr.f32.mxu0 0.0
    %471 = vmatmul.mubr.f32.gmra.mrb[0].mxu0 %v249
    %v472 = vpop.f32.mrb[0].mxu0
    %v473 = vadd.f32 %v399, %v472
    %v474 = vpop.f32.mrb[0].mxu0
    %475 = vdwg.mxu0
    %v478 = vcombine.high %v468, %v468
    %v480 = vunpack.c.l.s4 1983009808
    %v481 = vunpack.c.0.s8 %v480
    %v482 = vlaneseq
    %v483 = vshrl.u32 %v482, 7
    %v484 = vsub.s32 %v481, %v483
    %v485 = vrot.slane %v468, %v484
    %v487 = vunpack.c.l.s4 1983009808
    %v488 = vunpack.c.0.s8 %v487
    %v489 = vlaneseq
    %v490 = vshrl.u32 %v489, 7
    %v491 = vsub.s32 %v488, %v490
    %v492 = vrot.slane %v478, %v491
    %v493 = vcombine.high %v485, %v485
    %v494 = vcombine.high %v492, %v492
    %v495 = vcombine.high %v473, %v473
    %v497 = vunpack.c.l.s4 1983009808
    %v498 = vunpack.c.0.s8 %v497
    %v499 = vlaneseq
    %v500 = vshrl.u32 %v499, 7
    %v501 = vsub.s32 %v498, %v500
    %v502 = vrot.slane %v473, %v501
    %v504 = vunpack.c.l.s4 1983009808
    %v505 = vunpack.c.0.s8 %v504
    %v506 = vlaneseq
    %v507 = vshrl.u32 %v506, 7
    %v508 = vsub.s32 %v505, %v507
    %v509 = vrot.slane %v495, %v508
    %v510 = vcombine.high %v502, %v502
    %v511 = vcombine.high %v509, %v509
    %s520 = scalar_lea.vmem [#allocation2], 16
    %521 = vst.msk [vmem:[%s520] sm:$0x3] %vm370, %v485
    %522 = vst.msk [vmem:[%s520 + $0x2] sm:$0x3] %vm370, %v493
    %523 = vst.msk [vmem:[%s520 + $0x4] sm:$0x3] %vm370, %v492
    %524 = vst.msk [vmem:[%s520 + $0x6] sm:$0x3] %vm370, %v494
    %525 = vst.msk [vmem:[%s520 + $0x8] sm:$0x3] %vm370, %v502
    %526 = vst.msk [vmem:[%s520 + $0xa] sm:$0x3] %vm370, %v510
    %527 = vst.msk [vmem:[%s520 + $0xc] sm:$0x3] %vm370, %v509
    %528 = vst.msk [vmem:[%s520 + $0xe] sm:$0x3] %vm370, %v511
    %s529 = scalar_lea.vmem [#allocation7], 64
    %v530 = vld [vmem:[%s529] sm:$0xff]
    %v531 = vld [vmem:[%s529 + $0x8] sm:$0xff]
    %v532 = vld [vmem:[%s529 + $0x10] sm:$0xff]
    %v533 = vld [vmem:[%s529 + $0x18] sm:$0xff]
    %s534 = scalar_lea.vmem [#allocation10], 2
    %v535 = vld [vmem:[%s534] sm:$0x1]
    %v537 = vlaneseq
    %v538 = vshrl.u32 %v537, 7
    %v539 = vsub.s32 0, %v538
    %v540 = vrot.slane %v535, %v539
    %v541 = vcombine.low %v540, %v540
    %v543 = vunpack.c.l.s4 1983009808
    %v544 = vunpack.c.0.s8 %v543
    %v545 = vlaneseq
    %v546 = vshrl.u32 %v545, 7
    %v547 = vsub.s32 %v544, %v546
    %v548 = vrot.slane %v541, %v547
    %v549 = vcombine.low %v548, %v548
    %551 = vmatprep.subr.mxu0 0.0
    %552 = vmatpush1.msra.mxu0 %v530
    %553 = vmatprep.subr.mxu0 0.0
    %554 = vmatpush1.msra.mxu0 %v531
    %555 = vmatprep.subr.mxu0 0.0
    %556 = vmatpush1.msra.mxu0 %v532
    %557 = vmatprep.subr.mxu0 0.0
    %558 = vmatpush1.msra.mxu0 %v533
    %559 = vmatprep.subr.mxu0 0.0
    %560 = vmatpush1.msra.mxu0 0.0
    %561 = vmatprep.subr.mxu0 0.0
    %562 = vmatpush1.msra.mxu0 0.0
    %563 = vmatprep.subr.mxu0 0.0
    %564 = vmatpush1.msra.mxu0 0.0
    %565 = vmatprep.subr.mxu0 0.0
    %566 = vmatpush1.msra.mxu0 0.0
    %567 = vmatprep.subr.mxu0 0.0
    %568 = vmatpush1.msra.mxu0 0.0
    %569 = vmatprep.subr.mxu0 0.0
    %570 = vmatpush1.msra.mxu0 0.0
    %571 = vmatprep.subr.mxu0 0.0
    %572 = vmatpush1.msra.mxu0 0.0
    %573 = vmatprep.subr.mxu0 0.0
    %574 = vmatpush1.msra.mxu0 0.0
    %575 = vmatprep.subr.mxu0 0.0
    %576 = vmatpush1.msra.mxu0 0.0
    %577 = vmatprep.subr.mxu0 0.0
    %578 = vmatpush1.msra.mxu0 0.0
    %579 = vmatprep.subr.mxu0 0.0
    %580 = vmatpush1.msra.mxu0 0.0
    %581 = vmatprep.subr.mxu0 0.0
    %582 = vmatpush1.msra.mxu0 0.0
    %583 = vmatprep.subr.mxu0 0.0
    %584 = vmatpush1.msra.mxu0 0.0
    %585 = vmatprep.subr.mxu0 0.0
    %586 = vmatpush1.msra.mxu0 0.0
    %587 = vmatprep.subr.mxu0 0.0
    %588 = vmatpush1.msra.mxu0 0.0
    %589 = vmatprep.subr.mxu0 0.0
    %590 = vmatpush1.msra.mxu0 0.0
    %591 = vmatprep.subr.mxu0 0.0
    %592 = vmatpush1.msra.mxu0 0.0
    %593 = vmatprep.subr.mxu0 0.0
    %594 = vmatpush1.msra.mxu0 0.0
    %595 = vmatprep.subr.mxu0 0.0
    %596 = vmatpush1.msra.mxu0 0.0
    %597 = vmatprep.subr.mxu0 0.0
    %598 = vmatpush1.msra.mxu0 0.0
    %599 = vmatprep.subr.mxu0 0.0
    %600 = vmatpush1.msra.mxu0 0.0
    %601 = vmatprep.subr.mxu0 0.0
    %602 = vmatpush1.msra.mxu0 0.0
    %603 = vmatprep.subr.mxu0 0.0
    %604 = vmatpush1.msra.mxu0 0.0
    %605 = vmatprep.subr.mxu0 0.0
    %606 = vmatpush1.msra.mxu0 0.0
    %607 = vmatprep.subr.mxu0 0.0
    %608 = vmatpush1.msra.mxu0 0.0
    %609 = vmatprep.subr.mxu0 0.0
    %610 = vmatpush1.msra.mxu0 0.0
    %611 = vmatprep.subr.mxu0 0.0
    %612 = vmatpush1.msra.mxu0 0.0
    %613 = vmatprep.subr.mxu0 0.0
    %614 = vmatpush1.msra.mxu0 0.0
    %615 = vmatprep.mubr.f32.mxu0 0.0
    %616 = vmatmul.mubr.f32.gmra.mrb[0].mxu0 %v247
    %v617 = vpop.f32.mrb[0].mxu0
    %v618 = vadd.f32 %v549, %v617
    %v619 = vpop.f32.mrb[0].mxu0
    %620 = vmatprep.mubr.f32.mxu0 0.0
    %621 = vmatmul.mubr.f32.gmra.mrb[0].mxu0 %v249
    %v622 = vpop.f32.mrb[0].mxu0
    %v623 = vadd.f32 %v549, %v622
    %v624 = vpop.f32.mrb[0].mxu0
    %625 = vdwg.mxu0
    %v628 = vcombine.high %v618, %v618
    %v630 = vunpack.c.l.s4 1983009808
    %v631 = vunpack.c.0.s8 %v630
    %v632 = vlaneseq
    %v633 = vshrl.u32 %v632, 7
    %v634 = vsub.s32 %v631, %v633
    %v635 = vrot.slane %v618, %v634
    %v637 = vunpack.c.l.s4 1983009808
    %v638 = vunpack.c.0.s8 %v637
    %v639 = vlaneseq
    %v640 = vshrl.u32 %v639, 7
    %v641 = vsub.s32 %v638, %v640
    %v642 = vrot.slane %v628, %v641
    %v643 = vcombine.high %v635, %v635
    %v644 = vcombine.high %v642, %v642
    %v645 = vcombine.high %v623, %v623
    %v647 = vunpack.c.l.s4 1983009808
    %v648 = vunpack.c.0.s8 %v647
    %v649 = vlaneseq
    %v650 = vshrl.u32 %v649, 7
    %v651 = vsub.s32 %v648, %v650
    %v652 = vrot.slane %v623, %v651
    %v654 = vunpack.c.l.s4 1983009808
    %v655 = vunpack.c.0.s8 %v654
    %v656 = vlaneseq
    %v657 = vshrl.u32 %v656, 7
    %v658 = vsub.s32 %v655, %v657
    %v659 = vrot.slane %v645, %v658
    %v660 = vcombine.high %v652, %v652
    %v661 = vcombine.high %v659, %v659
    %s670 = scalar_lea.vmem [#allocation2], 32
    %671 = vst.msk [vmem:[%s670] sm:$0x3] %vm370, %v635
    %672 = vst.msk [vmem:[%s670 + $0x2] sm:$0x3] %vm370, %v643
    %673 = vst.msk [vmem:[%s670 + $0x4] sm:$0x3] %vm370, %v642
    %674 = vst.msk [vmem:[%s670 + $0x6] sm:$0x3] %vm370, %v644
    %675 = vst.msk [vmem:[%s670 + $0x8] sm:$0x3] %vm370, %v652
    %676 = vst.msk [vmem:[%s670 + $0xa] sm:$0x3] %vm370, %v660
    %677 = vst.msk [vmem:[%s670 + $0xc] sm:$0x3] %vm370, %v659
    %678 = vst.msk [vmem:[%s670 + $0xe] sm:$0x3] %vm370, %v661
    %v679 = vld [vmem:[#allocation12] sm:$0x1]
    %s680 = scalar_lea.vmem [#allocation12], 1
    %v681 = vld [vmem:[%s680] sm:$0x1]
    %s682 = scalar_lea.vmem [#allocation12], 2
    %v683 = vld [vmem:[%s682] sm:$0x1]
    %v684 = vld [vmem:[#allocation9] sm:$0xff]
    %v685 = vld [vmem:[#allocation9 + $0x8] sm:$0xff]
    %v686 = vld [vmem:[#allocation9 + $0x10] sm:$0xff]
    %v687 = vld [vmem:[#allocation9 + $0x18] sm:$0xff]
    %v689 = vlaneseq
    %v690 = vshrl.u32 %v689, 7
    %v691 = vsub.s32 0, %v690
    %v692 = vrot.slane %v679, %v691
    %v695 = vsel %vm246, 0.0, 0
    %697 = vmatprep.subr.mxu0 0.0
    %698 = vmatpush1.msra.mxu0 %v684
    %699 = vmatprep.subr.mxu0 0.0
    %700 = vmatpush1.msra.mxu0 %v685
    %701 = vmatprep.subr.mxu0 0.0
    %702 = vmatpush1.msra.mxu0 %v686
    %703 = vmatprep.subr.mxu0 0.0
    %704 = vmatpush1.msra.mxu0 %v687
    %705 = vmatprep.subr.mxu0 0.0
    %706 = vmatpush1.msra.mxu0 0.0
    %707 = vmatprep.subr.mxu0 0.0
    %708 = vmatpush1.msra.mxu0 0.0
    %709 = vmatprep.subr.mxu0 0.0
    %710 = vmatpush1.msra.mxu0 0.0
    %711 = vmatprep.subr.mxu0 0.0
    %712 = vmatpush1.msra.mxu0 0.0
    %713 = vmatprep.subr.mxu0 0.0
    %714 = vmatpush1.msra.mxu0 0.0
    %715 = vmatprep.subr.mxu0 0.0
    %716 = vmatpush1.msra.mxu0 0.0
    %717 = vmatprep.subr.mxu0 0.0
    %718 = vmatpush1.msra.mxu0 0.0
    %719 = vmatprep.subr.mxu0 0.0
    %720 = vmatpush1.msra.mxu0 0.0
    %721 = vmatprep.subr.mxu0 0.0
    %722 = vmatpush1.msra.mxu0 0.0
    %723 = vmatprep.subr.mxu0 0.0
    %724 = vmatpush1.msra.mxu0 0.0
    %725 = vmatprep.subr.mxu0 0.0
    %726 = vmatpush1.msra.mxu0 0.0
    %727 = vmatprep.subr.mxu0 0.0
    %728 = vmatpush1.msra.mxu0 0.0
    %729 = vmatprep.subr.mxu0 0.0
    %730 = vmatpush1.msra.mxu0 0.0
    %731 = vmatprep.subr.mxu0 0.0
    %732 = vmatpush1.msra.mxu0 0.0
    %733 = vmatprep.subr.mxu0 0.0
    %734 = vmatpush1.msra.mxu0 0.0
    %735 = vmatprep.subr.mxu0 0.0
    %736 = vmatpush1.msra.mxu0 0.0
    %737 = vmatprep.subr.mxu0 0.0
    %738 = vmatpush1.msra.mxu0 0.0
    %739 = vmatprep.subr.mxu0 0.0
    %740 = vmatpush1.msra.mxu0 0.0
    %741 = vmatprep.subr.mxu0 0.0
    %742 = vmatpush1.msra.mxu0 0.0
    %743 = vmatprep.subr.mxu0 0.0
    %744 = vmatpush1.msra.mxu0 0.0
    %745 = vmatprep.subr.mxu0 0.0
    %746 = vmatpush1.msra.mxu0 0.0
    %747 = vmatprep.subr.mxu0 0.0
    %748 = vmatpush1.msra.mxu0 0.0
    %749 = vmatprep.subr.mxu0 0.0
    %750 = vmatpush1.msra.mxu0 0.0
    %751 = vmatprep.subr.mxu0 0.0
    %752 = vmatpush1.msra.mxu0 0.0
    %753 = vmatprep.subr.mxu0 0.0
    %754 = vmatpush1.msra.mxu0 0.0
    %755 = vmatprep.subr.mxu0 0.0
    %756 = vmatpush1.msra.mxu0 0.0
    %757 = vmatprep.subr.mxu0 0.0
    %758 = vmatpush1.msra.mxu0 0.0
    %759 = vmatprep.subr.mxu0 0.0
    %760 = vmatpush1.msra.mxu0 0.0
    %761 = vmatprep.mubr.f32.mxu0 0.0
    %762 = vmatmul.mubr.f32.gmra.mrb[0].mxu0 %v695
    %v763 = vpop.f32.mrb[0].mxu0
    %v764 = vadd.f32 %v692, %v763
    %v765 = vpop.f32.mrb[0].mxu0
    %766 = vdwg.mxu0
    %s767 = scalar_lea.vmem [#allocation9], 32
    %v768 = vld [vmem:[%s767] sm:$0xff]
    %v769 = vld [vmem:[%s767 + $0x8] sm:$0xff]
    %v770 = vld [vmem:[%s767 + $0x10] sm:$0xff]
    %v771 = vld [vmem:[%s767 + $0x18] sm:$0xff]
    %v773 = vlaneseq
    %v774 = vshrl.u32 %v773, 7
    %v775 = vsub.s32 0, %v774
    %v776 = vrot.slane %v681, %v775
    %778 = vmatprep.subr.mxu0 0.0
    %779 = vmatpush1.msra.mxu0 %v768
    %780 = vmatprep.subr.mxu0 0.0
    %781 = vmatpush1.msra.mxu0 %v769
    %782 = vmatprep.subr.mxu0 0.0
    %783 = vmatpush1.msra.mxu0 %v770
    %784 = vmatprep.subr.mxu0 0.0
    %785 = vmatpush1.msra.mxu0 %v771
    %786 = vmatprep.subr.mxu0 0.0
    %787 = vmatpush1.msra.mxu0 0.0
    %788 = vmatprep.subr.mxu0 0.0
    %789 = vmatpush1.msra.mxu0 0.0
    %790 = vmatprep.subr.mxu0 0.0
    %791 = vmatpush1.msra.mxu0 0.0
    %792 = vmatprep.subr.mxu0 0.0
    %793 = vmatpush1.msra.mxu0 0.0
    %794 = vmatprep.subr.mxu0 0.0
    %795 = vmatpush1.msra.mxu0 0.0
    %796 = vmatprep.subr.mxu0 0.0
    %797 = vmatpush1.msra.mxu0 0.0
    %798 = vmatprep.subr.mxu0 0.0
    %799 = vmatpush1.msra.mxu0 0.0
    %800 = vmatprep.subr.mxu0 0.0
    %801 = vmatpush1.msra.mxu0 0.0
    %802 = vmatprep.subr.mxu0 0.0
    %803 = vmatpush1.msra.mxu0 0.0
    %804 = vmatprep.subr.mxu0 0.0
    %805 = vmatpush1.msra.mxu0 0.0
    %806 = vmatprep.subr.mxu0 0.0
    %807 = vmatpush1.msra.mxu0 0.0
    %808 = vmatprep.subr.mxu0 0.0
    %809 = vmatpush1.msra.mxu0 0.0
    %810 = vmatprep.subr.mxu0 0.0
    %811 = vmatpush1.msra.mxu0 0.0
    %812 = vmatprep.subr.mxu0 0.0
    %813 = vmatpush1.msra.mxu0 0.0
    %814 = vmatprep.subr.mxu0 0.0
    %815 = vmatpush1.msra.mxu0 0.0
    %816 = vmatprep.subr.mxu0 0.0
    %817 = vmatpush1.msra.mxu0 0.0
    %818 = vmatprep.subr.mxu0 0.0
    %819 = vmatpush1.msra.mxu0 0.0
    %820 = vmatprep.subr.mxu0 0.0
    %821 = vmatpush1.msra.mxu0 0.0
    %822 = vmatprep.subr.mxu0 0.0
    %823 = vmatpush1.msra.mxu0 0.0
    %824 = vmatprep.subr.mxu0 0.0
    %825 = vmatpush1.msra.mxu0 0.0
    %826 = vmatprep.subr.mxu0 0.0
    %827 = vmatpush1.msra.mxu0 0.0
    %828 = vmatprep.subr.mxu0 0.0
    %829 = vmatpush1.msra.mxu0 0.0
    %830 = vmatprep.subr.mxu0 0.0
    %831 = vmatpush1.msra.mxu0 0.0
    %832 = vmatprep.subr.mxu0 0.0
    %833 = vmatpush1.msra.mxu0 0.0
    %834 = vmatprep.subr.mxu0 0.0
    %835 = vmatpush1.msra.mxu0 0.0
    %836 = vmatprep.subr.mxu0 0.0
    %837 = vmatpush1.msra.mxu0 0.0
    %838 = vmatprep.subr.mxu0 0.0
    %839 = vmatpush1.msra.mxu0 0.0
    %840 = vmatprep.subr.mxu0 0.0
    %841 = vmatpush1.msra.mxu0 0.0
    %842 = vmatprep.mubr.f32.mxu0 0.0
    %843 = vmatmul.mubr.f32.gmra.mrb[0].mxu0 %v695
    %v844 = vpop.f32.mrb[0].mxu0
    %v845 = vadd.f32 %v776, %v844
    %v846 = vpop.f32.mrb[0].mxu0
    %847 = vdwg.mxu0
    %s848 = scalar_lea.vmem [#allocation9], 64
    %v849 = vld [vmem:[%s848] sm:$0xff]
    %v850 = vld [vmem:[%s848 + $0x8] sm:$0xff]
    %v851 = vld [vmem:[%s848 + $0x10] sm:$0xff]
    %v852 = vld [vmem:[%s848 + $0x18] sm:$0xff]
    %v854 = vlaneseq
    %v855 = vshrl.u32 %v854, 7
    %v856 = vsub.s32 0, %v855
    %v857 = vrot.slane %v683, %v856
    %859 = vmatprep.subr.mxu0 0.0
    %860 = vmatpush1.msra.mxu0 %v849
    %861 = vmatprep.subr.mxu0 0.0
    %862 = vmatpush1.msra.mxu0 %v850
    %863 = vmatprep.subr.mxu0 0.0
    %864 = vmatpush1.msra.mxu0 %v851
    %865 = vmatprep.subr.mxu0 0.0
    %866 = vmatpush1.msra.mxu0 %v852
    %867 = vmatprep.subr.mxu0 0.0
    %868 = vmatpush1.msra.mxu0 0.0
    %869 = vmatprep.subr.mxu0 0.0
    %870 = vmatpush1.msra.mxu0 0.0
    %871 = vmatprep.subr.mxu0 0.0
    %872 = vmatpush1.msra.mxu0 0.0
    %873 = vmatprep.subr.mxu0 0.0
    %874 = vmatpush1.msra.mxu0 0.0
    %875 = vmatprep.subr.mxu0 0.0
    %876 = vmatpush1.msra.mxu0 0.0
    %877 = vmatprep.subr.mxu0 0.0
    %878 = vmatpush1.msra.mxu0 0.0
    %879 = vmatprep.subr.mxu0 0.0
    %880 = vmatpush1.msra.mxu0 0.0
    %881 = vmatprep.subr.mxu0 0.0
    %882 = vmatpush1.msra.mxu0 0.0
    %883 = vmatprep.subr.mxu0 0.0
    %884 = vmatpush1.msra.mxu0 0.0
    %885 = vmatprep.subr.mxu0 0.0
    %886 = vmatpush1.msra.mxu0 0.0
    %887 = vmatprep.subr.mxu0 0.0
    %888 = vmatpush1.msra.mxu0 0.0
    %889 = vmatprep.subr.mxu0 0.0
    %890 = vmatpush1.msra.mxu0 0.0
    %891 = vmatprep.subr.mxu0 0.0
    %892 = vmatpush1.msra.mxu0 0.0
    %893 = vmatprep.subr.mxu0 0.0
    %894 = vmatpush1.msra.mxu0 0.0
    %895 = vmatprep.subr.mxu0 0.0
    %896 = vmatpush1.msra.mxu0 0.0
    %897 = vmatprep.subr.mxu0 0.0
    %898 = vmatpush1.msra.mxu0 0.0
    %899 = vmatprep.subr.mxu0 0.0
    %900 = vmatpush1.msra.mxu0 0.0
    %901 = vmatprep.subr.mxu0 0.0
    %902 = vmatpush1.msra.mxu0 0.0
    %903 = vmatprep.subr.mxu0 0.0
    %904 = vmatpush1.msra.mxu0 0.0
    %905 = vmatprep.subr.mxu0 0.0
    %906 = vmatpush1.msra.mxu0 0.0
    %907 = vmatprep.subr.mxu0 0.0
    %908 = vmatpush1.msra.mxu0 0.0
    %909 = vmatprep.subr.mxu0 0.0
    %910 = vmatpush1.msra.mxu0 0.0
    %911 = vmatprep.subr.mxu0 0.0
    %912 = vmatpush1.msra.mxu0 0.0
    %913 = vmatprep.subr.mxu0 0.0
    %914 = vmatpush1.msra.mxu0 0.0
    %915 = vmatprep.subr.mxu0 0.0
    %916 = vmatpush1.msra.mxu0 0.0
    %917 = vmatprep.subr.mxu0 0.0
    %918 = vmatpush1.msra.mxu0 0.0
    %919 = vmatprep.subr.mxu0 0.0
    %920 = vmatpush1.msra.mxu0 0.0
    %921 = vmatprep.subr.mxu0 0.0
    %922 = vmatpush1.msra.mxu0 0.0
    %923 = vmatprep.mubr.f32.mxu0 0.0
    %924 = vmatmul.mubr.f32.gmra.mrb[0].mxu0 %v695
    %v925 = vpop.f32.mrb[0].mxu0
    %v926 = vadd.f32 %v857, %v925
    %v927 = vpop.f32.mrb[0].mxu0
    %928 = vdwg.mxu0
    %v929 = vld [vmem:[#allocation2] sm:$0x3]
    %v930 = vadd.f32 %v929, %v764
    %v931 = vxor.u32 %v930, 2147483648
    %v932 = vmul.f32 %v931, 1.442695
    %v933 = vpow.pop %v932
    %v934 = vadd.f32 %v933, 1.0
    %v935 = vrcp.pop %v934
    %v936 = vmul.f32 1.0, %v935
    %v937 = vld [vmem:[%s520] sm:$0x3]
    %v938 = vadd.f32 %v937, %v845
    %v939 = vxor.u32 %v938, 2147483648
    %v940 = vmul.f32 %v939, 1.442695
    %v941 = vpow.pop %v940
    %v942 = vadd.f32 %v941, 1.0
    %v943 = vrcp.pop %v942
    %v944 = vmul.f32 1.0, %v943
    %v945 = vld [vmem:[%s670] sm:$0x3]
    %v946 = vmul.f32 %v936, %v926
    %v947 = vadd.f32 %v945, %v946
    %v948 = vtanh.pop %v947
    %v949 = vsub.f32 1.0, %v944
    %v950 = vmul.f32 %v949, %v948
    %v951 = vmul.f32 %v944, 0.0
    %v952 = vadd.f32 %v950, %v951
    %953 = vst.msk [vmem:[#allocation2] sm:$0x3] %vm370, %v952
    %v954 = vld [vmem:[#allocation9] sm:$0xff]
    %v955 = vld [vmem:[#allocation9 + $0x8] sm:$0xff]
    %v956 = vld [vmem:[#allocation9 + $0x10] sm:$0xff]
    %v957 = vld [vmem:[#allocation9 + $0x18] sm:$0xff]
    %v959 = vsel %vm246, %v952, 0
    %961 = vmatprep.subr.mxu0 0.0
    %962 = vmatpush1.msra.mxu0 %v954
    %963 = vmatprep.subr.mxu0 0.0
    %964 = vmatpush1.msra.mxu0 %v955
    %965 = vmatprep.subr.mxu0 0.0
    %966 = vmatpush1.msra.mxu0 %v956
    %967 = vmatprep.subr.mxu0 0.0
    %968 = vmatpush1.msra.mxu0 %v957
    %969 = vmatprep.subr.mxu0 0.0
    %970 = vmatpush1.msra.mxu0 0.0
    %971 = vmatprep.subr.mxu0 0.0
    %972 = vmatpush1.msra.mxu0 0.0
    %973 = vmatprep.subr.mxu0 0.0
    %974 = vmatpush1.msra.mxu0 0.0
    %975 = vmatprep.subr.mxu0 0.0
    %976 = vmatpush1.msra.mxu0 0.0
    %977 = vmatprep.subr.mxu0 0.0
    %978 = vmatpush1.msra.mxu0 0.0
    %979 = vmatprep.subr.mxu0 0.0
    %980 = vmatpush1.msra.mxu0 0.0
    %981 = vmatprep.subr.mxu0 0.0
    %982 = vmatpush1.msra.mxu0 0.0
    %983 = vmatprep.subr.mxu0 0.0
    %984 = vmatpush1.msra.mxu0 0.0
    %985 = vmatprep.subr.mxu0 0.0
    %986 = vmatpush1.msra.mxu0 0.0
    %987 = vmatprep.subr.mxu0 0.0
    %988 = vmatpush1.msra.mxu0 0.0
    %989 = vmatprep.subr.mxu0 0.0
    %990 = vmatpush1.msra.mxu0 0.0
    %991 = vmatprep.subr.mxu0 0.0
    %992 = vmatpush1.msra.mxu0 0.0
    %993 = vmatprep.subr.mxu0 0.0
    %994 = vmatpush1.msra.mxu0 0.0
    %995 = vmatprep.subr.mxu0 0.0
    %996 = vmatpush1.msra.mxu0 0.0
    %997 = vmatprep.subr.mxu0 0.0
    %998 = vmatpush1.msra.mxu0 0.0
    %999 = vmatprep.subr.mxu0 0.0
    %1000 = vmatpush1.msra.mxu0 0.0
    %1001 = vmatprep.subr.mxu0 0.0
    %1002 = vmatpush1.msra.mxu0 0.0
    %1003 = vmatprep.subr.mxu0 0.0
    %1004 = vmatpush1.msra.mxu0 0.0
    %1005 = vmatprep.subr.mxu0 0.0
    %1006 = vmatpush1.msra.mxu0 0.0
    %1007 = vmatprep.subr.mxu0 0.0
    %1008 = vmatpush1.msra.mxu0 0.0
    %1009 = vmatprep.subr.mxu0 0.0
    %1010 = vmatpush1.msra.mxu0 0.0
    %1011 = vmatprep.subr.mxu0 0.0
    %1012 = vmatpush1.msra.mxu0 0.0
    %1013 = vmatprep.subr.mxu0 0.0
    %1014 = vmatpush1.msra.mxu0 0.0
    %1015 = vmatprep.subr.mxu0 0.0
    %1016 = vmatpush1.msra.mxu0 0.0
    %1017 = vmatprep.subr.mxu0 0.0
    %1018 = vmatpush1.msra.mxu0 0.0
    %1019 = vmatprep.subr.mxu0 0.0
    %1020 = vmatpush1.msra.mxu0 0.0
    %1021 = vmatprep.subr.mxu0 0.0
    %1022 = vmatpush1.msra.mxu0 0.0
    %1023 = vmatprep.subr.mxu0 0.0
    %1024 = vmatpush1.msra.mxu0 0.0
    %1025 = vmatprep.mubr.f32.mxu0 0.0
    %1026 = vmatmul.mubr.f32.gmra.mrb[0].mxu0 %v959
    %v1027 = vpop.f32.mrb[0].mxu0
    %v1028 = vadd.f32 %v692, %v1027
    %v1029 = vpop.f32.mrb[0].mxu0
    %1030 = vdwg.mxu0
    %v1031 = vld [vmem:[%s767] sm:$0xff]
    %v1032 = vld [vmem:[%s767 + $0x8] sm:$0xff]
    %v1033 = vld [vmem:[%s767 + $0x10] sm:$0xff]
    %v1034 = vld [vmem:[%s767 + $0x18] sm:$0xff]
    %1035 = vmatprep.subr.mxu0 0.0
    %1036 = vmatpush1.msra.mxu0 %v1031
    %1037 = vmatprep.subr.mxu0 0.0
    %1038 = vmatpush1.msra.mxu0 %v1032
    %1039 = vmatprep.subr.mxu0 0.0
    %1040 = vmatpush1.msra.mxu0 %v1033
    %1041 = vmatprep.subr.mxu0 0.0
    %1042 = vmatpush1.msra.mxu0 %v1034
    %1043 = vmatprep.subr.mxu0 0.0
    %1044 = vmatpush1.msra.mxu0 0.0
    %1045 = vmatprep.subr.mxu0 0.0
    %1046 = vmatpush1.msra.mxu0 0.0
    %1047 = vmatprep.subr.mxu0 0.0
    %1048 = vmatpush1.msra.mxu0 0.0
    %1049 = vmatprep.subr.mxu0 0.0
    %1050 = vmatpush1.msra.mxu0 0.0
    %1051 = vmatprep.subr.mxu0 0.0
    %1052 = vmatpush1.msra.mxu0 0.0
    %1053 = vmatprep.subr.mxu0 0.0
    %1054 = vmatpush1.msra.mxu0 0.0
    %1055 = vmatprep.subr.mxu0 0.0
    %1056 = vmatpush1.msra.mxu0 0.0
    %1057 = vmatprep.subr.mxu0 0.0
    %1058 = vmatpush1.msra.mxu0 0.0
    %1059 = vmatprep.subr.mxu0 0.0
    %1060 = vmatpush1.msra.mxu0 0.0
    %1061 = vmatprep.subr.mxu0 0.0
    %1062 = vmatpush1.msra.mxu0 0.0
    %1063 = vmatprep.subr.mxu0 0.0
    %1064 = vmatpush1.msra.mxu0 0.0
    %1065 = vmatprep.subr.mxu0 0.0
    %1066 = vmatpush1.msra.mxu0 0.0
    %1067 = vmatprep.subr.mxu0 0.0
    %1068 = vmatpush1.msra.mxu0 0.0
    %1069 = vmatprep.subr.mxu0 0.0
    %1070 = vmatpush1.msra.mxu0 0.0
    %1071 = vmatprep.subr.mxu0 0.0
    %1072 = vmatpush1.msra.mxu0 0.0
    %1073 = vmatprep.subr.mxu0 0.0
    %1074 = vmatpush1.msra.mxu0 0.0
    %1075 = vmatprep.subr.mxu0 0.0
    %1076 = vmatpush1.msra.mxu0 0.0
    %1077 = vmatprep.subr.mxu0 0.0
    %1078 = vmatpush1.msra.mxu0 0.0
    %1079 = vmatprep.subr.mxu0 0.0
    %1080 = vmatpush1.msra.mxu0 0.0
    %1081 = vmatprep.subr.mxu0 0.0
    %1082 = vmatpush1.msra.mxu0 0.0
    %1083 = vmatprep.subr.mxu0 0.0
    %1084 = vmatpush1.msra.mxu0 0.0
    %1085 = vmatprep.subr.mxu0 0.0
    %1086 = vmatpush1.msra.mxu0 0.0
    %1087 = vmatprep.subr.mxu0 0.0
    %1088 = vmatpush1.msra.mxu0 0.0
    %1089 = vmatprep.subr.mxu0 0.0
    %1090 = vmatpush1.msra.mxu0 0.0
    %1091 = vmatprep.subr.mxu0 0.0
    %1092 = vmatpush1.msra.mxu0 0.0
    %1093 = vmatprep.subr.mxu0 0.0
    %1094 = vmatpush1.msra.mxu0 0.0
    %1095 = vmatprep.subr.mxu0 0.0
    %1096 = vmatpush1.msra.mxu0 0.0
    %1097 = vmatprep.subr.mxu0 0.0
    %1098 = vmatpush1.msra.mxu0 0.0
    %1099 = vmatprep.mubr.f32.mxu0 0.0
    %1100 = vmatmul.mubr.f32.gmra.mrb[0].mxu0 %v959
    %v1101 = vpop.f32.mrb[0].mxu0
    %v1102 = vadd.f32 %v776, %v1101
    %v1103 = vpop.f32.mrb[0].mxu0
    %1104 = vdwg.mxu0
    %v1105 = vld [vmem:[%s848] sm:$0xff]
    %v1106 = vld [vmem:[%s848 + $0x8] sm:$0xff]
    %v1107 = vld [vmem:[%s848 + $0x10] sm:$0xff]
    %v1108 = vld [vmem:[%s848 + $0x18] sm:$0xff]
    %1109 = vmatprep.subr.mxu0 0.0
    %1110 = vmatpush1.msra.mxu0 %v1105
    %1111 = vmatprep.subr.mxu0 0.0
    %1112 = vmatpush1.msra.mxu0 %v1106
    %1113 = vmatprep.subr.mxu0 0.0
    %1114 = vmatpush1.msra.mxu0 %v1107
    %1115 = vmatprep.subr.mxu0 0.0
    %1116 = vmatpush1.msra.mxu0 %v1108
    %1117 = vmatprep.subr.mxu0 0.0
    %1118 = vmatpush1.msra.mxu0 0.0
    %1119 = vmatprep.subr.mxu0 0.0
    %1120 = vmatpush1.msra.mxu0 0.0
    %1121 = vmatprep.subr.mxu0 0.0
    %1122 = vmatpush1.msra.mxu0 0.0
    %1123 = vmatprep.subr.mxu0 0.0
    %1124 = vmatpush1.msra.mxu0 0.0
    %1125 = vmatprep.subr.mxu0 0.0
    %1126 = vmatpush1.msra.mxu0 0.0
    %1127 = vmatprep.subr.mxu0 0.0
    %1128 = vmatpush1.msra.mxu0 0.0
    %1129 = vmatprep.subr.mxu0 0.0
    %1130 = vmatpush1.msra.mxu0 0.0
    %1131 = vmatprep.subr.mxu0 0.0
    %1132 = vmatpush1.msra.mxu0 0.0
    %1133 = vmatprep.subr.mxu0 0.0
    %1134 = vmatpush1.msra.mxu0 0.0
    %1135 = vmatprep.subr.mxu0 0.0
    %1136 = vmatpush1.msra.mxu0 0.0
    %1137 = vmatprep.subr.mxu0 0.0
    %1138 = vmatpush1.msra.mxu0 0.0
    %1139 = vmatprep.subr.mxu0 0.0
    %1140 = vmatpush1.msra.mxu0 0.0
    %1141 = vmatprep.subr.mxu0 0.0
    %1142 = vmatpush1.msra.mxu0 0.0
    %1143 = vmatprep.subr.mxu0 0.0
    %1144 = vmatpush1.msra.mxu0 0.0
    %1145 = vmatprep.subr.mxu0 0.0
    %1146 = vmatpush1.msra.mxu0 0.0
    %1147 = vmatprep.subr.mxu0 0.0
    %1148 = vmatpush1.msra.mxu0 0.0
    %1149 = vmatprep.subr.mxu0 0.0
    %1150 = vmatpush1.msra.mxu0 0.0
    %1151 = vmatprep.subr.mxu0 0.0
    %1152 = vmatpush1.msra.mxu0 0.0
    %1153 = vmatprep.subr.mxu0 0.0
    %1154 = vmatpush1.msra.mxu0 0.0
    %1155 = vmatprep.subr.mxu0 0.0
    %1156 = vmatpush1.msra.mxu0 0.0
    %1157 = vmatprep.subr.mxu0 0.0
    %1158 = vmatpush1.msra.mxu0 0.0
    %1159 = vmatprep.subr.mxu0 0.0
    %1160 = vmatpush1.msra.mxu0 0.0
    %1161 = vmatprep.subr.mxu0 0.0
    %1162 = vmatpush1.msra.mxu0 0.0
    %1163 = vmatprep.subr.mxu0 0.0
    %1164 = vmatpush1.msra.mxu0 0.0
    %1165 = vmatprep.subr.mxu0 0.0
    %1166 = vmatpush1.msra.mxu0 0.0
    %1167 = vmatprep.subr.mxu0 0.0
    %1168 = vmatpush1.msra.mxu0 0.0
    %1169 = vmatprep.subr.mxu0 0.0
    %1170 = vmatpush1.msra.mxu0 0.0
    %1171 = vmatprep.subr.mxu0 0.0
    %1172 = vmatpush1.msra.mxu0 0.0
    %1173 = vmatprep.mubr.f32.mxu0 0.0
    %1174 = vmatmul.mubr.f32.gmra.mrb[0].mxu0 %v959
    %v1175 = vpop.f32.mrb[0].mxu0
    %v1176 = vadd.f32 %v857, %v1175
    %v1177 = vpop.f32.mrb[0].mxu0
    %1178 = vdwg.mxu0
    %s1179 = scalar_lea.vmem [#allocation2], 2
    %v1180 = vld [vmem:[%s1179] sm:$0x3]
    %v1181 = vadd.f32 %v1180, %v1028
    %v1182 = vxor.u32 %v1181, 2147483648
    %v1183 = vmul.f32 %v1182, 1.442695
    %v1184 = vpow.pop %v1183
    %v1185 = vadd.f32 %v1184, 1.0
    %v1186 = vrcp.pop %v1185
    %v1187 = vmul.f32 1.0, %v1186
    %s1188 = scalar_lea.vmem [#allocation2], 18
    %v1189 = vld [vmem:[%s1188] sm:$0x3]
    %v1190 = vadd.f32 %v1189, %v1102
    %v1191 = vxor.u32 %v1190, 2147483648
    %v1192 = vmul.f32 %v1191, 1.442695
    %v1193 = vpow.pop %v1192
    %v1194 = vadd.f32 %v1193, 1.0
    %v1195 = vrcp.pop %v1194
    %v1196 = vmul.f32 1.0, %v1195
    %s1197 = scalar_lea.vmem [#allocation2], 34
    %v1198 = vld [vmem:[%s1197] sm:$0x3]
    %v1199 = vmul.f32 %v1187, %v1176
    %v1200 = vadd.f32 %v1198, %v1199
    %v1201 = vtanh.pop %v1200
    %v1202 = vsub.f32 1.0, %v1196
    %v1203 = vmul.f32 %v1202, %v1201
    %v1204 = vmul.f32 %v1196, %v952
    %v1205 = vadd.f32 %v1203, %v1204
    %1206 = vst.msk [vmem:[%s1179] sm:$0x3] %vm370, %v1205
    %v1207 = vld [vmem:[#allocation9] sm:$0xff]
    %v1208 = vld [vmem:[#allocation9 + $0x8] sm:$0xff]
    %v1209 = vld [vmem:[#allocation9 + $0x10] sm:$0xff]
    %v1210 = vld [vmem:[#allocation9 + $0x18] sm:$0xff]
    %v1212 = vsel %vm246, %v1205, 0
    %1214 = vmatprep.subr.mxu0 0.0
    %1215 = vmatpush1.msra.mxu0 %v1207
    %1216 = vmatprep.subr.mxu0 0.0
    %1217 = vmatpush1.msra.mxu0 %v1208
    %1218 = vmatprep.subr.mxu0 0.0
    %1219 = vmatpush1.msra.mxu0 %v1209
    %1220 = vmatprep.subr.mxu0 0.0
    %1221 = vmatpush1.msra.mxu0 %v1210
    %1222 = vmatprep.subr.mxu0 0.0
    %1223 = vmatpush1.msra.mxu0 0.0
    %1224 = vmatprep.subr.mxu0 0.0
    %1225 = vmatpush1.msra.mxu0 0.0
    %1226 = vmatprep.subr.mxu0 0.0
    %1227 = vmatpush1.msra.mxu0 0.0
    %1228 = vmatprep.subr.mxu0 0.0
    %1229 = vmatpush1.msra.mxu0 0.0
    %1230 = vmatprep.subr.mxu0 0.0
    %1231 = vmatpush1.msra.mxu0 0.0
    %1232 = vmatprep.subr.mxu0 0.0
    %1233 = vmatpush1.msra.mxu0 0.0
    %1234 = vmatprep.subr.mxu0 0.0
    %1235 = vmatpush1.msra.mxu0 0.0
    %1236 = vmatprep.subr.mxu0 0.0
    %1237 = vmatpush1.msra.mxu0 0.0
    %1238 = vmatprep.subr.mxu0 0.0
    %1239 = vmatpush1.msra.mxu0 0.0
    %1240 = vmatprep.subr.mxu0 0.0
    %1241 = vmatpush1.msra.mxu0 0.0
    %1242 = vmatprep.subr.mxu0 0.0
    %1243 = vmatpush1.msra.mxu0 0.0
    %1244 = vmatprep.subr.mxu0 0.0
    %1245 = vmatpush1.msra.mxu0 0.0
    %1246 = vmatprep.subr.mxu0 0.0
    %1247 = vmatpush1.msra.mxu0 0.0
    %1248 = vmatprep.subr.mxu0 0.0
    %1249 = vmatpush1.msra.mxu0 0.0
    %1250 = vmatprep.subr.mxu0 0.0
    %1251 = vmatpush1.msra.mxu0 0.0
    %1252 = vmatprep.subr.mxu0 0.0
    %1253 = vmatpush1.msra.mxu0 0.0
    %1254 = vmatprep.subr.mxu0 0.0
    %1255 = vmatpush1.msra.mxu0 0.0
    %1256 = vmatprep.subr.mxu0 0.0
    %1257 = vmatpush1.msra.mxu0 0.0
    %1258 = vmatprep.subr.mxu0 0.0
    %1259 = vmatpush1.msra.mxu0 0.0
    %1260 = vmatprep.subr.mxu0 0.0
    %1261 = vmatpush1.msra.mxu0 0.0
    %1262 = vmatprep.subr.mxu0 0.0
    %1263 = vmatpush1.msra.mxu0 0.0
    %1264 = vmatprep.subr.mxu0 0.0
    %1265 = vmatpush1.msra.mxu0 0.0
    %1266 = vmatprep.subr.mxu0 0.0
    %1267 = vmatpush1.msra.mxu0 0.0
    %1268 = vmatprep.subr.mxu0 0.0
    %1269 = vmatpush1.msra.mxu0 0.0
    %1270 = vmatprep.subr.mxu0 0.0
    %1271 = vmatpush1.msra.mxu0 0.0
    %1272 = vmatprep.subr.mxu0 0.0
    %1273 = vmatpush1.msra.mxu0 0.0
    %1274 = vmatprep.subr.mxu0 0.0
    %1275 = vmatpush1.msra.mxu0 0.0
    %1276 = vmatprep.subr.mxu0 0.0
    %1277 = vmatpush1.msra.mxu0 0.0
    %1278 = vmatprep.mubr.f32.mxu0 0.0
    %1279 = vmatmul.mubr.f32.gmra.mrb[0].mxu0 %v1212
    %v1280 = vpop.f32.mrb[0].mxu0
    %v1281 = vadd.f32 %v692, %v1280
    %v1282 = vpop.f32.mrb[0].mxu0
    %1283 = vdwg.mxu0
    %v1284 = vld [vmem:[%s767] sm:$0xff]
    %v1285 = vld [vmem:[%s767 + $0x8] sm:$0xff]
    %v1286 = vld [vmem:[%s767 + $0x10] sm:$0xff]
    %v1287 = vld [vmem:[%s767 + $0x18] sm:$0xff]
    %1288 = vmatprep.subr.mxu0 0.0
    %1289 = vmatpush1.msra.mxu0 %v1284
    %1290 = vmatprep.subr.mxu0 0.0
    %1291 = vmatpush1.msra.mxu0 %v1285
    %1292 = vmatprep.subr.mxu0 0.0
    %1293 = vmatpush1.msra.mxu0 %v1286
    %1294 = vmatprep.subr.mxu0 0.0
    %1295 = vmatpush1.msra.mxu0 %v1287
    %1296 = vmatprep.subr.mxu0 0.0
    %1297 = vmatpush1.msra.mxu0 0.0
    %1298 = vmatprep.subr.mxu0 0.0
    %1299 = vmatpush1.msra.mxu0 0.0
    %1300 = vmatprep.subr.mxu0 0.0
    %1301 = vmatpush1.msra.mxu0 0.0
    %1302 = vmatprep.subr.mxu0 0.0
    %1303 = vmatpush1.msra.mxu0 0.0
    %1304 = vmatprep.subr.mxu0 0.0
    %1305 = vmatpush1.msra.mxu0 0.0
    %1306 = vmatprep.subr.mxu0 0.0
    %1307 = vmatpush1.msra.mxu0 0.0
    %1308 = vmatprep.subr.mxu0 0.0
    %1309 = vmatpush1.msra.mxu0 0.0
    %1310 = vmatprep.subr.mxu0 0.0
    %1311 = vmatpush1.msra.mxu0 0.0
    %1312 = vmatprep.subr.mxu0 0.0
    %1313 = vmatpush1.msra.mxu0 0.0
    %1314 = vmatprep.subr.mxu0 0.0
    %1315 = vmatpush1.msra.mxu0 0.0
    %1316 = vmatprep.subr.mxu0 0.0
    %1317 = vmatpush1.msra.mxu0 0.0
    %1318 = vmatprep.subr.mxu0 0.0
    %1319 = vmatpush1.msra.mxu0 0.0
    %1320 = vmatprep.subr.mxu0 0.0
    %1321 = vmatpush1.msra.mxu0 0.0
    %1322 = vmatprep.subr.mxu0 0.0
    %1323 = vmatpush1.msra.mxu0 0.0
    %1324 = vmatprep.subr.mxu0 0.0
    %1325 = vmatpush1.msra.mxu0 0.0
    %1326 = vmatprep.subr.mxu0 0.0
    %1327 = vmatpush1.msra.mxu0 0.0
    %1328 = vmatprep.subr.mxu0 0.0
    %1329 = vmatpush1.msra.mxu0 0.0
    %1330 = vmatprep.subr.mxu0 0.0
    %1331 = vmatpush1.msra.mxu0 0.0
    %1332 = vmatprep.subr.mxu0 0.0
    %1333 = vmatpush1.msra.mxu0 0.0
    %1334 = vmatprep.subr.mxu0 0.0
    %1335 = vmatpush1.msra.mxu0 0.0
    %1336 = vmatprep.subr.mxu0 0.0
    %1337 = vmatpush1.msra.mxu0 0.0
    %1338 = vmatprep.subr.mxu0 0.0
    %1339 = vmatpush1.msra.mxu0 0.0
    %1340 = vmatprep.subr.mxu0 0.0
    %1341 = vmatpush1.msra.mxu0 0.0
    %1342 = vmatprep.subr.mxu0 0.0
    %1343 = vmatpush1.msra.mxu0 0.0
    %1344 = vmatprep.subr.mxu0 0.0
    %1345 = vmatpush1.msra.mxu0 0.0
    %1346 = vmatprep.subr.mxu0 0.0
    %1347 = vmatpush1.msra.mxu0 0.0
    %1348 = vmatprep.subr.mxu0 0.0
    %1349 = vmatpush1.msra.mxu0 0.0
    %1350 = vmatprep.subr.mxu0 0.0
    %1351 = vmatpush1.msra.mxu0 0.0
    %1352 = vmatprep.mubr.f32.mxu0 0.0
    %1353 = vmatmul.mubr.f32.gmra.mrb[0].mxu0 %v1212
    %v1354 = vpop.f32.mrb[0].mxu0
    %v1355 = vadd.f32 %v776, %v1354
    %v1356 = vpop.f32.mrb[0].mxu0
    %1357 = vdwg.mxu0
    %v1358 = vld [vmem:[%s848] sm:$0xff]
    %v1359 = vld [vmem:[%s848 + $0x8] sm:$0xff]
    %v1360 = vld [vmem:[%s848 + $0x10] sm:$0xff]
    %v1361 = vld [vmem:[%s848 + $0x18] sm:$0xff]
    %1362 = vmatprep.subr.mxu0 0.0
    %1363 = vmatpush1.msra.mxu0 %v1358
    %1364 = vmatprep.subr.mxu0 0.0
    %1365 = vmatpush1.msra.mxu0 %v1359
    %1366 = vmatprep.subr.mxu0 0.0
    %1367 = vmatpush1.msra.mxu0 %v1360
    %1368 = vmatprep.subr.mxu0 0.0
    %1369 = vmatpush1.msra.mxu0 %v1361
    %1370 = vmatprep.subr.mxu0 0.0
    %1371 = vmatpush1.msra.mxu0 0.0
    %1372 = vmatprep.subr.mxu0 0.0
    %1373 = vmatpush1.msra.mxu0 0.0
    %1374 = vmatprep.subr.mxu0 0.0
    %1375 = vmatpush1.msra.mxu0 0.0
    %1376 = vmatprep.subr.mxu0 0.0
    %1377 = vmatpush1.msra.mxu0 0.0
    %1378 = vmatprep.subr.mxu0 0.0
    %1379 = vmatpush1.msra.mxu0 0.0
    %1380 = vmatprep.subr.mxu0 0.0
    %1381 = vmatpush1.msra.mxu0 0.0
    %1382 = vmatprep.subr.mxu0 0.0
    %1383 = vmatpush1.msra.mxu0 0.0
    %1384 = vmatprep.subr.mxu0 0.0
    %1385 = vmatpush1.msra.mxu0 0.0
    %1386 = vmatprep.subr.mxu0 0.0
    %1387 = vmatpush1.msra.mxu0 0.0
    %1388 = vmatprep.subr.mxu0 0.0
    %1389 = vmatpush1.msra.mxu0 0.0
    %1390 = vmatprep.subr.mxu0 0.0
    %1391 = vmatpush1.msra.mxu0 0.0
    %1392 = vmatprep.subr.mxu0 0.0
    %1393 = vmatpush1.msra.mxu0 0.0
    %1394 = vmatprep.subr.mxu0 0.0
    %1395 = vmatpush1.msra.mxu0 0.0
    %1396 = vmatprep.subr.mxu0 0.0
    %1397 = vmatpush1.msra.mxu0 0.0
    %1398 = vmatprep.subr.mxu0 0.0
    %1399 = vmatpush1.msra.mxu0 0.0
    %1400 = vmatprep.subr.mxu0 0.0
    %1401 = vmatpush1.msra.mxu0 0.0
    %1402 = vmatprep.subr.mxu0 0.0
    %1403 = vmatpush1.msra.mxu0 0.0
    %1404 = vmatprep.subr.mxu0 0.0
    %1405 = vmatpush1.msra.mxu0 0.0
    %1406 = vmatprep.subr.mxu0 0.0
    %1407 = vmatpush1.msra.mxu0 0.0
    %1408 = vmatprep.subr.mxu0 0.0
    %1409 = vmatpush1.msra.mxu0 0.0
    %1410 = vmatprep.subr.mxu0 0.0
    %1411 = vmatpush1.msra.mxu0 0.0
    %1412 = vmatprep.subr.mxu0 0.0
    %1413 = vmatpush1.msra.mxu0 0.0
    %1414 = vmatprep.subr.mxu0 0.0
    %1415 = vmatpush1.msra.mxu0 0.0
    %1416 = vmatprep.subr.mxu0 0.0
    %1417 = vmatpush1.msra.mxu0 0.0
    %1418 = vmatprep.subr.mxu0 0.0
    %1419 = vmatpush1.msra.mxu0 0.0
    %1420 = vmatprep.subr.mxu0 0.0
    %1421 = vmatpush1.msra.mxu0 0.0
    %1422 = vmatprep.subr.mxu0 0.0
    %1423 = vmatpush1.msra.mxu0 0.0
    %1424 = vmatprep.subr.mxu0 0.0
    %1425 = vmatpush1.msra.mxu0 0.0
    %1426 = vmatprep.mubr.f32.mxu0 0.0
    %1427 = vmatmul.mubr.f32.gmra.mrb[0].mxu0 %v1212
    %v1428 = vpop.f32.mrb[0].mxu0
    %v1429 = vadd.f32 %v857, %v1428
    %v1430 = vpop.f32.mrb[0].mxu0
    %1431 = vdwg.mxu0
    %s1432 = scalar_lea.vmem [#allocation2], 4
    %v1433 = vld [vmem:[%s1432] sm:$0x3]
    %v1434 = vadd.f32 %v1433, %v1281
    %v1435 = vxor.u32 %v1434, 2147483648
    %v1436 = vmul.f32 %v1435, 1.442695
    %v1437 = vpow.pop %v1436
    %v1438 = vadd.f32 %v1437, 1.0
    %v1439 = vrcp.pop %v1438
    %v1440 = vmul.f32 1.0, %v1439
    %s1441 = scalar_lea.vmem [#allocation2], 20
    %v1442 = vld [vmem:[%s1441] sm:$0x3]
    %v1443 = vadd.f32 %v1442, %v1355
    %v1444 = vxor.u32 %v1443, 2147483648
    %v1445 = vmul.f32 %v1444, 1.442695
    %v1446 = vpow.pop %v1445
    %v1447 = vadd.f32 %v1446, 1.0
    %v1448 = vrcp.pop %v1447
    %v1449 = vmul.f32 1.0, %v1448
    %s1450 = scalar_lea.vmem [#allocation2], 36
    %v1451 = vld [vmem:[%s1450] sm:$0x3]
    %v1452 = vmul.f32 %v1440, %v1429
    %v1453 = vadd.f32 %v1451, %v1452
    %v1454 = vtanh.pop %v1453
    %v1455 = vsub.f32 1.0, %v1449
    %v1456 = vmul.f32 %v1455, %v1454
    %v1457 = vmul.f32 %v1449, %v1205
    %v1458 = vadd.f32 %v1456, %v1457
    %1459 = vst.msk [vmem:[%s1432] sm:$0x3] %vm370, %v1458
    %v1460 = vld [vmem:[#allocation9] sm:$0xff]
    %v1461 = vld [vmem:[#allocation9 + $0x8] sm:$0xff]
    %v1462 = vld [vmem:[#allocation9 + $0x10] sm:$0xff]
    %v1463 = vld [vmem:[#allocation9 + $0x18] sm:$0xff]
    %v1465 = vsel %vm246, %v1458, 0
    %1467 = vmatprep.subr.mxu0 0.0
    %1468 = vmatpush1.msra.mxu0 %v1460
    %1469 = vmatprep.subr.mxu0 0.0
    %1470 = vmatpush1.msra.mxu0 %v1461
    %1471 = vmatprep.subr.mxu0 0.0
    %1472 = vmatpush1.msra.mxu0 %v1462
    %1473 = vmatprep.subr.mxu0 0.0
    %1474 = vmatpush1.msra.mxu0 %v1463
    %1475 = vmatprep.subr.mxu0 0.0
    %1476 = vmatpush1.msra.mxu0 0.0
    %1477 = vmatprep.subr.mxu0 0.0
    %1478 = vmatpush1.msra.mxu0 0.0
    %1479 = vmatprep.subr.mxu0 0.0
    %1480 = vmatpush1.msra.mxu0 0.0
    %1481 = vmatprep.subr.mxu0 0.0
    %1482 = vmatpush1.msra.mxu0 0.0
    %1483 = vmatprep.subr.mxu0 0.0
    %1484 = vmatpush1.msra.mxu0 0.0
    %1485 = vmatprep.subr.mxu0 0.0
    %1486 = vmatpush1.msra.mxu0 0.0
    %1487 = vmatprep.subr.mxu0 0.0
    %1488 = vmatpush1.msra.mxu0 0.0
    %1489 = vmatprep.subr.mxu0 0.0
    %1490 = vmatpush1.msra.mxu0 0.0
    %1491 = vmatprep.subr.mxu0 0.0
    %1492 = vmatpush1.msra.mxu0 0.0
    %1493 = vmatprep.subr.mxu0 0.0
    %1494 = vmatpush1.msra.mxu0 0.0
    %1495 = vmatprep.subr.mxu0 0.0
    %1496 = vmatpush1.msra.mxu0 0.0
    %1497 = vmatprep.subr.mxu0 0.0
    %1498 = vmatpush1.msra.mxu0 0.0
    %1499 = vmatprep.subr.mxu0 0.0
    %1500 = vmatpush1.msra.mxu0 0.0
    %1501 = vmatprep.subr.mxu0 0.0
    %1502 = vmatpush1.msra.mxu0 0.0
    %1503 = vmatprep.subr.mxu0 0.0
    %1504 = vmatpush1.msra.mxu0 0.0
    %1505 = vmatprep.subr.mxu0 0.0
    %1506 = vmatpush1.msra.mxu0 0.0
    %1507 = vmatprep.subr.mxu0 0.0
    %1508 = vmatpush1.msra.mxu0 0.0
    %1509 = vmatprep.subr.mxu0 0.0
    %1510 = vmatpush1.msra.mxu0 0.0
    %1511 = vmatprep.subr.mxu0 0.0
    %1512 = vmatpush1.msra.mxu0 0.0
    %1513 = vmatprep.subr.mxu0 0.0
    %1514 = vmatpush1.msra.mxu0 0.0
    %1515 = vmatprep.subr.mxu0 0.0
    %1516 = vmatpush1.msra.mxu0 0.0
    %1517 = vmatprep.subr.mxu0 0.0
    %1518 = vmatpush1.msra.mxu0 0.0
    %1519 = vmatprep.subr.mxu0 0.0
    %1520 = vmatpush1.msra.mxu0 0.0
    %1521 = vmatprep.subr.mxu0 0.0
    %1522 = vmatpush1.msra.mxu0 0.0
    %1523 = vmatprep.subr.mxu0 0.0
    %1524 = vmatpush1.msra.mxu0 0.0
    %1525 = vmatprep.subr.mxu0 0.0
    %1526 = vmatpush1.msra.mxu0 0.0
    %1527 = vmatprep.subr.mxu0 0.0
    %1528 = vmatpush1.msra.mxu0 0.0
    %1529 = vmatprep.subr.mxu0 0.0
    %1530 = vmatpush1.msra.mxu0 0.0
    %1531 = vmatprep.mubr.f32.mxu0 0.0
    %1532 = vmatmul.mubr.f32.gmra.mrb[0].mxu0 %v1465
    %v1533 = vpop.f32.mrb[0].mxu0
    %v1534 = vadd.f32 %v692, %v1533
    %v1535 = vpop.f32.mrb[0].mxu0
    %1536 = vdwg.mxu0
    %v1537 = vld [vmem:[%s767] sm:$0xff]
    %v1538 = vld [vmem:[%s767 + $0x8] sm:$0xff]
    %v1539 = vld [vmem:[%s767 + $0x10] sm:$0xff]
    %v1540 = vld [vmem:[%s767 + $0x18] sm:$0xff]
    %1541 = vmatprep.subr.mxu0 0.0
    %1542 = vmatpush1.msra.mxu0 %v1537
    %1543 = vmatprep.subr.mxu0 0.0
    %1544 = vmatpush1.msra.mxu0 %v1538
    %1545 = vmatprep.subr.mxu0 0.0
    %1546 = vmatpush1.msra.mxu0 %v1539
    %1547 = vmatprep.subr.mxu0 0.0
    %1548 = vmatpush1.msra.mxu0 %v1540
    %1549 = vmatprep.subr.mxu0 0.0
    %1550 = vmatpush1.msra.mxu0 0.0
    %1551 = vmatprep.subr.mxu0 0.0
    %1552 = vmatpush1.msra.mxu0 0.0
    %1553 = vmatprep.subr.mxu0 0.0
    %1554 = vmatpush1.msra.mxu0 0.0
    %1555 = vmatprep.subr.mxu0 0.0
    %1556 = vmatpush1.msra.mxu0 0.0
    %1557 = vmatprep.subr.mxu0 0.0
    %1558 = vmatpush1.msra.mxu0 0.0
    %1559 = vmatprep.subr.mxu0 0.0
    %1560 = vmatpush1.msra.mxu0 0.0
    %1561 = vmatprep.subr.mxu0 0.0
    %1562 = vmatpush1.msra.mxu0 0.0
    %1563 = vmatprep.subr.mxu0 0.0
    %1564 = vmatpush1.msra.mxu0 0.0
    %1565 = vmatprep.subr.mxu0 0.0
    %1566 = vmatpush1.msra.mxu0 0.0
    %1567 = vmatprep.subr.mxu0 0.0
    %1568 = vmatpush1.msra.mxu0 0.0
    %1569 = vmatprep.subr.mxu0 0.0
    %1570 = vmatpush1.msra.mxu0 0.0
    %1571 = vmatprep.subr.mxu0 0.0
    %1572 = vmatpush1.msra.mxu0 0.0
    %1573 = vmatprep.subr.mxu0 0.0
    %1574 = vmatpush1.msra.mxu0 0.0
    %1575 = vmatprep.subr.mxu0 0.0
    %1576 = vmatpush1.msra.mxu0 0.0
    %1577 = vmatprep.subr.mxu0 0.0
    %1578 = vmatpush1.msra.mxu0 0.0
    %1579 = vmatprep.subr.mxu0 0.0
    %1580 = vmatpush1.msra.mxu0 0.0
    %1581 = vmatprep.subr.mxu0 0.0
    %1582 = vmatpush1.msra.mxu0 0.0
    %1583 = vmatprep.subr.mxu0 0.0
    %1584 = vmatpush1.msra.mxu0 0.0
    %1585 = vmatprep.subr.mxu0 0.0
    %1586 = vmatpush1.msra.mxu0 0.0
    %1587 = vmatprep.subr.mxu0 0.0
    %1588 = vmatpush1.msra.mxu0 0.0
    %1589 = vmatprep.subr.mxu0 0.0
    %1590 = vmatpush1.msra.mxu0 0.0
    %1591 = vmatprep.subr.mxu0 0.0
    %1592 = vmatpush1.msra.mxu0 0.0
    %1593 = vmatprep.subr.mxu0 0.0
    %1594 = vmatpush1.msra.mxu0 0.0
    %1595 = vmatprep.subr.mxu0 0.0
    %1596 = vmatpush1.msra.mxu0 0.0
    %1597 = vmatprep.subr.mxu0 0.0
    %1598 = vmatpush1.msra.mxu0 0.0
    %1599 = vmatprep.subr.mxu0 0.0
    %1600 = vmatpush1.msra.mxu0 0.0
    %1601 = vmatprep.subr.mxu0 0.0
    %1602 = vmatpush1.msra.mxu0 0.0
    %1603 = vmatprep.subr.mxu0 0.0
    %1604 = vmatpush1.msra.mxu0 0.0
    %1605 = vmatprep.mubr.f32.mxu0 0.0
    %1606 = vmatmul.mubr.f32.gmra.mrb[0].mxu0 %v1465
    %v1607 = vpop.f32.mrb[0].mxu0
    %v1608 = vadd.f32 %v776, %v1607
    %v1609 = vpop.f32.mrb[0].mxu0
    %1610 = vdwg.mxu0
    %v1611 = vld [vmem:[%s848] sm:$0xff]
    %v1612 = vld [vmem:[%s848 + $0x8] sm:$0xff]
    %v1613 = vld [vmem:[%s848 + $0x10] sm:$0xff]
    %v1614 = vld [vmem:[%s848 + $0x18] sm:$0xff]
    %1615 = vmatprep.subr.mxu0 0.0
    %1616 = vmatpush1.msra.mxu0 %v1611
    %1617 = vmatprep.subr.mxu0 0.0
    %1618 = vmatpush1.msra.mxu0 %v1612
    %1619 = vmatprep.subr.mxu0 0.0
    %1620 = vmatpush1.msra.mxu0 %v1613
    %1621 = vmatprep.subr.mxu0 0.0
    %1622 = vmatpush1.msra.mxu0 %v1614
    %1623 = vmatprep.subr.mxu0 0.0
    %1624 = vmatpush1.msra.mxu0 0.0
    %1625 = vmatprep.subr.mxu0 0.0
    %1626 = vmatpush1.msra.mxu0 0.0
    %1627 = vmatprep.subr.mxu0 0.0
    %1628 = vmatpush1.msra.mxu0 0.0
    %1629 = vmatprep.subr.mxu0 0.0
    %1630 = vmatpush1.msra.mxu0 0.0
    %1631 = vmatprep.subr.mxu0 0.0
    %1632 = vmatpush1.msra.mxu0 0.0
    %1633 = vmatprep.subr.mxu0 0.0
    %1634 = vmatpush1.msra.mxu0 0.0
    %1635 = vmatprep.subr.mxu0 0.0
    %1636 = vmatpush1.msra.mxu0 0.0
    %1637 = vmatprep.subr.mxu0 0.0
    %1638 = vmatpush1.msra.mxu0 0.0
    %1639 = vmatprep.subr.mxu0 0.0
    %1640 = vmatpush1.msra.mxu0 0.0
    %1641 = vmatprep.subr.mxu0 0.0
    %1642 = vmatpush1.msra.mxu0 0.0
    %1643 = vmatprep.subr.mxu0 0.0
    %1644 = vmatpush1.msra.mxu0 0.0
    %1645 = vmatprep.subr.mxu0 0.0
    %1646 = vmatpush1.msra.mxu0 0.0
    %1647 = vmatprep.subr.mxu0 0.0
    %1648 = vmatpush1.msra.mxu0 0.0
    %1649 = vmatprep.subr.mxu0 0.0
    %1650 = vmatpush1.msra.mxu0 0.0
    %1651 = vmatprep.subr.mxu0 0.0
    %1652 = vmatpush1.msra.mxu0 0.0
    %1653 = vmatprep.subr.mxu0 0.0
    %1654 = vmatpush1.msra.mxu0 0.0
    %1655 = vmatprep.subr.mxu0 0.0
    %1656 = vmatpush1.msra.mxu0 0.0
    %1657 = vmatprep.subr.mxu0 0.0
    %1658 = vmatpush1.msra.mxu0 0.0
    %1659 = vmatprep.subr.mxu0 0.0
    %1660 = vmatpush1.msra.mxu0 0.0
    %1661 = vmatprep.subr.mxu0 0.0
    %1662 = vmatpush1.msra.mxu0 0.0
    %1663 = vmatprep.subr.mxu0 0.0
    %1664 = vmatpush1.msra.mxu0 0.0
    %1665 = vmatprep.subr.mxu0 0.0
    %1666 = vmatpush1.msra.mxu0 0.0
    %1667 = vmatprep.subr.mxu0 0.0
    %1668 = vmatpush1.msra.mxu0 0.0
    %1669 = vmatprep.subr.mxu0 0.0
    %1670 = vmatpush1.msra.mxu0 0.0
    %1671 = vmatprep.subr.mxu0 0.0
    %1672 = vmatpush1.msra.mxu0 0.0
    %1673 = vmatprep.subr.mxu0 0.0
    %1674 = vmatpush1.msra.mxu0 0.0
    %1675 = vmatprep.subr.mxu0 0.0
    %1676 = vmatpush1.msra.mxu0 0.0
    %1677 = vmatprep.subr.mxu0 0.0
    %1678 = vmatpush1.msra.mxu0 0.0
    %1679 = vmatprep.mubr.f32.mxu0 0.0
    %1680 = vmatmul.mubr.f32.gmra.mrb[0].mxu0 %v1465
    %v1681 = vpop.f32.mrb[0].mxu0
    %v1682 = vadd.f32 %v857, %v1681
    %v1683 = vpop.f32.mrb[0].mxu0
    %1684 = vdwg.mxu0
    %s1685 = scalar_lea.vmem [#allocation2], 6
    %v1686 = vld [vmem:[%s1685] sm:$0x3]
    %v1687 = vadd.f32 %v1686, %v1534
    %v1688 = vxor.u32 %v1687, 2147483648
    %v1689 = vmul.f32 %v1688, 1.442695
    %v1690 = vpow.pop %v1689
    %v1691 = vadd.f32 %v1690, 1.0
    %v1692 = vrcp.pop %v1691
    %v1693 = vmul.f32 1.0, %v1692
    %s1694 = scalar_lea.vmem [#allocation2], 22
    %v1695 = vld [vmem:[%s1694] sm:$0x3]
    %v1696 = vadd.f32 %v1695, %v1608
    %v1697 = vxor.u32 %v1696, 2147483648
    %v1698 = vmul.f32 %v1697, 1.442695
    %v1699 = vpow.pop %v1698
    %v1700 = vadd.f32 %v1699, 1.0
    %v1701 = vrcp.pop %v1700
    %v1702 = vmul.f32 1.0, %v1701
    %s1703 = scalar_lea.vmem [#allocation2], 38
    %v1704 = vld [vmem:[%s1703] sm:$0x3]
    %v1705 = vmul.f32 %v1693, %v1682
    %v1706 = vadd.f32 %v1704, %v1705
    %v1707 = vtanh.pop %v1706
    %v1708 = vsub.f32 1.0, %v1702
    %v1709 = vmul.f32 %v1708, %v1707
    %v1710 = vmul.f32 %v1702, %v1458
    %v1711 = vadd.f32 %v1709, %v1710
    %1712 = vst.msk [vmem:[%s1685] sm:$0x3] %vm370, %v1711
    %v1713 = vld [vmem:[#allocation9] sm:$0xff]
    %v1714 = vld [vmem:[#allocation9 + $0x8] sm:$0xff]
    %v1715 = vld [vmem:[#allocation9 + $0x10] sm:$0xff]
    %v1716 = vld [vmem:[#allocation9 + $0x18] sm:$0xff]
    %v1718 = vsel %vm246, %v1711, 0
    %1720 = vmatprep.subr.mxu0 0.0
    %1721 = vmatpush1.msra.mxu0 %v1713
    %1722 = vmatprep.subr.mxu0 0.0
    %1723 = vmatpush1.msra.mxu0 %v1714
    %1724 = vmatprep.subr.mxu0 0.0
    %1725 = vmatpush1.msra.mxu0 %v1715
    %1726 = vmatprep.subr.mxu0 0.0
    %1727 = vmatpush1.msra.mxu0 %v1716
    %1728 = vmatprep.subr.mxu0 0.0
    %1729 = vmatpush1.msra.mxu0 0.0
    %1730 = vmatprep.subr.mxu0 0.0
    %1731 = vmatpush1.msra.mxu0 0.0
    %1732 = vmatprep.subr.mxu0 0.0
    %1733 = vmatpush1.msra.mxu0 0.0
    %1734 = vmatprep.subr.mxu0 0.0
    %1735 = vmatpush1.msra.mxu0 0.0
    %1736 = vmatprep.subr.mxu0 0.0
    %1737 = vmatpush1.msra.mxu0 0.0
    %1738 = vmatprep.subr.mxu0 0.0
    %1739 = vmatpush1.msra.mxu0 0.0
    %1740 = vmatprep.subr.mxu0 0.0
    %1741 = vmatpush1.msra.mxu0 0.0
    %1742 = vmatprep.subr.mxu0 0.0
    %1743 = vmatpush1.msra.mxu0 0.0
    %1744 = vmatprep.subr.mxu0 0.0
    %1745 = vmatpush1.msra.mxu0 0.0
    %1746 = vmatprep.subr.mxu0 0.0
    %1747 = vmatpush1.msra.mxu0 0.0
    %1748 = vmatprep.subr.mxu0 0.0
    %1749 = vmatpush1.msra.mxu0 0.0
    %1750 = vmatprep.subr.mxu0 0.0
    %1751 = vmatpush1.msra.mxu0 0.0
    %1752 = vmatprep.subr.mxu0 0.0
    %1753 = vmatpush1.msra.mxu0 0.0
    %1754 = vmatprep.subr.mxu0 0.0
    %1755 = vmatpush1.msra.mxu0 0.0
    %1756 = vmatprep.subr.mxu0 0.0
    %1757 = vmatpush1.msra.mxu0 0.0
    %1758 = vmatprep.subr.mxu0 0.0
    %1759 = vmatpush1.msra.mxu0 0.0
    %1760 = vmatprep.subr.mxu0 0.0
    %1761 = vmatpush1.msra.mxu0 0.0
    %1762 = vmatprep.subr.mxu0 0.0
    %1763 = vmatpush1.msra.mxu0 0.0
    %1764 = vmatprep.subr.mxu0 0.0
    %1765 = vmatpush1.msra.mxu0 0.0
    %1766 = vmatprep.subr.mxu0 0.0
    %1767 = vmatpush1.msra.mxu0 0.0
    %1768 = vmatprep.subr.mxu0 0.0
    %1769 = vmatpush1.msra.mxu0 0.0
    %1770 = vmatprep.subr.mxu0 0.0
    %1771 = vmatpush1.msra.mxu0 0.0
    %1772 = vmatprep.subr.mxu0 0.0
    %1773 = vmatpush1.msra.mxu0 0.0
    %1774 = vmatprep.subr.mxu0 0.0
    %1775 = vmatpush1.msra.mxu0 0.0
    %1776 = vmatprep.subr.mxu0 0.0
    %1777 = vmatpush1.msra.mxu0 0.0
    %1778 = vmatprep.subr.mxu0 0.0
    %1779 = vmatpush1.msra.mxu0 0.0
    %1780 = vmatprep.subr.mxu0 0.0
    %1781 = vmatpush1.msra.mxu0 0.0
    %1782 = vmatprep.subr.mxu0 0.0
    %1783 = vmatpush1.msra.mxu0 0.0
    %1784 = vmatprep.mubr.f32.mxu0 0.0
    %1785 = vmatmul.mubr.f32.gmra.mrb[0].mxu0 %v1718
    %v1786 = vpop.f32.mrb[0].mxu0
    %v1787 = vadd.f32 %v692, %v1786
    %v1788 = vpop.f32.mrb[0].mxu0
    %1789 = vdwg.mxu0
    %v1790 = vld [vmem:[%s767] sm:$0xff]
    %v1791 = vld [vmem:[%s767 + $0x8] sm:$0xff]
    %v1792 = vld [vmem:[%s767 + $0x10] sm:$0xff]
    %v1793 = vld [vmem:[%s767 + $0x18] sm:$0xff]
    %1794 = vmatprep.subr.mxu0 0.0
    %1795 = vmatpush1.msra.mxu0 %v1790
    %1796 = vmatprep.subr.mxu0 0.0
    %1797 = vmatpush1.msra.mxu0 %v1791
    %1798 = vmatprep.subr.mxu0 0.0
    %1799 = vmatpush1.msra.mxu0 %v1792
    %1800 = vmatprep.subr.mxu0 0.0
    %1801 = vmatpush1.msra.mxu0 %v1793
    %1802 = vmatprep.subr.mxu0 0.0
    %1803 = vmatpush1.msra.mxu0 0.0
    %1804 = vmatprep.subr.mxu0 0.0
    %1805 = vmatpush1.msra.mxu0 0.0
    %1806 = vmatprep.subr.mxu0 0.0
    %1807 = vmatpush1.msra.mxu0 0.0
    %1808 = vmatprep.subr.mxu0 0.0
    %1809 = vmatpush1.msra.mxu0 0.0
    %1810 = vmatprep.subr.mxu0 0.0
    %1811 = vmatpush1.msra.mxu0 0.0
    %1812 = vmatprep.subr.mxu0 0.0
    %1813 = vmatpush1.msra.mxu0 0.0
    %1814 = vmatprep.subr.mxu0 0.0
    %1815 = vmatpush1.msra.mxu0 0.0
    %1816 = vmatprep.subr.mxu0 0.0
    %1817 = vmatpush1.msra.mxu0 0.0
    %1818 = vmatprep.subr.mxu0 0.0
    %1819 = vmatpush1.msra.mxu0 0.0
    %1820 = vmatprep.subr.mxu0 0.0
    %1821 = vmatpush1.msra.mxu0 0.0
    %1822 = vmatprep.subr.mxu0 0.0
    %1823 = vmatpush1.msra.mxu0 0.0
    %1824 = vmatprep.subr.mxu0 0.0
    %1825 = vmatpush1.msra.mxu0 0.0
    %1826 = vmatprep.subr.mxu0 0.0
    %1827 = vmatpush1.msra.mxu0 0.0
    %1828 = vmatprep.subr.mxu0 0.0
    %1829 = vmatpush1.msra.mxu0 0.0
    %1830 = vmatprep.subr.mxu0 0.0
    %1831 = vmatpush1.msra.mxu0 0.0
    %1832 = vmatprep.subr.mxu0 0.0
    %1833 = vmatpush1.msra.mxu0 0.0
    %1834 = vmatprep.subr.mxu0 0.0
    %1835 = vmatpush1.msra.mxu0 0.0
    %1836 = vmatprep.subr.mxu0 0.0
    %1837 = vmatpush1.msra.mxu0 0.0
    %1838 = vmatprep.subr.mxu0 0.0
    %1839 = vmatpush1.msra.mxu0 0.0
    %1840 = vmatprep.subr.mxu0 0.0
    %1841 = vmatpush1.msra.mxu0 0.0
    %1842 = vmatprep.subr.mxu0 0.0
    %1843 = vmatpush1.msra.mxu0 0.0
    %1844 = vmatprep.subr.mxu0 0.0
    %1845 = vmatpush1.msra.mxu0 0.0
    %1846 = vmatprep.subr.mxu0 0.0
    %1847 = vmatpush1.msra.mxu0 0.0
    %1848 = vmatprep.subr.mxu0 0.0
    %1849 = vmatpush1.msra.mxu0 0.0
    %1850 = vmatprep.subr.mxu0 0.0
    %1851 = vmatpush1.msra.mxu0 0.0
    %1852 = vmatprep.subr.mxu0 0.0
    %1853 = vmatpush1.msra.mxu0 0.0
    %1854 = vmatprep.subr.mxu0 0.0
    %1855 = vmatpush1.msra.mxu0 0.0
    %1856 = vmatprep.subr.mxu0 0.0
    %1857 = vmatpush1.msra.mxu0 0.0
    %1858 = vmatprep.mubr.f32.mxu0 0.0
    %1859 = vmatmul.mubr.f32.gmra.mrb[0].mxu0 %v1718
    %v1860 = vpop.f32.mrb[0].mxu0
    %v1861 = vadd.f32 %v776, %v1860
    %v1862 = vpop.f32.mrb[0].mxu0
    %1863 = vdwg.mxu0
    %v1864 = vld [vmem:[%s848] sm:$0xff]
    %v1865 = vld [vmem:[%s848 + $0x8] sm:$0xff]
    %v1866 = vld [vmem:[%s848 + $0x10] sm:$0xff]
    %v1867 = vld [vmem:[%s848 + $0x18] sm:$0xff]
    %1868 = vmatprep.subr.mxu0 0.0
    %1869 = vmatpush1.msra.mxu0 %v1864
    %1870 = vmatprep.subr.mxu0 0.0
    %1871 = vmatpush1.msra.mxu0 %v1865
    %1872 = vmatprep.subr.mxu0 0.0
    %1873 = vmatpush1.msra.mxu0 %v1866
    %1874 = vmatprep.subr.mxu0 0.0
    %1875 = vmatpush1.msra.mxu0 %v1867
    %1876 = vmatprep.subr.mxu0 0.0
    %1877 = vmatpush1.msra.mxu0 0.0
    %1878 = vmatprep.subr.mxu0 0.0
    %1879 = vmatpush1.msra.mxu0 0.0
    %1880 = vmatprep.subr.mxu0 0.0
    %1881 = vmatpush1.msra.mxu0 0.0
    %1882 = vmatprep.subr.mxu0 0.0
    %1883 = vmatpush1.msra.mxu0 0.0
    %1884 = vmatprep.subr.mxu0 0.0
    %1885 = vmatpush1.msra.mxu0 0.0
    %1886 = vmatprep.subr.mxu0 0.0
    %1887 = vmatpush1.msra.mxu0 0.0
    %1888 = vmatprep.subr.mxu0 0.0
    %1889 = vmatpush1.msra.mxu0 0.0
    %1890 = vmatprep.subr.mxu0 0.0
    %1891 = vmatpush1.msra.mxu0 0.0
    %1892 = vmatprep.subr.mxu0 0.0
    %1893 = vmatpush1.msra.mxu0 0.0
    %1894 = vmatprep.subr.mxu0 0.0
    %1895 = vmatpush1.msra.mxu0 0.0
    %1896 = vmatprep.subr.mxu0 0.0
    %1897 = vmatpush1.msra.mxu0 0.0
    %1898 = vmatprep.subr.mxu0 0.0
    %1899 = vmatpush1.msra.mxu0 0.0
    %1900 = vmatprep.subr.mxu0 0.0
    %1901 = vmatpush1.msra.mxu0 0.0
    %1902 = vmatprep.subr.mxu0 0.0
    %1903 = vmatpush1.msra.mxu0 0.0
    %1904 = vmatprep.subr.mxu0 0.0
    %1905 = vmatpush1.msra.mxu0 0.0
    %1906 = vmatprep.subr.mxu0 0.0
    %1907 = vmatpush1.msra.mxu0 0.0
    %1908 = vmatprep.subr.mxu0 0.0
    %1909 = vmatpush1.msra.mxu0 0.0
    %1910 = vmatprep.subr.mxu0 0.0
    %1911 = vmatpush1.msra.mxu0 0.0
    %1912 = vmatprep.subr.mxu0 0.0
    %1913 = vmatpush1.msra.mxu0 0.0
    %1914 = vmatprep.subr.mxu0 0.0
    %1915 = vmatpush1.msra.mxu0 0.0
    %1916 = vmatprep.subr.mxu0 0.0
    %1917 = vmatpush1.msra.mxu0 0.0
    %1918 = vmatprep.subr.mxu0 0.0
    %1919 = vmatpush1.msra.mxu0 0.0
    %1920 = vmatprep.subr.mxu0 0.0
    %1921 = vmatpush1.msra.mxu0 0.0
    %1922 = vmatprep.subr.mxu0 0.0
    %1923 = vmatpush1.msra.mxu0 0.0
    %1924 = vmatprep.subr.mxu0 0.0
    %1925 = vmatpush1.msra.mxu0 0.0
    %1926 = vmatprep.subr.mxu0 0.0
    %1927 = vmatpush1.msra.mxu0 0.0
    %1928 = vmatprep.subr.mxu0 0.0
    %1929 = vmatpush1.msra.mxu0 0.0
    %1930 = vmatprep.subr.mxu0 0.0
    %1931 = vmatpush1.msra.mxu0 0.0
    %1932 = vmatprep.mubr.f32.mxu0 0.0
    %1933 = vmatmul.mubr.f32.gmra.mrb[0].mxu0 %v1718
    %v1934 = vpop.f32.mrb[0].mxu0
    %v1935 = vadd.f32 %v857, %v1934
    %v1936 = vpop.f32.mrb[0].mxu0
    %1937 = vdwg.mxu0
    %s1938 = scalar_lea.vmem [#allocation2], 8
    %v1939 = vld [vmem:[%s1938] sm:$0x3]
    %v1940 = vadd.f32 %v1939, %v1787
    %v1941 = vxor.u32 %v1940, 2147483648
    %v1942 = vmul.f32 %v1941, 1.442695
    %v1943 = vpow.pop %v1942
    %v1944 = vadd.f32 %v1943, 1.0
    %v1945 = vrcp.pop %v1944
    %v1946 = vmul.f32 1.0, %v1945
    %s1947 = scalar_lea.vmem [#allocation2], 24
    %v1948 = vld [vmem:[%s1947] sm:$0x3]
    %v1949 = vadd.f32 %v1948, %v1861
    %v1950 = vxor.u32 %v1949, 2147483648
    %v1951 = vmul.f32 %v1950, 1.442695
    %v1952 = vpow.pop %v1951
    %v1953 = vadd.f32 %v1952, 1.0
    %v1954 = vrcp.pop %v1953
    %v1955 = vmul.f32 1.0, %v1954
    %s1956 = scalar_lea.vmem [#allocation2], 40
    %v1957 = vld [vmem:[%s1956] sm:$0x3]
    %v1958 = vmul.f32 %v1946, %v1935
    %v1959 = vadd.f32 %v1957, %v1958
    %v1960 = vtanh.pop %v1959
    %v1961 = vsub.f32 1.0, %v1955
    %v1962 = vmul.f32 %v1961, %v1960
    %v1963 = vmul.f32 %v1955, %v1711
    %v1964 = vadd.f32 %v1962, %v1963
    %1965 = vst.msk [vmem:[%s1938] sm:$0x3] %vm370, %v1964
    %v1966 = vld [vmem:[#allocation9] sm:$0xff]
    %v1967 = vld [vmem:[#allocation9 + $0x8] sm:$0xff]
    %v1968 = vld [vmem:[#allocation9 + $0x10] sm:$0xff]
    %v1969 = vld [vmem:[#allocation9 + $0x18] sm:$0xff]
    %v1971 = vsel %vm246, %v1964, 0
    %1973 = vmatprep.subr.mxu0 0.0
    %1974 = vmatpush1.msra.mxu0 %v1966
    %1975 = vmatprep.subr.mxu0 0.0
    %1976 = vmatpush1.msra.mxu0 %v1967
    %1977 = vmatprep.subr.mxu0 0.0
    %1978 = vmatpush1.msra.mxu0 %v1968
    %1979 = vmatprep.subr.mxu0 0.0
    %1980 = vmatpush1.msra.mxu0 %v1969
    %1981 = vmatprep.subr.mxu0 0.0
    %1982 = vmatpush1.msra.mxu0 0.0
    %1983 = vmatprep.subr.mxu0 0.0
    %1984 = vmatpush1.msra.mxu0 0.0
    %1985 = vmatprep.subr.mxu0 0.0
    %1986 = vmatpush1.msra.mxu0 0.0
    %1987 = vmatprep.subr.mxu0 0.0
    %1988 = vmatpush1.msra.mxu0 0.0
    %1989 = vmatprep.subr.mxu0 0.0
    %1990 = vmatpush1.msra.mxu0 0.0
    %1991 = vmatprep.subr.mxu0 0.0
    %1992 = vmatpush1.msra.mxu0 0.0
    %1993 = vmatprep.subr.mxu0 0.0
    %1994 = vmatpush1.msra.mxu0 0.0
    %1995 = vmatprep.subr.mxu0 0.0
    %1996 = vmatpush1.msra.mxu0 0.0
    %1997 = vmatprep.subr.mxu0 0.0
    %1998 = vmatpush1.msra.mxu0 0.0
    %1999 = vmatprep.subr.mxu0 0.0
    %2000 = vmatpush1.msra.mxu0 0.0
    %2001 = vmatprep.subr.mxu0 0.0
    %2002 = vmatpush1.msra.mxu0 0.0
    %2003 = vmatprep.subr.mxu0 0.0
    %2004 = vmatpush1.msra.mxu0 0.0
    %2005 = vmatprep.subr.mxu0 0.0
    %2006 = vmatpush1.msra.mxu0 0.0
    %2007 = vmatprep.subr.mxu0 0.0
    %2008 = vmatpush1.msra.mxu0 0.0
    %2009 = vmatprep.subr.mxu0 0.0
    %2010 = vmatpush1.msra.mxu0 0.0
    %2011 = vmatprep.subr.mxu0 0.0
    %2012 = vmatpush1.msra.mxu0 0.0
    %2013 = vmatprep.subr.mxu0 0.0
    %2014 = vmatpush1.msra.mxu0 0.0
    %2015 = vmatprep.subr.mxu0 0.0
    %2016 = vmatpush1.msra.mxu0 0.0
    %2017 = vmatprep.subr.mxu0 0.0
    %2018 = vmatpush1.msra.mxu0 0.0
    %2019 = vmatprep.subr.mxu0 0.0
    %2020 = vmatpush1.msra.mxu0 0.0
    %2021 = vmatprep.subr.mxu0 0.0
    %2022 = vmatpush1.msra.mxu0 0.0
    %2023 = vmatprep.subr.mxu0 0.0
    %2024 = vmatpush1.msra.mxu0 0.0
    %2025 = vmatprep.subr.mxu0 0.0
    %2026 = vmatpush1.msra.mxu0 0.0
    %2027 = vmatprep.subr.mxu0 0.0
    %2028 = vmatpush1.msra.mxu0 0.0
    %2029 = vmatprep.subr.mxu0 0.0
    %2030 = vmatpush1.msra.mxu0 0.0
    %2031 = vmatprep.subr.mxu0 0.0
    %2032 = vmatpush1.msra.mxu0 0.0
    %2033 = vmatprep.subr.mxu0 0.0
    %2034 = vmatpush1.msra.mxu0 0.0
    %2035 = vmatprep.subr.mxu0 0.0
    %2036 = vmatpush1.msra.mxu0 0.0
    %2037 = vmatprep.mubr.f32.mxu0 0.0
    %2038 = vmatmul.mubr.f32.gmra.mrb[0].mxu0 %v1971
    %v2039 = vpop.f32.mrb[0].mxu0
    %v2040 = vadd.f32 %v692, %v2039
    %v2041 = vpop.f32.mrb[0].mxu0
    %2042 = vdwg.mxu0
    %v2043 = vld [vmem:[%s767] sm:$0xff]
    %v2044 = vld [vmem:[%s767 + $0x8] sm:$0xff]
    %v2045 = vld [vmem:[%s767 + $0x10] sm:$0xff]
    %v2046 = vld [vmem:[%s767 + $0x18] sm:$0xff]
    %2047 = vmatprep.subr.mxu0 0.0
    %2048 = vmatpush1.msra.mxu0 %v2043
    %2049 = vmatprep.subr.mxu0 0.0
    %2050 = vmatpush1.msra.mxu0 %v2044
    %2051 = vmatprep.subr.mxu0 0.0
    %2052 = vmatpush1.msra.mxu0 %v2045
    %2053 = vmatprep.subr.mxu0 0.0
    %2054 = vmatpush1.msra.mxu0 %v2046
    %2055 = vmatprep.subr.mxu0 0.0
    %2056 = vmatpush1.msra.mxu0 0.0
    %2057 = vmatprep.subr.mxu0 0.0
    %2058 = vmatpush1.msra.mxu0 0.0
    %2059 = vmatprep.subr.mxu0 0.0
    %2060 = vmatpush1.msra.mxu0 0.0
    %2061 = vmatprep.subr.mxu0 0.0
    %2062 = vmatpush1.msra.mxu0 0.0
    %2063 = vmatprep.subr.mxu0 0.0
    %2064 = vmatpush1.msra.mxu0 0.0
    %2065 = vmatprep.subr.mxu0 0.0
    %2066 = vmatpush1.msra.mxu0 0.0
    %2067 = vmatprep.subr.mxu0 0.0
    %2068 = vmatpush1.msra.mxu0 0.0
    %2069 = vmatprep.subr.mxu0 0.0
    %2070 = vmatpush1.msra.mxu0 0.0
    %2071 = vmatprep.subr.mxu0 0.0
    %2072 = vmatpush1.msra.mxu0 0.0
    %2073 = vmatprep.subr.mxu0 0.0
    %2074 = vmatpush1.msra.mxu0 0.0
    %2075 = vmatprep.subr.mxu0 0.0
    %2076 = vmatpush1.msra.mxu0 0.0
    %2077 = vmatprep.subr.mxu0 0.0
    %2078 = vmatpush1.msra.mxu0 0.0
    %2079 = vmatprep.subr.mxu0 0.0
    %2080 = vmatpush1.msra.mxu0 0.0
    %2081 = vmatprep.subr.mxu0 0.0
    %2082 = vmatpush1.msra.mxu0 0.0
    %2083 = vmatprep.subr.mxu0 0.0
    %2084 = vmatpush1.msra.mxu0 0.0
    %2085 = vmatprep.subr.mxu0 0.0
    %2086 = vmatpush1.msra.mxu0 0.0
    %2087 = vmatprep.subr.mxu0 0.0
    %2088 = vmatpush1.msra.mxu0 0.0
    %2089 = vmatprep.subr.mxu0 0.0
    %2090 = vmatpush1.msra.mxu0 0.0
    %2091 = vmatprep.subr.mxu0 0.0
    %2092 = vmatpush1.msra.mxu0 0.0
    %2093 = vmatprep.subr.mxu0 0.0
    %2094 = vmatpush1.msra.mxu0 0.0
    %2095 = vmatprep.subr.mxu0 0.0
    %2096 = vmatpush1.msra.mxu0 0.0
    %2097 = vmatprep.subr.mxu0 0.0
    %2098 = vmatpush1.msra.mxu0 0.0
    %2099 = vmatprep.subr.mxu0 0.0
    %2100 = vmatpush1.msra.mxu0 0.0
    %2101 = vmatprep.subr.mxu0 0.0
    %2102 = vmatpush1.msra.mxu0 0.0
    %2103 = vmatprep.subr.mxu0 0.0
    %2104 = vmatpush1.msra.mxu0 0.0
    %2105 = vmatprep.subr.mxu0 0.0
    %2106 = vmatpush1.msra.mxu0 0.0
    %2107 = vmatprep.subr.mxu0 0.0
    %2108 = vmatpush1.msra.mxu0 0.0
    %2109 = vmatprep.subr.mxu0 0.0
    %2110 = vmatpush1.msra.mxu0 0.0
    %2111 = vmatprep.mubr.f32.mxu0 0.0
    %2112 = vmatmul.mubr.f32.gmra.mrb[0].mxu0 %v1971
    %v2113 = vpop.f32.mrb[0].mxu0
    %v2114 = vadd.f32 %v776, %v2113
    %v2115 = vpop.f32.mrb[0].mxu0
    %2116 = vdwg.mxu0
    %v2117 = vld [vmem:[%s848] sm:$0xff]
    %v2118 = vld [vmem:[%s848 + $0x8] sm:$0xff]
    %v2119 = vld [vmem:[%s848 + $0x10] sm:$0xff]
    %v2120 = vld [vmem:[%s848 + $0x18] sm:$0xff]
    %2121 = vmatprep.subr.mxu0 0.0
    %2122 = vmatpush1.msra.mxu0 %v2117
    %2123 = vmatprep.subr.mxu0 0.0
    %2124 = vmatpush1.msra.mxu0 %v2118
    %2125 = vmatprep.subr.mxu0 0.0
    %2126 = vmatpush1.msra.mxu0 %v2119
    %2127 = vmatprep.subr.mxu0 0.0
    %2128 = vmatpush1.msra.mxu0 %v2120
    %2129 = vmatprep.subr.mxu0 0.0
    %2130 = vmatpush1.msra.mxu0 0.0
    %2131 = vmatprep.subr.mxu0 0.0
    %2132 = vmatpush1.msra.mxu0 0.0
    %2133 = vmatprep.subr.mxu0 0.0
    %2134 = vmatpush1.msra.mxu0 0.0
    %2135 = vmatprep.subr.mxu0 0.0
    %2136 = vmatpush1.msra.mxu0 0.0
    %2137 = vmatprep.subr.mxu0 0.0
    %2138 = vmatpush1.msra.mxu0 0.0
    %2139 = vmatprep.subr.mxu0 0.0
    %2140 = vmatpush1.msra.mxu0 0.0
    %2141 = vmatprep.subr.mxu0 0.0
    %2142 = vmatpush1.msra.mxu0 0.0
    %2143 = vmatprep.subr.mxu0 0.0
    %2144 = vmatpush1.msra.mxu0 0.0
    %2145 = vmatprep.subr.mxu0 0.0
    %2146 = vmatpush1.msra.mxu0 0.0
    %2147 = vmatprep.subr.mxu0 0.0
    %2148 = vmatpush1.msra.mxu0 0.0
    %2149 = vmatprep.subr.mxu0 0.0
    %2150 = vmatpush1.msra.mxu0 0.0
    %2151 = vmatprep.subr.mxu0 0.0
    %2152 = vmatpush1.msra.mxu0 0.0
    %2153 = vmatprep.subr.mxu0 0.0
    %2154 = vmatpush1.msra.mxu0 0.0
    %2155 = vmatprep.subr.mxu0 0.0
    %2156 = vmatpush1.msra.mxu0 0.0
    %2157 = vmatprep.subr.mxu0 0.0
    %2158 = vmatpush1.msra.mxu0 0.0
    %2159 = vmatprep.subr.mxu0 0.0
    %2160 = vmatpush1.msra.mxu0 0.0
    %2161 = vmatprep.subr.mxu0 0.0
    %2162 = vmatpush1.msra.mxu0 0.0
    %2163 = vmatprep.subr.mxu0 0.0
    %2164 = vmatpush1.msra.mxu0 0.0
    %2165 = vmatprep.subr.mxu0 0.0
    %2166 = vmatpush1.msra.mxu0 0.0
    %2167 = vmatprep.subr.mxu0 0.0
    %2168 = vmatpush1.msra.mxu0 0.0
    %2169 = vmatprep.subr.mxu0 0.0
    %2170 = vmatpush1.msra.mxu0 0.0
    %2171 = vmatprep.subr.mxu0 0.0
    %2172 = vmatpush1.msra.mxu0 0.0
    %2173 = vmatprep.subr.mxu0 0.0
    %2174 = vmatpush1.msra.mxu0 0.0
    %2175 = vmatprep.subr.mxu0 0.0
    %2176 = vmatpush1.msra.mxu0 0.0
    %2177 = vmatprep.subr.mxu0 0.0
    %2178 = vmatpush1.msra.mxu0 0.0
    %2179 = vmatprep.subr.mxu0 0.0
    %2180 = vmatpush1.msra.mxu0 0.0
    %2181 = vmatprep.subr.mxu0 0.0
    %2182 = vmatpush1.msra.mxu0 0.0
    %2183 = vmatprep.subr.mxu0 0.0
    %2184 = vmatpush1.msra.mxu0 0.0
    %2185 = vmatprep.mubr.f32.mxu0 0.0
    %2186 = vmatmul.mubr.f32.gmra.mrb[0].mxu0 %v1971
    %v2187 = vpop.f32.mrb[0].mxu0
    %v2188 = vadd.f32 %v857, %v2187
    %v2189 = vpop.f32.mrb[0].mxu0
    %2190 = vdwg.mxu0
    %s2191 = scalar_lea.vmem [#allocation2], 10
    %v2192 = vld [vmem:[%s2191] sm:$0x3]
    %v2193 = vadd.f32 %v2192, %v2040
    %v2194 = vxor.u32 %v2193, 2147483648
    %v2195 = vmul.f32 %v2194, 1.442695
    %v2196 = vpow.pop %v2195
    %v2197 = vadd.f32 %v2196, 1.0
    %v2198 = vrcp.pop %v2197
    %v2199 = vmul.f32 1.0, %v2198
    %s2200 = scalar_lea.vmem [#allocation2], 26
    %v2201 = vld [vmem:[%s2200] sm:$0x3]
    %v2202 = vadd.f32 %v2201, %v2114
    %v2203 = vxor.u32 %v2202, 2147483648
    %v2204 = vmul.f32 %v2203, 1.442695
    %v2205 = vpow.pop %v2204
    %v2206 = vadd.f32 %v2205, 1.0
    %v2207 = vrcp.pop %v2206
    %v2208 = vmul.f32 1.0, %v2207
    %s2209 = scalar_lea.vmem [#allocation2], 42
    %v2210 = vld [vmem:[%s2209] sm:$0x3]
    %v2211 = vmul.f32 %v2199, %v2188
    %v2212 = vadd.f32 %v2210, %v2211
    %v2213 = vtanh.pop %v2212
    %v2214 = vsub.f32 1.0, %v2208
    %v2215 = vmul.f32 %v2214, %v2213
    %v2216 = vmul.f32 %v2208, %v1964
    %v2217 = vadd.f32 %v2215, %v2216
    %2218 = vst.msk [vmem:[%s2191] sm:$0x3] %vm370, %v2217
    %v2219 = vld [vmem:[#allocation9] sm:$0xff]
    %v2220 = vld [vmem:[#allocation9 + $0x8] sm:$0xff]
    %v2221 = vld [vmem:[#allocation9 + $0x10] sm:$0xff]
    %v2222 = vld [vmem:[#allocation9 + $0x18] sm:$0xff]
    %v2224 = vsel %vm246, %v2217, 0
    %2226 = vmatprep.subr.mxu0 0.0
    %2227 = vmatpush1.msra.mxu0 %v2219
    %2228 = vmatprep.subr.mxu0 0.0
    %2229 = vmatpush1.msra.mxu0 %v2220
    %2230 = vmatprep.subr.mxu0 0.0
    %2231 = vmatpush1.msra.mxu0 %v2221
    %2232 = vmatprep.subr.mxu0 0.0
    %2233 = vmatpush1.msra.mxu0 %v2222
    %2234 = vmatprep.subr.mxu0 0.0
    %2235 = vmatpush1.msra.mxu0 0.0
    %2236 = vmatprep.subr.mxu0 0.0
    %2237 = vmatpush1.msra.mxu0 0.0
    %2238 = vmatprep.subr.mxu0 0.0
    %2239 = vmatpush1.msra.mxu0 0.0
    %2240 = vmatprep.subr.mxu0 0.0
    %2241 = vmatpush1.msra.mxu0 0.0
    %2242 = vmatprep.subr.mxu0 0.0
    %2243 = vmatpush1.msra.mxu0 0.0
    %2244 = vmatprep.subr.mxu0 0.0
    %2245 = vmatpush1.msra.mxu0 0.0
    %2246 = vmatprep.subr.mxu0 0.0
    %2247 = vmatpush1.msra.mxu0 0.0
    %2248 = vmatprep.subr.mxu0 0.0
    %2249 = vmatpush1.msra.mxu0 0.0
    %2250 = vmatprep.subr.mxu0 0.0
    %2251 = vmatpush1.msra.mxu0 0.0
    %2252 = vmatprep.subr.mxu0 0.0
    %2253 = vmatpush1.msra.mxu0 0.0
    %2254 = vmatprep.subr.mxu0 0.0
    %2255 = vmatpush1.msra.mxu0 0.0
    %2256 = vmatprep.subr.mxu0 0.0
    %2257 = vmatpush1.msra.mxu0 0.0
    %2258 = vmatprep.subr.mxu0 0.0
    %2259 = vmatpush1.msra.mxu0 0.0
    %2260 = vmatprep.subr.mxu0 0.0
    %2261 = vmatpush1.msra.mxu0 0.0
    %2262 = vmatprep.subr.mxu0 0.0
    %2263 = vmatpush1.msra.mxu0 0.0
    %2264 = vmatprep.subr.mxu0 0.0
    %2265 = vmatpush1.msra.mxu0 0.0
    %2266 = vmatprep.subr.mxu0 0.0
    %2267 = vmatpush1.msra.mxu0 0.0
    %2268 = vmatprep.subr.mxu0 0.0
    %2269 = vmatpush1.msra.mxu0 0.0
    %2270 = vmatprep.subr.mxu0 0.0
    %2271 = vmatpush1.msra.mxu0 0.0
    %2272 = vmatprep.subr.mxu0 0.0
    %2273 = vmatpush1.msra.mxu0 0.0
    %2274 = vmatprep.subr.mxu0 0.0
    %2275 = vmatpush1.msra.mxu0 0.0
    %2276 = vmatprep.subr.mxu0 0.0
    %2277 = vmatpush1.msra.mxu0 0.0
    %2278 = vmatprep.subr.mxu0 0.0
    %2279 = vmatpush1.msra.mxu0 0.0
    %2280 = vmatprep.subr.mxu0 0.0
    %2281 = vmatpush1.msra.mxu0 0.0
    %2282 = vmatprep.subr.mxu0 0.0
    %2283 = vmatpush1.msra.mxu0 0.0
    %2284 = vmatprep.subr.mxu0 0.0
    %2285 = vmatpush1.msra.mxu0 0.0
    %2286 = vmatprep.subr.mxu0 0.0
    %2287 = vmatpush1.msra.mxu0 0.0
    %2288 = vmatprep.subr.mxu0 0.0
    %2289 = vmatpush1.msra.mxu0 0.0
    %2290 = vmatprep.mubr.f32.mxu0 0.0
    %2291 = vmatmul.mubr.f32.gmra.mrb[0].mxu0 %v2224
    %v2292 = vpop.f32.mrb[0].mxu0
    %v2293 = vadd.f32 %v692, %v2292
    %v2294 = vpop.f32.mrb[0].mxu0
    %2295 = vdwg.mxu0
    %v2296 = vld [vmem:[%s767] sm:$0xff]
    %v2297 = vld [vmem:[%s767 + $0x8] sm:$0xff]
    %v2298 = vld [vmem:[%s767 + $0x10] sm:$0xff]
    %v2299 = vld [vmem:[%s767 + $0x18] sm:$0xff]
    %2300 = vmatprep.subr.mxu0 0.0
    %2301 = vmatpush1.msra.mxu0 %v2296
    %2302 = vmatprep.subr.mxu0 0.0
    %2303 = vmatpush1.msra.mxu0 %v2297
    %2304 = vmatprep.subr.mxu0 0.0
    %2305 = vmatpush1.msra.mxu0 %v2298
    %2306 = vmatprep.subr.mxu0 0.0
    %2307 = vmatpush1.msra.mxu0 %v2299
    %2308 = vmatprep.subr.mxu0 0.0
    %2309 = vmatpush1.msra.mxu0 0.0
    %2310 = vmatprep.subr.mxu0 0.0
    %2311 = vmatpush1.msra.mxu0 0.0
    %2312 = vmatprep.subr.mxu0 0.0
    %2313 = vmatpush1.msra.mxu0 0.0
    %2314 = vmatprep.subr.mxu0 0.0
    %2315 = vmatpush1.msra.mxu0 0.0
    %2316 = vmatprep.subr.mxu0 0.0
    %2317 = vmatpush1.msra.mxu0 0.0
    %2318 = vmatprep.subr.mxu0 0.0
    %2319 = vmatpush1.msra.mxu0 0.0
    %2320 = vmatprep.subr.mxu0 0.0
    %2321 = vmatpush1.msra.mxu0 0.0
    %2322 = vmatprep.subr.mxu0 0.0
    %2323 = vmatpush1.msra.mxu0 0.0
    %2324 = vmatprep.subr.mxu0 0.0
    %2325 = vmatpush1.msra.mxu0 0.0
    %2326 = vmatprep.subr.mxu0 0.0
    %2327 = vmatpush1.msra.mxu0 0.0
    %2328 = vmatprep.subr.mxu0 0.0
    %2329 = vmatpush1.msra.mxu0 0.0
    %2330 = vmatprep.subr.mxu0 0.0
    %2331 = vmatpush1.msra.mxu0 0.0
    %2332 = vmatprep.subr.mxu0 0.0
    %2333 = vmatpush1.msra.mxu0 0.0
    %2334 = vmatprep.subr.mxu0 0.0
    %2335 = vmatpush1.msra.mxu0 0.0
    %2336 = vmatprep.subr.mxu0 0.0
    %2337 = vmatpush1.msra.mxu0 0.0
    %2338 = vmatprep.subr.mxu0 0.0
    %2339 = vmatpush1.msra.mxu0 0.0
    %2340 = vmatprep.subr.mxu0 0.0
    %2341 = vmatpush1.msra.mxu0 0.0
    %2342 = vmatprep.subr.mxu0 0.0
    %2343 = vmatpush1.msra.mxu0 0.0
    %2344 = vmatprep.subr.mxu0 0.0
    %2345 = vmatpush1.msra.mxu0 0.0
    %2346 = vmatprep.subr.mxu0 0.0
    %2347 = vmatpush1.msra.mxu0 0.0
    %2348 = vmatprep.subr.mxu0 0.0
    %2349 = vmatpush1.msra.mxu0 0.0
    %2350 = vmatprep.subr.mxu0 0.0
    %2351 = vmatpush1.msra.mxu0 0.0
    %2352 = vmatprep.subr.mxu0 0.0
    %2353 = vmatpush1.msra.mxu0 0.0
    %2354 = vmatprep.subr.mxu0 0.0
    %2355 = vmatpush1.msra.mxu0 0.0
    %2356 = vmatprep.subr.mxu0 0.0
    %2357 = vmatpush1.msra.mxu0 0.0
    %2358 = vmatprep.subr.mxu0 0.0
    %2359 = vmatpush1.msra.mxu0 0.0
    %2360 = vmatprep.subr.mxu0 0.0
    %2361 = vmatpush1.msra.mxu0 0.0
    %2362 = vmatprep.subr.mxu0 0.0
    %2363 = vmatpush1.msra.mxu0 0.0
    %2364 = vmatprep.mubr.f32.mxu0 0.0
    %2365 = vmatmul.mubr.f32.gmra.mrb[0].mxu0 %v2224
    %v2366 = vpop.f32.mrb[0].mxu0
    %v2367 = vadd.f32 %v776, %v2366
    %v2368 = vpop.f32.mrb[0].mxu0
    %2369 = vdwg.mxu0
    %v2370 = vld [vmem:[%s848] sm:$0xff]
    %v2371 = vld [vmem:[%s848 + $0x8] sm:$0xff]
    %v2372 = vld [vmem:[%s848 + $0x10] sm:$0xff]
    %v2373 = vld [vmem:[%s848 + $0x18] sm:$0xff]
    %2374 = vmatprep.subr.mxu0 0.0
    %2375 = vmatpush1.msra.mxu0 %v2370
    %2376 = vmatprep.subr.mxu0 0.0
    %2377 = vmatpush1.msra.mxu0 %v2371
    %2378 = vmatprep.subr.mxu0 0.0
    %2379 = vmatpush1.msra.mxu0 %v2372
    %2380 = vmatprep.subr.mxu0 0.0
    %2381 = vmatpush1.msra.mxu0 %v2373
    %2382 = vmatprep.subr.mxu0 0.0
    %2383 = vmatpush1.msra.mxu0 0.0
    %2384 = vmatprep.subr.mxu0 0.0
    %2385 = vmatpush1.msra.mxu0 0.0
    %2386 = vmatprep.subr.mxu0 0.0
    %2387 = vmatpush1.msra.mxu0 0.0
    %2388 = vmatprep.subr.mxu0 0.0
    %2389 = vmatpush1.msra.mxu0 0.0
    %2390 = vmatprep.subr.mxu0 0.0
    %2391 = vmatpush1.msra.mxu0 0.0
    %2392 = vmatprep.subr.mxu0 0.0
    %2393 = vmatpush1.msra.mxu0 0.0
    %2394 = vmatprep.subr.mxu0 0.0
    %2395 = vmatpush1.msra.mxu0 0.0
    %2396 = vmatprep.subr.mxu0 0.0
    %2397 = vmatpush1.msra.mxu0 0.0
    %2398 = vmatprep.subr.mxu0 0.0
    %2399 = vmatpush1.msra.mxu0 0.0
    %2400 = vmatprep.subr.mxu0 0.0
    %2401 = vmatpush1.msra.mxu0 0.0
    %2402 = vmatprep.subr.mxu0 0.0
    %2403 = vmatpush1.msra.mxu0 0.0
    %2404 = vmatprep.subr.mxu0 0.0
    %2405 = vmatpush1.msra.mxu0 0.0
    %2406 = vmatprep.subr.mxu0 0.0
    %2407 = vmatpush1.msra.mxu0 0.0
    %2408 = vmatprep.subr.mxu0 0.0
    %2409 = vmatpush1.msra.mxu0 0.0
    %2410 = vmatprep.subr.mxu0 0.0
    %2411 = vmatpush1.msra.mxu0 0.0
    %2412 = vmatprep.subr.mxu0 0.0
    %2413 = vmatpush1.msra.mxu0 0.0
    %2414 = vmatprep.subr.mxu0 0.0
    %2415 = vmatpush1.msra.mxu0 0.0
    %2416 = vmatprep.subr.mxu0 0.0
    %2417 = vmatpush1.msra.mxu0 0.0
    %2418 = vmatprep.subr.mxu0 0.0
    %2419 = vmatpush1.msra.mxu0 0.0
    %2420 = vmatprep.subr.mxu0 0.0
    %2421 = vmatpush1.msra.mxu0 0.0
    %2422 = vmatprep.subr.mxu0 0.0
    %2423 = vmatpush1.msra.mxu0 0.0
    %2424 = vmatprep.subr.mxu0 0.0
    %2425 = vmatpush1.msra.mxu0 0.0
    %2426 = vmatprep.subr.mxu0 0.0
    %2427 = vmatpush1.msra.mxu0 0.0
    %2428 = vmatprep.subr.mxu0 0.0
    %2429 = vmatpush1.msra.mxu0 0.0
    %2430 = vmatprep.subr.mxu0 0.0
    %2431 = vmatpush1.msra.mxu0 0.0
    %2432 = vmatprep.subr.mxu0 0.0
    %2433 = vmatpush1.msra.mxu0 0.0
    %2434 = vmatprep.subr.mxu0 0.0
    %2435 = vmatpush1.msra.mxu0 0.0
    %2436 = vmatprep.subr.mxu0 0.0
    %2437 = vmatpush1.msra.mxu0 0.0
    %2438 = vmatprep.mubr.f32.mxu0 0.0
    %2439 = vmatmul.mubr.f32.gmra.mrb[0].mxu0 %v2224
    %v2440 = vpop.f32.mrb[0].mxu0
    %v2441 = vadd.f32 %v857, %v2440
    %v2442 = vpop.f32.mrb[0].mxu0
    %2443 = vdwg.mxu0
    %s2444 = scalar_lea.vmem [#allocation2], 12
    %v2445 = vld [vmem:[%s2444] sm:$0x3]
    %v2446 = vadd.f32 %v2445, %v2293
    %v2447 = vxor.u32 %v2446, 2147483648
    %v2448 = vmul.f32 %v2447, 1.442695
    %v2449 = vpow.pop %v2448
    %v2450 = vadd.f32 %v2449, 1.0
    %v2451 = vrcp.pop %v2450
    %v2452 = vmul.f32 1.0, %v2451
    %s2453 = scalar_lea.vmem [#allocation2], 28
    %v2454 = vld [vmem:[%s2453] sm:$0x3]
    %v2455 = vadd.f32 %v2454, %v2367
    %v2456 = vxor.u32 %v2455, 2147483648
    %v2457 = vmul.f32 %v2456, 1.442695
    %v2458 = vpow.pop %v2457
    %v2459 = vadd.f32 %v2458, 1.0
    %v2460 = vrcp.pop %v2459
    %v2461 = vmul.f32 1.0, %v2460
    %s2462 = scalar_lea.vmem [#allocation2], 44
    %v2463 = vld [vmem:[%s2462] sm:$0x3]
    %v2464 = vmul.f32 %v2452, %v2441
    %v2465 = vadd.f32 %v2463, %v2464
    %v2466 = vtanh.pop %v2465
    %v2467 = vsub.f32 1.0, %v2461
    %v2468 = vmul.f32 %v2467, %v2466
    %v2469 = vmul.f32 %v2461, %v2217
    %v2470 = vadd.f32 %v2468, %v2469
    %2471 = vst.msk [vmem:[%s2444] sm:$0x3] %vm370, %v2470
    %v2472 = vld [vmem:[#allocation9] sm:$0xff]
    %v2473 = vld [vmem:[#allocation9 + $0x8] sm:$0xff]
    %v2474 = vld [vmem:[#allocation9 + $0x10] sm:$0xff]
    %v2475 = vld [vmem:[#allocation9 + $0x18] sm:$0xff]
    %v2477 = vsel %vm246, %v2470, 0
    %2479 = vmatprep.subr.mxu0 0.0
    %2480 = vmatpush1.msra.mxu0 %v2472
    %2481 = vmatprep.subr.mxu0 0.0
    %2482 = vmatpush1.msra.mxu0 %v2473
    %2483 = vmatprep.subr.mxu0 0.0
    %2484 = vmatpush1.msra.mxu0 %v2474
    %2485 = vmatprep.subr.mxu0 0.0
    %2486 = vmatpush1.msra.mxu0 %v2475
    %2487 = vmatprep.subr.mxu0 0.0
    %2488 = vmatpush1.msra.mxu0 0.0
    %2489 = vmatprep.subr.mxu0 0.0
    %2490 = vmatpush1.msra.mxu0 0.0
    %2491 = vmatprep.subr.mxu0 0.0
    %2492 = vmatpush1.msra.mxu0 0.0
    %2493 = vmatprep.subr.mxu0 0.0
    %2494 = vmatpush1.msra.mxu0 0.0
    %2495 = vmatprep.subr.mxu0 0.0
    %2496 = vmatpush1.msra.mxu0 0.0
    %2497 = vmatprep.subr.mxu0 0.0
    %2498 = vmatpush1.msra.mxu0 0.0
    %2499 = vmatprep.subr.mxu0 0.0
    %2500 = vmatpush1.msra.mxu0 0.0
    %2501 = vmatprep.subr.mxu0 0.0
    %2502 = vmatpush1.msra.mxu0 0.0
    %2503 = vmatprep.subr.mxu0 0.0
    %2504 = vmatpush1.msra.mxu0 0.0
    %2505 = vmatprep.subr.mxu0 0.0
    %2506 = vmatpush1.msra.mxu0 0.0
    %2507 = vmatprep.subr.mxu0 0.0
    %2508 = vmatpush1.msra.mxu0 0.0
    %2509 = vmatprep.subr.mxu0 0.0
    %2510 = vmatpush1.msra.mxu0 0.0
    %2511 = vmatprep.subr.mxu0 0.0
    %2512 = vmatpush1.msra.mxu0 0.0
    %2513 = vmatprep.subr.mxu0 0.0
    %2514 = vmatpush1.msra.mxu0 0.0
    %2515 = vmatprep.subr.mxu0 0.0
    %2516 = vmatpush1.msra.mxu0 0.0
    %2517 = vmatprep.subr.mxu0 0.0
    %2518 = vmatpush1.msra.mxu0 0.0
    %2519 = vmatprep.subr.mxu0 0.0
    %2520 = vmatpush1.msra.mxu0 0.0
    %2521 = vmatprep.subr.mxu0 0.0
    %2522 = vmatpush1.msra.mxu0 0.0
    %2523 = vmatprep.subr.mxu0 0.0
    %2524 = vmatpush1.msra.mxu0 0.0
    %2525 = vmatprep.subr.mxu0 0.0
    %2526 = vmatpush1.msra.mxu0 0.0
    %2527 = vmatprep.subr.mxu0 0.0
    %2528 = vmatpush1.msra.mxu0 0.0
    %2529 = vmatprep.subr.mxu0 0.0
    %2530 = vmatpush1.msra.mxu0 0.0
    %2531 = vmatprep.subr.mxu0 0.0
    %2532 = vmatpush1.msra.mxu0 0.0
    %2533 = vmatprep.subr.mxu0 0.0
    %2534 = vmatpush1.msra.mxu0 0.0
    %2535 = vmatprep.subr.mxu0 0.0
    %2536 = vmatpush1.msra.mxu0 0.0
    %2537 = vmatprep.subr.mxu0 0.0
    %2538 = vmatpush1.msra.mxu0 0.0
    %2539 = vmatprep.subr.mxu0 0.0
    %2540 = vmatpush1.msra.mxu0 0.0
    %2541 = vmatprep.subr.mxu0 0.0
    %2542 = vmatpush1.msra.mxu0 0.0
    %2543 = vmatprep.mubr.f32.mxu0 0.0
    %2544 = vmatmul.mubr.f32.gmra.mrb[0].mxu0 %v2477
    %v2545 = vpop.f32.mrb[0].mxu0
    %v2546 = vadd.f32 %v692, %v2545
    %v2547 = vpop.f32.mrb[0].mxu0
    %2548 = vdwg.mxu0
    %v2549 = vld [vmem:[%s767] sm:$0xff]
    %v2550 = vld [vmem:[%s767 + $0x8] sm:$0xff]
    %v2551 = vld [vmem:[%s767 + $0x10] sm:$0xff]
    %v2552 = vld [vmem:[%s767 + $0x18] sm:$0xff]
    %2553 = vmatprep.subr.mxu0 0.0
    %2554 = vmatpush1.msra.mxu0 %v2549
    %2555 = vmatprep.subr.mxu0 0.0
    %2556 = vmatpush1.msra.mxu0 %v2550
    %2557 = vmatprep.subr.mxu0 0.0
    %2558 = vmatpush1.msra.mxu0 %v2551
    %2559 = vmatprep.subr.mxu0 0.0
    %2560 = vmatpush1.msra.mxu0 %v2552
    %2561 = vmatprep.subr.mxu0 0.0
    %2562 = vmatpush1.msra.mxu0 0.0
    %2563 = vmatprep.subr.mxu0 0.0
    %2564 = vmatpush1.msra.mxu0 0.0
    %2565 = vmatprep.subr.mxu0 0.0
    %2566 = vmatpush1.msra.mxu0 0.0
    %2567 = vmatprep.subr.mxu0 0.0
    %2568 = vmatpush1.msra.mxu0 0.0
    %2569 = vmatprep.subr.mxu0 0.0
    %2570 = vmatpush1.msra.mxu0 0.0
    %2571 = vmatprep.subr.mxu0 0.0
    %2572 = vmatpush1.msra.mxu0 0.0
    %2573 = vmatprep.subr.mxu0 0.0
    %2574 = vmatpush1.msra.mxu0 0.0
    %2575 = vmatprep.subr.mxu0 0.0
    %2576 = vmatpush1.msra.mxu0 0.0
    %2577 = vmatprep.subr.mxu0 0.0
    %2578 = vmatpush1.msra.mxu0 0.0
    %2579 = vmatprep.subr.mxu0 0.0
    %2580 = vmatpush1.msra.mxu0 0.0
    %2581 = vmatprep.subr.mxu0 0.0
    %2582 = vmatpush1.msra.mxu0 0.0
    %2583 = vmatprep.subr.mxu0 0.0
    %2584 = vmatpush1.msra.mxu0 0.0
    %2585 = vmatprep.subr.mxu0 0.0
    %2586 = vmatpush1.msra.mxu0 0.0
    %2587 = vmatprep.subr.mxu0 0.0
    %2588 = vmatpush1.msra.mxu0 0.0
    %2589 = vmatprep.subr.mxu0 0.0
    %2590 = vmatpush1.msra.mxu0 0.0
    %2591 = vmatprep.subr.mxu0 0.0
    %2592 = vmatpush1.msra.mxu0 0.0
    %2593 = vmatprep.subr.mxu0 0.0
    %2594 = vmatpush1.msra.mxu0 0.0
    %2595 = vmatprep.subr.mxu0 0.0
    %2596 = vmatpush1.msra.mxu0 0.0
    %2597 = vmatprep.subr.mxu0 0.0
    %2598 = vmatpush1.msra.mxu0 0.0
    %2599 = vmatprep.subr.mxu0 0.0
    %2600 = vmatpush1.msra.mxu0 0.0
    %2601 = vmatprep.subr.mxu0 0.0
    %2602 = vmatpush1.msra.mxu0 0.0
    %2603 = vmatprep.subr.mxu0 0.0
    %2604 = vmatpush1.msra.mxu0 0.0
    %2605 = vmatprep.subr.mxu0 0.0
    %2606 = vmatpush1.msra.mxu0 0.0
    %2607 = vmatprep.subr.mxu0 0.0
    %2608 = vmatpush1.msra.mxu0 0.0
    %2609 = vmatprep.subr.mxu0 0.0
    %2610 = vmatpush1.msra.mxu0 0.0
    %2611 = vmatprep.subr.mxu0 0.0
    %2612 = vmatpush1.msra.mxu0 0.0
    %2613 = vmatprep.subr.mxu0 0.0
    %2614 = vmatpush1.msra.mxu0 0.0
    %2615 = vmatprep.subr.mxu0 0.0
    %2616 = vmatpush1.msra.mxu0 0.0
    %2617 = vmatprep.mubr.f32.mxu0 0.0
    %2618 = vmatmul.mubr.f32.gmra.mrb[0].mxu0 %v2477
    %v2619 = vpop.f32.mrb[0].mxu0
    %v2620 = vadd.f32 %v776, %v2619
    %v2621 = vpop.f32.mrb[0].mxu0
    %2622 = vdwg.mxu0
    %v2623 = vld [vmem:[%s848] sm:$0xff]
    %v2624 = vld [vmem:[%s848 + $0x8] sm:$0xff]
    %v2625 = vld [vmem:[%s848 + $0x10] sm:$0xff]
    %v2626 = vld [vmem:[%s848 + $0x18] sm:$0xff]
    %2627 = vmatprep.subr.mxu0 0.0
    %2628 = vmatpush1.msra.mxu0 %v2623
    %2629 = vmatprep.subr.mxu0 0.0
    %2630 = vmatpush1.msra.mxu0 %v2624
    %2631 = vmatprep.subr.mxu0 0.0
    %2632 = vmatpush1.msra.mxu0 %v2625
    %2633 = vmatprep.subr.mxu0 0.0
    %2634 = vmatpush1.msra.mxu0 %v2626
    %2635 = vmatprep.subr.mxu0 0.0
    %2636 = vmatpush1.msra.mxu0 0.0
    %2637 = vmatprep.subr.mxu0 0.0
    %2638 = vmatpush1.msra.mxu0 0.0
    %2639 = vmatprep.subr.mxu0 0.0
    %2640 = vmatpush1.msra.mxu0 0.0
    %2641 = vmatprep.subr.mxu0 0.0
    %2642 = vmatpush1.msra.mxu0 0.0
    %2643 = vmatprep.subr.mxu0 0.0
    %2644 = vmatpush1.msra.mxu0 0.0
    %2645 = vmatprep.subr.mxu0 0.0
    %2646 = vmatpush1.msra.mxu0 0.0
    %2647 = vmatprep.subr.mxu0 0.0
    %2648 = vmatpush1.msra.mxu0 0.0
    %2649 = vmatprep.subr.mxu0 0.0
    %2650 = vmatpush1.msra.mxu0 0.0
    %2651 = vmatprep.subr.mxu0 0.0
    %2652 = vmatpush1.msra.mxu0 0.0
    %2653 = vmatprep.subr.mxu0 0.0
    %2654 = vmatpush1.msra.mxu0 0.0
    %2655 = vmatprep.subr.mxu0 0.0
    %2656 = vmatpush1.msra.mxu0 0.0
    %2657 = vmatprep.subr.mxu0 0.0
    %2658 = vmatpush1.msra.mxu0 0.0
    %2659 = vmatprep.subr.mxu0 0.0
    %2660 = vmatpush1.msra.mxu0 0.0
    %2661 = vmatprep.subr.mxu0 0.0
    %2662 = vmatpush1.msra.mxu0 0.0
    %2663 = vmatprep.subr.mxu0 0.0
    %2664 = vmatpush1.msra.mxu0 0.0
    %2665 = vmatprep.subr.mxu0 0.0
    %2666 = vmatpush1.msra.mxu0 0.0
    %2667 = vmatprep.subr.mxu0 0.0
    %2668 = vmatpush1.msra.mxu0 0.0
    %2669 = vmatprep.subr.mxu0 0.0
    %2670 = vmatpush1.msra.mxu0 0.0
    %2671 = vmatprep.subr.mxu0 0.0
    %2672 = vmatpush1.msra.mxu0 0.0
    %2673 = vmatprep.subr.mxu0 0.0
    %2674 = vmatpush1.msra.mxu0 0.0
    %2675 = vmatprep.subr.mxu0 0.0
    %2676 = vmatpush1.msra.mxu0 0.0
    %2677 = vmatprep.subr.mxu0 0.0
    %2678 = vmatpush1.msra.mxu0 0.0
    %2679 = vmatprep.subr.mxu0 0.0
    %2680 = vmatpush1.msra.mxu0 0.0
    %2681 = vmatprep.subr.mxu0 0.0
    %2682 = vmatpush1.msra.mxu0 0.0
    %2683 = vmatprep.subr.mxu0 0.0
    %2684 = vmatpush1.msra.mxu0 0.0
    %2685 = vmatprep.subr.mxu0 0.0
    %2686 = vmatpush1.msra.mxu0 0.0
    %2687 = vmatprep.subr.mxu0 0.0
    %2688 = vmatpush1.msra.mxu0 0.0
    %2689 = vmatprep.subr.mxu0 0.0
    %2690 = vmatpush1.msra.mxu0 0.0
    %2691 = vmatprep.mubr.f32.mxu0 0.0
    %2692 = vmatmul.mubr.f32.gmra.mrb[0].mxu0 %v2477
    %v2693 = vpop.f32.mrb[0].mxu0
    %v2694 = vadd.f32 %v857, %v2693
    %v2695 = vpop.f32.mrb[0].mxu0
    %2696 = vdwg.mxu0
    %s2697 = scalar_lea.vmem [#allocation2], 14
    %v2698 = vld [vmem:[%s2697] sm:$0x3]
    %v2699 = vadd.f32 %v2698, %v2546
    %v2700 = vxor.u32 %v2699, 2147483648
    %v2701 = vmul.f32 %v2700, 1.442695
    %v2702 = vpow.pop %v2701
    %v2703 = vadd.f32 %v2702, 1.0
    %v2704 = vrcp.pop %v2703
    %v2705 = vmul.f32 1.0, %v2704
    %s2706 = scalar_lea.vmem [#allocation2], 30
    %v2707 = vld [vmem:[%s2706] sm:$0x3]
    %v2708 = vadd.f32 %v2707, %v2620
    %v2709 = vxor.u32 %v2708, 2147483648
    %v2710 = vmul.f32 %v2709, 1.442695
    %v2711 = vpow.pop %v2710
    %v2712 = vadd.f32 %v2711, 1.0
    %v2713 = vrcp.pop %v2712
    %v2714 = vmul.f32 1.0, %v2713
    %s2715 = scalar_lea.vmem [#allocation2], 46
    %v2716 = vld [vmem:[%s2715] sm:$0x3]
    %v2717 = vmul.f32 %v2705, %v2694
    %v2718 = vadd.f32 %v2716, %v2717
    %v2719 = vtanh.pop %v2718
    %v2720 = vsub.f32 1.0, %v2714
    %v2721 = vmul.f32 %v2720, %v2719
    %v2722 = vmul.f32 %v2714, %v2470
    %v2723 = vadd.f32 %v2721, %v2722
    %2724 = vst.msk [vmem:[%s2697] sm:$0x3] %vm370, %v2723
    %v2725 = vld [vmem:[#allocation2] sm:$0x3]
    %s2726 = sld [smem:[#allocation13]]
    %v2727 = vstv %s2726
    %v2728 = vmul.f32 %v2725, %v2727
    %v2729 = vld [vmem:[%s1179] sm:$0x3]
    %s2730 = sld [smem:[#allocation13 + $0x1]]
    %v2731 = vstv %s2730
    %v2732 = vmul.f32 %v2729, %v2731
    %v2733 = vadd.f32 %v2728, %v2732
    %v2734 = vld [vmem:[%s1432] sm:$0x3]
    %s2735 = sld [smem:[#allocation13 + $0x2]]
    %v2736 = vstv %s2735
    %v2737 = vmul.f32 %v2734, %v2736
    %v2738 = vadd.f32 %v2733, %v2737
    %v2739 = vld [vmem:[%s1685] sm:$0x3]
    %s2740 = sld [smem:[#allocation13 + $0x3]]
    %v2741 = vstv %s2740
    %v2742 = vmul.f32 %v2739, %v2741
    %v2743 = vadd.f32 %v2738, %v2742
    %v2744 = vld [vmem:[%s1938] sm:$0x3]
    %s2745 = sld [smem:[#allocation13 + $0x4]]
    %v2746 = vstv %s2745
    %v2747 = vmul.f32 %v2744, %v2746
    %v2748 = vadd.f32 %v2743, %v2747
    %v2749 = vld [vmem:[%s2191] sm:$0x3]
    %s2750 = sld [smem:[#allocation13 + $0x5]]
    %v2751 = vstv %s2750
    %v2752 = vmul.f32 %v2749, %v2751
    %v2753 = vadd.f32 %v2748, %v2752
    %v2754 = vld [vmem:[%s2444] sm:$0x3]
    %s2755 = sld [smem:[#allocation13 + $0x6]]
    %v2756 = vstv %s2755
    %v2757 = vmul.f32 %v2754, %v2756
    %v2758 = vadd.f32 %v2753, %v2757
    %v2759 = vld [vmem:[%s2697] sm:$0x3]
    %s2760 = sld [smem:[#allocation13 + $0x7]]
    %v2761 = vstv %s2760
    %v2762 = vmul.f32 %v2759, %v2761
    %v2763 = vadd.f32 %v2758, %v2762
    %s2764 = sld [smem:[#allocation14]]
    %v2765 = vstv %s2764
    %v2766 = vadd.f32 %v2763, %v2765
    %2767 = vst.msk [vmem:[%s520] sm:$0x3] %vm370, %v2766
    %v2768 = vld [vmem:[#allocation2] sm:$0x3]
    %s2769 = sld [smem:[#allocation13 + $0x80]]
    %v2770 = vstv %s2769
    %v2771 = vmul.f32 %v2768, %v2770
    %v2772 = vld [vmem:[%s1179] sm:$0x3]
    %s2773 = sld [smem:[#allocation13 + $0x81]]
    %v2774 = vstv %s2773
    %v2775 = vmul.f32 %v2772, %v2774
    %v2776 = vadd.f32 %v2771, %v2775
    %v2777 = vld [vmem:[%s1432] sm:$0x3]
    %s2778 = sld [smem:[#allocation13 + $0x82]]
    %v2779 = vstv %s2778
    %v2780 = vmul.f32 %v2777, %v2779
    %v2781 = vadd.f32 %v2776, %v2780
    %v2782 = vld [vmem:[%s1685] sm:$0x3]
    %s2783 = sld [smem:[#allocation13 + $0x83]]
    %v2784 = vstv %s2783
    %v2785 = vmul.f32 %v2782, %v2784
    %v2786 = vadd.f32 %v2781, %v2785
    %v2787 = vld [vmem:[%s1938] sm:$0x3]
    %s2788 = sld [smem:[#allocation13 + $0x84]]
    %v2789 = vstv %s2788
    %v2790 = vmul.f32 %v2787, %v2789
    %v2791 = vadd.f32 %v2786, %v2790
    %v2792 = vld [vmem:[%s2191] sm:$0x3]
    %s2793 = sld [smem:[#allocation13 + $0x85]]
    %v2794 = vstv %s2793
    %v2795 = vmul.f32 %v2792, %v2794
    %v2796 = vadd.f32 %v2791, %v2795
    %v2797 = vld [vmem:[%s2444] sm:$0x3]
    %s2798 = sld [smem:[#allocation13 + $0x86]]
    %v2799 = vstv %s2798
    %v2800 = vmul.f32 %v2797, %v2799
    %v2801 = vadd.f32 %v2796, %v2800
    %v2802 = vld [vmem:[%s2697] sm:$0x3]
    %s2803 = sld [smem:[#allocation13 + $0x87]]
    %v2804 = vstv %s2803
    %v2805 = vmul.f32 %v2802, %v2804
    %v2806 = vadd.f32 %v2801, %v2805
    %s2807 = sld [smem:[#allocation14 + $0x1]]
    %v2808 = vstv %s2807
    %v2809 = vadd.f32 %v2806, %v2808
    %2810 = vst.msk [vmem:[%s1188] sm:$0x3] %vm370, %v2809
    %v2811 = vmax.f32 %v2766, %v2809
    %v2812 = vld [vmem:[#allocation2] sm:$0x3]
    %s2813 = sld [smem:[#allocation13 + $0x100]]
    %v2814 = vstv %s2813
    %v2815 = vmul.f32 %v2812, %v2814
    %v2816 = vld [vmem:[%s1179] sm:$0x3]
    %s2817 = sld [smem:[#allocation13 + $0x101]]
    %v2818 = vstv %s2817
    %v2819 = vmul.f32 %v2816, %v2818
    %v2820 = vadd.f32 %v2815, %v2819
    %v2821 = vld [vmem:[%s1432] sm:$0x3]
    %s2822 = sld [smem:[#allocation13 + $0x102]]
    %v2823 = vstv %s2822
    %v2824 = vmul.f32 %v2821, %v2823
    %v2825 = vadd.f32 %v2820, %v2824
    %v2826 = vld [vmem:[%s1685] sm:$0x3]
    %s2827 = sld [smem:[#allocation13 + $0x103]]
    %v2828 = vstv %s2827
    %v2829 = vmul.f32 %v2826, %v2828
    %v2830 = vadd.f32 %v2825, %v2829
    %v2831 = vld [vmem:[%s1938] sm:$0x3]
    %s2832 = sld [smem:[#allocation13 + $0x104]]
    %v2833 = vstv %s2832
    %v2834 = vmul.f32 %v2831, %v2833
    %v2835 = vadd.f32 %v2830, %v2834
    %v2836 = vld [vmem:[%s2191] sm:$0x3]
    %s2837 = sld [smem:[#allocation13 + $0x105]]
    %v2838 = vstv %s2837
    %v2839 = vmul.f32 %v2836, %v2838
    %v2840 = vadd.f32 %v2835, %v2839
    %v2841 = vld [vmem:[%s2444] sm:$0x3]
    %s2842 = sld [smem:[#allocation13 + $0x106]]
    %v2843 = vstv %s2842
    %v2844 = vmul.f32 %v2841, %v2843
    %v2845 = vadd.f32 %v2840, %v2844
    %v2846 = vld [vmem:[%s2697] sm:$0x3]
    %s2847 = sld [smem:[#allocation13 + $0x107]]
    %v2848 = vstv %s2847
    %v2849 = vmul.f32 %v2846, %v2848
    %v2850 = vadd.f32 %v2845, %v2849
    %s2851 = sld [smem:[#allocation14 + $0x2]]
    %v2852 = vstv %s2851
    %v2853 = vadd.f32 %v2850, %v2852
    %2854 = vst.msk [vmem:[%s1441] sm:$0x3] %vm370, %v2853
    %v2855 = vmax.f32 %v2811, %v2853
    %v2856 = vld [vmem:[#allocation2] sm:$0x3]
    %s2857 = sld [smem:[#allocation13 + $0x180]]
    %v2858 = vstv %s2857
    %v2859 = vmul.f32 %v2856, %v2858
    %v2860 = vld [vmem:[%s1179] sm:$0x3]
    %s2861 = sld [smem:[#allocation13 + $0x181]]
    %v2862 = vstv %s2861
    %v2863 = vmul.f32 %v2860, %v2862
    %v2864 = vadd.f32 %v2859, %v2863
    %v2865 = vld [vmem:[%s1432] sm:$0x3]
    %s2866 = sld [smem:[#allocation13 + $0x182]]
    %v2867 = vstv %s2866
    %v2868 = vmul.f32 %v2865, %v2867
    %v2869 = vadd.f32 %v2864, %v2868
    %v2870 = vld [vmem:[%s1685] sm:$0x3]
    %s2871 = sld [smem:[#allocation13 + $0x183]]
    %v2872 = vstv %s2871
    %v2873 = vmul.f32 %v2870, %v2872
    %v2874 = vadd.f32 %v2869, %v2873
    %v2875 = vld [vmem:[%s1938] sm:$0x3]
    %s2876 = sld [smem:[#allocation13 + $0x184]]
    %v2877 = vstv %s2876
    %v2878 = vmul.f32 %v2875, %v2877
    %v2879 = vadd.f32 %v2874, %v2878
    %v2880 = vld [vmem:[%s2191] sm:$0x3]
    %s2881 = sld [smem:[#allocation13 + $0x185]]
    %v2882 = vstv %s2881
    %v2883 = vmul.f32 %v2880, %v2882
    %v2884 = vadd.f32 %v2879, %v2883
    %v2885 = vld [vmem:[%s2444] sm:$0x3]
    %s2886 = sld [smem:[#allocation13 + $0x186]]
    %v2887 = vstv %s2886
    %v2888 = vmul.f32 %v2885, %v2887
    %v2889 = vadd.f32 %v2884, %v2888
    %v2890 = vld [vmem:[%s2697] sm:$0x3]
    %s2891 = sld [smem:[#allocation13 + $0x187]]
    %v2892 = vstv %s2891
    %v2893 = vmul.f32 %v2890, %v2892
    %v2894 = vadd.f32 %v2889, %v2893
    %s2895 = sld [smem:[#allocation14 + $0x3]]
    %v2896 = vstv %s2895
    %v2897 = vadd.f32 %v2894, %v2896
    %2898 = vst.msk [vmem:[%s1694] sm:$0x3] %vm370, %v2897
    %v2899 = vmax.f32 %v2855, %v2897
    %v2900 = vld [vmem:[#allocation2] sm:$0x3]
    %s2901 = sld [smem:[#allocation13 + $0x200]]
    %v2902 = vstv %s2901
    %v2903 = vmul.f32 %v2900, %v2902
    %v2904 = vld [vmem:[%s1179] sm:$0x3]
    %s2905 = sld [smem:[#allocation13 + $0x201]]
    %v2906 = vstv %s2905
    %v2907 = vmul.f32 %v2904, %v2906
    %v2908 = vadd.f32 %v2903, %v2907
    %v2909 = vld [vmem:[%s1432] sm:$0x3]
    %s2910 = sld [smem:[#allocation13 + $0x202]]
    %v2911 = vstv %s2910
    %v2912 = vmul.f32 %v2909, %v2911
    %v2913 = vadd.f32 %v2908, %v2912
    %v2914 = vld [vmem:[%s1685] sm:$0x3]
    %s2915 = sld [smem:[#allocation13 + $0x203]]
    %v2916 = vstv %s2915
    %v2917 = vmul.f32 %v2914, %v2916
    %v2918 = vadd.f32 %v2913, %v2917
    %v2919 = vld [vmem:[%s1938] sm:$0x3]
    %s2920 = sld [smem:[#allocation13 + $0x204]]
    %v2921 = vstv %s2920
    %v2922 = vmul.f32 %v2919, %v2921
    %v2923 = vadd.f32 %v2918, %v2922
    %v2924 = vld [vmem:[%s2191] sm:$0x3]
    %s2925 = sld [smem:[#allocation13 + $0x205]]
    %v2926 = vstv %s2925
    %v2927 = vmul.f32 %v2924, %v2926
    %v2928 = vadd.f32 %v2923, %v2927
    %v2929 = vld [vmem:[%s2444] sm:$0x3]
    %s2930 = sld [smem:[#allocation13 + $0x206]]
    %v2931 = vstv %s2930
    %v2932 = vmul.f32 %v2929, %v2931
    %v2933 = vadd.f32 %v2928, %v2932
    %v2934 = vld [vmem:[%s2697] sm:$0x3]
    %s2935 = sld [smem:[#allocation13 + $0x207]]
    %v2936 = vstv %s2935
    %v2937 = vmul.f32 %v2934, %v2936
    %v2938 = vadd.f32 %v2933, %v2937
    %s2939 = sld [smem:[#allocation14 + $0x4]]
    %v2940 = vstv %s2939
    %v2941 = vadd.f32 %v2938, %v2940
    %2942 = vst.msk [vmem:[%s1947] sm:$0x3] %vm370, %v2941
    %v2943 = vmax.f32 %v2899, %v2941
    %v2944 = vld [vmem:[#allocation2] sm:$0x3]
    %s2945 = sld [smem:[#allocation13 + $0x280]]
    %v2946 = vstv %s2945
    %v2947 = vmul.f32 %v2944, %v2946
    %v2948 = vld [vmem:[%s1179] sm:$0x3]
    %s2949 = sld [smem:[#allocation13 + $0x281]]
    %v2950 = vstv %s2949
    %v2951 = vmul.f32 %v2948, %v2950
    %v2952 = vadd.f32 %v2947, %v2951
    %v2953 = vld [vmem:[%s1432] sm:$0x3]
    %s2954 = sld [smem:[#allocation13 + $0x282]]
    %v2955 = vstv %s2954
    %v2956 = vmul.f32 %v2953, %v2955
    %v2957 = vadd.f32 %v2952, %v2956
    %v2958 = vld [vmem:[%s1685] sm:$0x3]
    %s2959 = sld [smem:[#allocation13 + $0x283]]
    %v2960 = vstv %s2959
    %v2961 = vmul.f32 %v2958, %v2960
    %v2962 = vadd.f32 %v2957, %v2961
    %v2963 = vld [vmem:[%s1938] sm:$0x3]
    %s2964 = sld [smem:[#allocation13 + $0x284]]
    %v2965 = vstv %s2964
    %v2966 = vmul.f32 %v2963, %v2965
    %v2967 = vadd.f32 %v2962, %v2966
    %v2968 = vld [vmem:[%s2191] sm:$0x3]
    %s2969 = sld [smem:[#allocation13 + $0x285]]
    %v2970 = vstv %s2969
    %v2971 = vmul.f32 %v2968, %v2970
    %v2972 = vadd.f32 %v2967, %v2971
    %v2973 = vld [vmem:[%s2444] sm:$0x3]
    %s2974 = sld [smem:[#allocation13 + $0x286]]
    %v2975 = vstv %s2974
    %v2976 = vmul.f32 %v2973, %v2975
    %v2977 = vadd.f32 %v2972, %v2976
    %v2978 = vld [vmem:[%s2697] sm:$0x3]
    %s2979 = sld [smem:[#allocation13 + $0x287]]
    %v2980 = vstv %s2979
    %v2981 = vmul.f32 %v2978, %v2980
    %v2982 = vadd.f32 %v2977, %v2981
    %s2983 = sld [smem:[#allocation14 + $0x5]]
    %v2984 = vstv %s2983
    %v2985 = vadd.f32 %v2982, %v2984
    %2986 = vst.msk [vmem:[%s2200] sm:$0x3] %vm370, %v2985
    %v2987 = vmax.f32 %v2943, %v2985
    %v2988 = vld [vmem:[#allocation2] sm:$0x3]
    %s2989 = sld [smem:[#allocation13 + $0x300]]
    %v2990 = vstv %s2989
    %v2991 = vmul.f32 %v2988, %v2990
    %v2992 = vld [vmem:[%s1179] sm:$0x3]
    %s2993 = sld [smem:[#allocation13 + $0x301]]
    %v2994 = vstv %s2993
    %v2995 = vmul.f32 %v2992, %v2994
    %v2996 = vadd.f32 %v2991, %v2995
    %v2997 = vld [vmem:[%s1432] sm:$0x3]
    %s2998 = sld [smem:[#allocation13 + $0x302]]
    %v2999 = vstv %s2998
    %v3000 = vmul.f32 %v2997, %v2999
    %v3001 = vadd.f32 %v2996, %v3000
    %v3002 = vld [vmem:[%s1685] sm:$0x3]
    %s3003 = sld [smem:[#allocation13 + $0x303]]
    %v3004 = vstv %s3003
    %v3005 = vmul.f32 %v3002, %v3004
    %v3006 = vadd.f32 %v3001, %v3005
    %v3007 = vld [vmem:[%s1938] sm:$0x3]
    %s3008 = sld [smem:[#allocation13 + $0x304]]
    %v3009 = vstv %s3008
    %v3010 = vmul.f32 %v3007, %v3009
    %v3011 = vadd.f32 %v3006, %v3010
    %v3012 = vld [vmem:[%s2191] sm:$0x3]
    %s3013 = sld [smem:[#allocation13 + $0x305]]
    %v3014 = vstv %s3013
    %v3015 = vmul.f32 %v3012, %v3014
    %v3016 = vadd.f32 %v3011, %v3015
    %v3017 = vld [vmem:[%s2444] sm:$0x3]
    %s3018 = sld [smem:[#allocation13 + $0x306]]
    %v3019 = vstv %s3018
    %v3020 = vmul.f32 %v3017, %v3019
    %v3021 = vadd.f32 %v3016, %v3020
    %v3022 = vld [vmem:[%s2697] sm:$0x3]
    %s3023 = sld [smem:[#allocation13 + $0x307]]
    %v3024 = vstv %s3023
    %v3025 = vmul.f32 %v3022, %v3024
    %v3026 = vadd.f32 %v3021, %v3025
    %s3027 = sld [smem:[#allocation14 + $0x6]]
    %v3028 = vstv %s3027
    %v3029 = vadd.f32 %v3026, %v3028
    %3030 = vst.msk [vmem:[%s2453] sm:$0x3] %vm370, %v3029
    %v3031 = vmax.f32 %v2987, %v3029
    %v3032 = vld [vmem:[#allocation2] sm:$0x3]
    %s3033 = sld [smem:[#allocation13 + $0x380]]
    %v3034 = vstv %s3033
    %v3035 = vmul.f32 %v3032, %v3034
    %v3036 = vld [vmem:[%s1179] sm:$0x3]
    %s3037 = sld [smem:[#allocation13 + $0x381]]
    %v3038 = vstv %s3037
    %v3039 = vmul.f32 %v3036, %v3038
    %v3040 = vadd.f32 %v3035, %v3039
    %v3041 = vld [vmem:[%s1432] sm:$0x3]
    %s3042 = sld [smem:[#allocation13 + $0x382]]
    %v3043 = vstv %s3042
    %v3044 = vmul.f32 %v3041, %v3043
    %v3045 = vadd.f32 %v3040, %v3044
    %v3046 = vld [vmem:[%s1685] sm:$0x3]
    %s3047 = sld [smem:[#allocation13 + $0x383]]
    %v3048 = vstv %s3047
    %v3049 = vmul.f32 %v3046, %v3048
    %v3050 = vadd.f32 %v3045, %v3049
    %v3051 = vld [vmem:[%s1938] sm:$0x3]
    %s3052 = sld [smem:[#allocation13 + $0x384]]
    %v3053 = vstv %s3052
    %v3054 = vmul.f32 %v3051, %v3053
    %v3055 = vadd.f32 %v3050, %v3054
    %v3056 = vld [vmem:[%s2191] sm:$0x3]
    %s3057 = sld [smem:[#allocation13 + $0x385]]
    %v3058 = vstv %s3057
    %v3059 = vmul.f32 %v3056, %v3058
    %v3060 = vadd.f32 %v3055, %v3059
    %v3061 = vld [vmem:[%s2444] sm:$0x3]
    %s3062 = sld [smem:[#allocation13 + $0x386]]
    %v3063 = vstv %s3062
    %v3064 = vmul.f32 %v3061, %v3063
    %v3065 = vadd.f32 %v3060, %v3064
    %v3066 = vld [vmem:[%s2697] sm:$0x3]
    %s3067 = sld [smem:[#allocation13 + $0x387]]
    %v3068 = vstv %s3067
    %v3069 = vmul.f32 %v3066, %v3068
    %v3070 = vadd.f32 %v3065, %v3069
    %s3071 = sld [smem:[#allocation14 + $0x7]]
    %v3072 = vstv %s3071
    %v3073 = vadd.f32 %v3070, %v3072
    %3074 = vst.msk [vmem:[%s2706] sm:$0x3] %vm370, %v3073
    %v3075 = vmax.f32 %v3031, %v3073
    %v3076 = vld [vmem:[%s520] sm:$0x3]
    %v3077 = vsub.f32 %v3076, %v3075
    %v3078 = vmul.f32 %v3077, 1.442695
    %v3079 = vpow.pop %v3078
    %3080 = vst.msk [vmem:[%s520] sm:$0x3] %vm370, %v3079
    %v3081 = vadd.f32 %v3079, 0.0
    %v3082 = vld [vmem:[%s1188] sm:$0x3]
    %v3083 = vsub.f32 %v3082, %v3075
    %v3084 = vmul.f32 %v3083, 1.442695
    %v3085 = vpow.pop %v3084
    %3086 = vst.msk [vmem:[%s1188] sm:$0x3] %vm370, %v3085
    %v3087 = vadd.f32 %v3081, %v3085
    %v3088 = vld [vmem:[%s1441] sm:$0x3]
    %v3089 = vsub.f32 %v3088, %v3075
    %v3090 = vmul.f32 %v3089, 1.442695
    %v3091 = vpow.pop %v3090
    %3092 = vst.msk [vmem:[%s1441] sm:$0x3] %vm370, %v3091
    %v3093 = vadd.f32 %v3087, %v3091
    %v3094 = vld [vmem:[%s1694] sm:$0x3]
    %v3095 = vsub.f32 %v3094, %v3075
    %v3096 = vmul.f32 %v3095, 1.442695
    %v3097 = vpow.pop %v3096
    %3098 = vst.msk [vmem:[%s1694] sm:$0x3] %vm370, %v3097
    %v3099 = vadd.f32 %v3093, %v3097
    %v3100 = vld [vmem:[%s1947] sm:$0x3]
    %v3101 = vsub.f32 %v3100, %v3075
    %v3102 = vmul.f32 %v3101, 1.442695
    %v3103 = vpow.pop %v3102
    %3104 = vst.msk [vmem:[%s1947] sm:$0x3] %vm370, %v3103
    %v3105 = vadd.f32 %v3099, %v3103
    %v3106 = vld [vmem:[%s2200] sm:$0x3]
    %v3107 = vsub.f32 %v3106, %v3075
    %v3108 = vmul.f32 %v3107, 1.442695
    %v3109 = vpow.pop %v3108
    %3110 = vst.msk [vmem:[%s2200] sm:$0x3] %vm370, %v3109
    %v3111 = vadd.f32 %v3105, %v3109
    %v3112 = vld [vmem:[%s2453] sm:$0x3]
    %v3113 = vsub.f32 %v3112, %v3075
    %v3114 = vmul.f32 %v3113, 1.442695
    %v3115 = vpow.pop %v3114
    %3116 = vst.msk [vmem:[%s2453] sm:$0x3] %vm370, %v3115
    %v3117 = vadd.f32 %v3111, %v3115
    %v3118 = vld [vmem:[%s2706] sm:$0x3]
    %v3119 = vsub.f32 %v3118, %v3075
    %v3120 = vmul.f32 %v3119, 1.442695
    %v3121 = vpow.pop %v3120
    %3122 = vst.msk [vmem:[%s2706] sm:$0x3] %vm370, %v3121
    %v3123 = vadd.f32 %v3117, %v3121
    %v3124 = vrcp.pop %v3123
    %v3125 = vld [vmem:[#allocation2] sm:$0x3]
    %v3126 = vld [vmem:[%s520] sm:$0x3]
    %v3127 = vmul.f32 %v3125, %v3126
    %v3128 = vmul.f32 %v3127, %v3124
    %v3129 = vld [vmem:[%s1179] sm:$0x3]
    %v3130 = vld [vmem:[%s1188] sm:$0x3]
    %v3131 = vmul.f32 %v3129, %v3130
    %v3132 = vmul.f32 %v3131, %v3124
    %v3133 = vld [vmem:[%s1432] sm:$0x3]
    %v3134 = vld [vmem:[%s1441] sm:$0x3]
    %v3135 = vmul.f32 %v3133, %v3134
    %v3136 = vmul.f32 %v3135, %v3124
    %v3137 = vld [vmem:[%s1685] sm:$0x3]
    %v3138 = vld [vmem:[%s1694] sm:$0x3]
    %v3139 = vmul.f32 %v3137, %v3138
    %v3140 = vmul.f32 %v3139, %v3124
    %v3141 = vld [vmem:[%s1938] sm:$0x3]
    %v3142 = vld [vmem:[%s1947] sm:$0x3]
    %v3143 = vmul.f32 %v3141, %v3142
    %v3144 = vmul.f32 %v3143, %v3124
    %v3145 = vld [vmem:[%s2191] sm:$0x3]
    %v3146 = vld [vmem:[%s2200] sm:$0x3]
    %v3147 = vmul.f32 %v3145, %v3146
    %v3148 = vmul.f32 %v3147, %v3124
    %v3149 = vld [vmem:[%s2444] sm:$0x3]
    %v3150 = vld [vmem:[%s2453] sm:$0x3]
    %v3151 = vmul.f32 %v3149, %v3150
    %v3152 = vmul.f32 %v3151, %v3124
    %v3153 = vld [vmem:[%s2697] sm:$0x3]
    %v3154 = vld [vmem:[%s2706] sm:$0x3]
    %v3155 = vmul.f32 %v3153, %v3154
    %v3156 = vmul.f32 %v3155, %v3124
    %3158 = vrot.lane.b32.xlu0 %v3132, 32
    %v3159 = vpop.permute.xlu0 %3158
    %3162 = vrot.lane.b32.xlu0 %v3136, 64
    %v3163 = vpop.permute.xlu0 %3162
    %3166 = vrot.lane.b32.xlu0 %v3140, 96
    %v3167 = vpop.permute.xlu0 %3166
    %3170 = vrot.lane.b32.xlu0 %v3148, 32
    %v3171 = vpop.permute.xlu0 %3170
    %3174 = vrot.lane.b32.xlu0 %v3152, 64
    %v3175 = vpop.permute.xlu0 %3174
    %3178 = vrot.lane.b32.xlu0 %v3156, 96
    %v3179 = vpop.permute.xlu0 %3178
    %v3181 = vsel %vm246, %v3128, %v3159
    %vm3182 = vcmask 523264
    %v3183 = vsel %vm3182, %v3181, %v3163
    %vm3184 = vcmask 785408
    %v3185 = vsel %vm3184, %v3183, %v3167
    %v3186 = vsel %vm246, %v3144, %v3171
    %v3187 = vsel %vm3182, %v3186, %v3175
    %v3188 = vsel %vm3184, %v3187, %v3179
    %v3191 = vcombine.low %v3185, %v3188
    %v3193 = vunpack.c.l.s4 1983009808
    %v3194 = vunpack.c.0.s8 %v3193
    %v3195 = vlaneseq
    %v3196 = vshrl.u32 %v3195, 7
    %v3197 = vsub.s32 %v3194, %v3196
    %v3198 = vrot.slane %v3191, %v3197
    %3200 = vst [vmem:[#allocation16] sm:$0xf] %v3198
    // Predicated region
    $region58: #{tpu_custom_call.1} parent=1 // pred_check
      _
    $region59: #{tpu_custom_call.1} parent=1 // pred_check_branch
      %3202 = sbr.rel (0) target = $region61
    $region60: #{tpu_custom_call.1} parent=1 // pred_region
      %s3204 = ssub.s32 64, 64
      %3205 = vsyncadd [#allocation5], %s3204
      %s3207 = sshll.u32 [#allocation16], 4
      %s3208 = int_to_ptr.vmem [resolvable:$true] %s3207
      %3210 = dma.vmem_to_hbm [thread:$0]  %s3208, 64, %s7, [#allocation5]
    $region61: #{tpu_custom_call.1} parent=1 // pred_fallthru
      _
    // Predicated region
    $region62: #{tpu_custom_call.1} parent=1 // pred_check
      _
    $region63: #{tpu_custom_call.1} parent=1 // pred_check_branch
      %3212 = sbr.rel (0) target = $region65
    $region64: #{tpu_custom_call.1} parent=1 // pred_region
      %3213 = dma.done [#allocation5], 64
    $region65: #{tpu_custom_call.1} parent=1 // pred_fallthru
      _
    %3214 = vsyncpa [#allocation4], 1
    %3215 = vsyncpa [#allocation8], 1
    %3216 = vsyncpa [#allocation11], 1
    %3217 = vsyncpa [#allocation5], 1
    %3218 = vsyncpa [#allocation6], 1
    %3219 = vsyncpa [#allocation15], 1

</llo_original>
